<compile_context>
chip_gen: v6e
topology: v6e:2x2x1
jax: 0.10.0
libtpu: 0.0.40
codegen_flags: <defaults>
</compile_context>

<pallas_src>
import functools

import jax
import jax.numpy as jnp
from jax.experimental import pallas as pl
from jax.experimental.pallas import tpu as pltpu

STEM_C = 16       # reduced from 64   (backbone stem channels)
REP = 64          # reduced from 1024 (TwoMLPHead representation size)
MASK_HIDDEN = 32  # reduced from 256  (hidden_layer in MaskRCNNPredictor)
CP = 128          # channel padding (lane width) for the NHWC mask-branch layout

_VMEM_LIMIT = 32 * 1024 * 1024   # portable budget (v7x has 64 MiB phys VMEM)


def _round_up(x, m):
    return (x + m - 1) // m * m


def _pick_m_tiles(m):
    """Row padding + row tile: rows padded to a multiple of 16 (bf16 sublane packing),
    tiles up to 256 rows, and >=2 row blocks when possible so the 'parallel' grid axis
    can be sharded across v7x's two TensorCores."""
    mp = _round_up(m, 16)
    if mp >= 512:
        tm = 256
    elif mp >= 32:
        tm = _round_up(mp // 2, 16)
    else:
        tm = mp
    return _round_up(mp, tm), tm


def _pick_div_tile(p, cap):
    """Largest multiple-of-128 tile <= cap that divides p (p is a multiple of 128)."""
    t = min(p, cap)
    while p % t != 0:
        t -= 128
    return t


# ----------------------------------------------------------------------------
# Pallas kernels
# ----------------------------------------------------------------------------
def _mm_kernel(a_ref, b_ref, bias_ref, o_ref, acc_ref, *, relu):
    """Tiled matmul, K-reduction grid (innermost 'arbitrary'), f32 VMEM accumulator,
    bias(+ReLU) epilogue on the last K step, output cast to o_ref.dtype (bf16 for
    intermediate activations).  MXU inputs are bf16; elementwise math is f32."""
    @pl.when(pl.program_id(2) == 0)
    def _():
        acc_ref[...] = jnp.zeros_like(acc_ref)

    acc_ref[...] += jnp.dot(a_ref[...].astype(jnp.bfloat16), b_ref[...],
                            preferred_element_type=jnp.float32)

    @pl.when(pl.program_id(2) == pl.num_programs(2) - 1)
    def _():
        out = acc_ref[...] + bias_ref[...]
        if relu:
            out = jnp.maximum(out, 0.0)
        o_ref[...] = out.astype(o_ref.dtype)


def pallas_linear(x, w_bf16, b, relu=False, out_dtype=jnp.float32):
    """y = relu?(x @ w + b).  x: (M, K) bf16; w_bf16: (Kp, Np) bf16 pre-padded at init;
    b: (1, Np) f32.  Returns the full lane-dense (M, Np) result (no column slicing)."""
    M, K = x.shape
    Kp, Np = w_bf16.shape
    Mp, TM = _pick_m_tiles(M)
    TN = _pick_div_tile(Np, 256)
    TK = _pick_div_tile(Kp, 2048)

    xp = x
    if (Mp, Kp) != (M, K):
        xp = jnp.pad(x, ((0, Mp - M), (0, Kp - K)))

    out = pl.pallas_call(
        functools.partial(_mm_kernel, relu=relu),
        out_shape=jax.ShapeDtypeStruct((Mp, Np), out_dtype),
        grid=(Mp // TM, Np // TN, Kp // TK),
        in_specs=[
            pl.BlockSpec((TM, TK), lambda i, j, k: (i, k)),
            pl.BlockSpec((TK, TN), lambda i, j, k: (k, j)),
            pl.BlockSpec((1, TN), lambda i, j, k: (0, j)),
        ],
        out_specs=pl.BlockSpec((TM, TN), lambda i, j, k: (i, j)),
        scratch_shapes=[pltpu.VMEM((TM, TN), jnp.float32)],
        compiler_params=pltpu.CompilerParams(
            dimension_semantics=("parallel", "parallel", "arbitrary"),
            vmem_limit_bytes=_VMEM_LIMIT),
    )(xp, w_bf16, b)
    return out[:M] if Mp != M else out


def _box_branch_kernel(x_ref, w6_ref, b6_ref, w7_ref, b7_ref, wh_ref, bh_ref,
                       logits_ref, scores_ref, *, num_classes):
    """Fused box branch: TwoMLPHead (fc6+ReLU, fc7+ReLU) + FastRCNNPredictor
    ([cls_score | bbox_pred] in one matmul) + exact class softmax.  M is tiny, so all
    weights stay VMEM-resident; this removes 2 launches and 2 HBM round trips of h."""
    h = jnp.dot(x_ref[...], w6_ref[...], preferred_element_type=jnp.float32) + b6_ref[...]
    h = jnp.maximum(h, 0.0)
    h = jnp.dot(h.astype(jnp.bfloat16), w7_ref[...],
                preferred_element_type=jnp.float32) + b7_ref[...]
    h = jnp.maximum(h, 0.0)
    logits = jnp.dot(h.astype(jnp.bfloat16), wh_ref[...],
                     preferred_element_type=jnp.float32) + bh_ref[...]
    logits_ref[...] = logits

    lane = jax.lax.broadcasted_iota(jnp.int32, logits.shape, 1)
    valid = lane < num_classes
    cls = jnp.where(valid, logits, jnp.full_like(logits, -1e30))
    mx = jnp.max(cls, axis=-1, keepdims=True)
    e = jnp.where(valid, jnp.exp(cls - mx), 0.0)
    s = jnp.sum(e, axis=-1, keepdims=True)
    scores_ref[...] = e / s            # exact softmax (torch.softmax parity)


def box_branch(feat_box, wbf, master, num_classes):
    """feat_box: (M, box_in_features) bf16.  Returns (class_logits, scores, box_regression)."""
    M, _ = feat_box.shape
    Mp = _round_up(M, 16)
    xp = jnp.pad(feat_box, ((0, Mp - M), (0, 0))) if Mp != M else feat_box
    Np = master["head_b"].shape[1]

    logits, scores = pl.pallas_call(
        functools.partial(_box_branch_kernel, num_classes=num_classes),
        out_shape=(jax.ShapeDtypeStruct((Mp, Np), jnp.float32),
                   jax.ShapeDtypeStruct((Mp, Np), jnp.float32)),
        compiler_params=pltpu.CompilerParams(vmem_limit_bytes=_VMEM_LIMIT),
    )(xp, wbf["fc6_w"], master["fc6_b"], wbf["fc7_w"], master["fc7_b"],
      wbf["head_w"], master["head_b"])

    class_logits = logits[:M, :num_classes]
    box_regression = logits[:M, num_classes:num_classes + 4 * num_classes]
    cls_scores = scores[:M, :num_classes]
    return class_logits, cls_scores, box_regression


def _deconv_logits_kernel(x_ref, w1_ref, b1_ref, w2_ref, b2_ref, o_ref):
    """MaskRCNNPredictor fused: conv5_mask (2x2 s2 deconv as one matmul over the 4
    output taps) + ReLU + 1x1 mask-logits conv (block-diagonal expanded weight)."""
    z = jnp.dot(x_ref[...], w1_ref[...],
                preferred_element_type=jnp.float32) + b1_ref[...]
    z = jnp.maximum(z, 0.0)
    o_ref[...] = jnp.dot(z.astype(jnp.bfloat16), w2_ref[...],
                         preferred_element_type=jnp.float32) + b2_ref[...]


def mask_predictor(m_feat, w1, b1, w2, b2, num_classes):
    """m_feat: (N, H, W, CP) bf16 NHWC (real channels = MASK_HIDDEN).
    Returns mask logits (N, num_classes, 2H, 2W) (NCHW, torch convention)."""
    N, H, W, Cp = m_feat.shape
    x = m_feat.reshape(N * H * W, Cp)
    M = x.shape[0]
    Mp, TM = _pick_m_tiles(M)
    xb = jnp.pad(x, ((0, Mp - M), (0, 0))) if Mp != M else x
    C4 = w1.shape[1]     # MASK_HIDDEN * 4 == 128 (lane-dense, no padding)
    Np2 = w2.shape[1]    # padded num_classes * 4

    out = pl.pallas_call(
        _deconv_logits_kernel,
        out_shape=jax.ShapeDtypeStruct((Mp, Np2), jnp.float32),
        grid=(Mp // TM,),
        in_specs=[
            pl.BlockSpec((TM, Cp), lambda i: (i, 0)),
            pl.BlockSpec((Cp, C4), lambda i: (0, 0)),
            pl.BlockSpec((1, C4), lambda i: (0, 0)),
            pl.BlockSpec((C4, Np2), lambda i: (0, 0)),
            pl.BlockSpec((1, Np2), lambda i: (0, 0)),
        ],
        out_specs=pl.BlockSpec((TM, Np2), lambda i: (i, 0)),
        compiler_params=pltpu.CompilerParams(
            dimension_semantics=("parallel",),
            vmem_limit_bytes=_VMEM_LIMIT),
    )(xb, w1, b1, w2, b2)

    # Column order is (tap=ty*2+tx major, class minor) by construction of w1/w2 at init;
    # the reshape below is the matching inverse (internally consistent).
    y = out[:M, :4 * num_classes].reshape(N, H, W, 2, 2, num_classes)
    y = y.transpose(0, 5, 1, 3, 2, 4)                  # (N, k, H, ty, W, tx)
    return y.reshape(N, num_classes, 2 * H, 2 * W)


# ----------------------------------------------------------------------------
# EMA update (Pallas for big leaves, jnp for the small-leaf tail, in place)
# ----------------------------------------------------------------------------
def _ema_kernel(t_ref, s_ref, o_ref, obf_ref, *, m):
    new = m * t_ref[...] + (1.0 - m) * s_ref[...]
    o_ref[...] = new
    obf_ref[...] = new.astype(jnp.bfloat16)   # refresh the bf16 working copy in-kernel


def _ema_pallas(t, s, momentum):
    R, C = t.shape
    kern = functools.partial(_ema_kernel, m=momentum)
    out_shapes = (jax.ShapeDtypeStruct((R, C), jnp.float32),
                  jax.ShapeDtypeStruct((R, C), jnp.bfloat16))
    if R > 512 and R % 512 == 0:
        TR = 512
        return pl.pallas_call(
            kern, out_shape=out_shapes, grid=(R // TR,),
            in_specs=[pl.BlockSpec((TR, C), lambda i: (i, 0)),
                      pl.BlockSpec((TR, C), lambda i: (i, 0))],
            out_specs=(pl.BlockSpec((TR, C), lambda i: (i, 0)),
                       pl.BlockSpec((TR, C), lambda i: (i, 0))),
            input_output_aliases={0: 0},
            compiler_params=pltpu.CompilerParams(
                dimension_semantics=("parallel",)),   # rows independent -> v7x dual-TC
        )(t, s)
    return pl.pallas_call(kern, out_shape=out_shapes,
                          input_output_aliases={0: 0})(t, s)


def make_ema_updater(momentum):
    def _update(teacher_master, student_master):
        new_master, new_bf16 = {}, {}
        for k in teacher_master:
            t, s = teacher_master[k], student_master[k]
            if k.endswith("_w") and t.size >= 512 * 128:
                nm, nb = _ema_pallas(t, s, momentum)
                new_bf16[k] = nb
            else:
                # small-leaf tail: plain jnp inside the same jit (fused by XLA)
                nm = momentum * t + (1.0 - momentum) * s
                if k.endswith("_w"):
                    new_bf16[k] = nm.astype(jnp.bfloat16)
            new_master[k] = nm
        return new_master, new_bf16
    # donate the teacher masters so the aliased Pallas outputs update them in place
    return jax.jit(_update, donate_argnums=(0,))


# ----------------------------------------------------------------------------
# Conv / pool wrappers (NHWC, channels-last, bf16; matmul in Pallas)
# ----------------------------------------------------------------------------
def conv2d_nhwc(x, w_bf16, b, kh, kw, stride, pad, relu):
    """x: (N, H, W, C) bf16 channels-last.  w_bf16: (kh*kw*C padded, Coutp) matmul
    layout (tap-major, channel-minor rows) prepared at init.  Output stays channel-
    padded NHWC bf16 (no slices / transposes between layers)."""
    N, H, W, C = x.shape
    xp = jnp.pad(x, ((0, 0), (pad, pad), (pad, pad), (0, 0)))
    OH = (H + 2 * pad - kh) // stride + 1
    OW = (W + 2 * pad - kw) // stride + 1
    taps = [xp[:, i:i + stride * OH:stride, j:j + stride * OW:stride, :]
            for i in range(kh) for j in range(kw)]
    # TODO(synk): at real scale, replace this tap stacking with windowed (shifted) A
    #             reads straight from the NHWC tensor in HBM via the BlockSpec index
    #             map, so the kh*kw patch tensor is never materialized.
    patches = jnp.concatenate(taps, axis=-1).reshape(N * OH * OW, kh * kw * C)
    y = pallas_linear(patches, w_bf16, b, relu=relu, out_dtype=jnp.bfloat16)
    return y.reshape(N, OH, OW, -1)


def maxpool3x3_s2_p1_nhwc(x):
    # small glue reduction (backbone stem maxpool); not a Pallas hot path
    xp = jnp.pad(x, ((0, 0), (1, 1), (1, 1), (0, 0)), constant_values=-jnp.inf)
    N, H, W, C = xp.shape
    OH, OW = (H - 3) // 2 + 1, (W - 3) // 2 + 1
    out = None
    for i in range(3):
        for j in range(3):
            p = xp[:, i:i + 2 * OH:2, j:j + 2 * OW:2, :]
            out = p if out is None else jnp.maximum(out, p)
    return out


# ----------------------------------------------------------------------------
# Parameters (deterministic, synthetic, pre-padded matmul layout, f32 masters + bf16)
# ----------------------------------------------------------------------------
def init_mask_rcnn_params(key, num_classes, box_in_features):
    ks = jax.random.split(key, 12)
    nc = num_classes

    def pad2(w, rows, cols):
        return jnp.pad(w, ((0, rows - w.shape[0]), (0, cols - w.shape[1])))

    def bias(n=CP):
        return jnp.zeros((1, n), jnp.float32)

    master = {}

    # backbone stem conv7x7 s2 (frozen BN folded); rows = tap-major, channel-minor
    stem = jax.random.normal(ks[0], (3 * 49, STEM_C), jnp.float32) / jnp.sqrt(3 * 49)
    master["stem_w"] = pad2(stem, _round_up(3 * 49, 128), CP)
    master["stem_b"] = bias()

    # box head (TwoMLPHead); fc6 rows follow the NHWC (h, w, c) flatten used in forward
    fc6 = jax.random.normal(ks[1], (box_in_features, REP), jnp.float32) / jnp.sqrt(box_in_features)
    master["fc6_w"] = pad2(fc6, _round_up(box_in_features, 128), CP)
    master["fc6_b"] = bias()
    fc7 = jax.random.normal(ks[2], (REP, REP), jnp.float32) / jnp.sqrt(REP)
    master["fc7_w"] = pad2(fc7, 128, CP)
    master["fc7_b"] = bias()

    # FastRCNNPredictor, fused [cls_score | bbox_pred]
    head = jax.random.normal(ks[3], (REP, nc + 4 * nc), jnp.float32) / jnp.sqrt(REP)
    master["head_w"] = pad2(head, 128, CP)
    master["head_b"] = bias()

    # mask head (4x conv3x3 + ReLU); rows = tap-major blocks of CP (channel-padded NHWC)
    cin = STEM_C
    for i in range(1, 5):
        w = jax.random.normal(ks[3 + i], (9, cin, MASK_HIDDEN), jnp.float32) / jnp.sqrt(9 * cin)
        wp = jnp.zeros((9, CP, CP), jnp.float32).at[:, :cin, :MASK_HIDDEN].set(w)
        master[f"mask_fcn{i}_w"] = wp.reshape(9 * CP, CP)
        master[f"mask_fcn{i}_b"] = bias()
        cin = MASK_HIDDEN

    # MaskRCNNPredictor: conv5_mask ConvTranspose2d(32,32,2,2) as (CP, 4*32) matmul,
    # columns ordered (tap = ty*2+tx major, cout minor)
    wd = jax.random.normal(ks[8], (MASK_HIDDEN, MASK_HIDDEN, 2, 2), jnp.float32) / jnp.sqrt(MASK_HIDDEN)
    w1 = wd.transpose(0, 2, 3, 1).reshape(MASK_HIDDEN, 4 * MASK_HIDDEN)
    master["conv5_mask_w"] = pad2(w1, CP, 4 * MASK_HIDDEN)
    master["conv5_mask_b"] = bias(4 * MASK_HIDDEN)

    # 1x1 mask_logits conv expanded block-diagonally over the 4 deconv taps
    wl = jax.random.normal(ks[9], (nc, MASK_HIDDEN), jnp.float32) / jnp.sqrt(MASK_HIDDEN)
    w2 = jnp.kron(jnp.eye(4, dtype=jnp.float32), wl.T)          # (4*32, 4*nc)
    master["mask_logits_w"] = pad2(w2, 4 * MASK_HIDDEN, 128)
    master["mask_logits_b"] = bias()

    # bf16 working copies of every weight (refreshed by the EMA updater)
    bf16 = {k: v.astype(jnp.bfloat16) for k, v in master.items() if k.endswith("_w")}
    return {"master": master, "bf16": bf16}


def mask_rcnn_forward(params, images, *, num_classes):
    """images: (N, 3, H, W) float32, NCHW (torch convention)."""
    master, wbf = params["master"], params["bf16"]

    # GeneralizedRCNNTransform normalization; convert to channels-last bf16 once
    mean = jnp.array([0.485, 0.456, 0.406], jnp.float32).reshape(1, 3, 1, 1)
    std = jnp.array([0.229, 0.224, 0.225], jnp.float32).reshape(1, 3, 1, 1)
    x = ((images - mean) / std).transpose(0, 2, 3, 1).astype(jnp.bfloat16)
    # TODO(synk): image resize to min_size=800 / max_size=1333 omitted (synthetic scale)

    # backbone stem: conv7x7 s2 p3 -> ReLU -> maxpool3x3 s2 p1 (NHWC, channel-padded)
    feat = conv2d_nhwc(x, wbf["stem_w"], master["stem_b"], 7, 7, 2, 3, True)
    feat = maxpool3x3_s2_p1_nhwc(feat)
    # TODO(synk): ResNet-50 stages, FPN, RPN proposals and RoIAlign are omitted;
    #             the stem feature map is used directly as the per-image ROI feature.

    N, H, W, _ = feat.shape

    # box branch (fused fc6 + fc7 + FastRCNNPredictor + softmax)
    feat_box = feat[:, :, :, :STEM_C].reshape(N, H * W * STEM_C)
    class_logits, scores, box_regression = box_branch(feat_box, wbf, master, num_classes)

    # mask branch: MaskRCNNHeads (4x conv3x3+ReLU) + fused MaskRCNNPredictor
    m = feat
    for i in range(1, 5):
        m = conv2d_nhwc(m, wbf[f"mask_fcn{i}_w"], master[f"mask_fcn{i}_b"], 3, 3, 1, 1, True)
    mask_logits = mask_predictor(m, wbf["conv5_mask_w"], master["conv5_mask_b"],
                                 wbf["mask_logits_w"], master["mask_logits_b"],
                                 num_classes)
    # TODO(synk): box decoding, NMS, top-k selection and mask pasting (post-process)
    #             have no clean Pallas equivalent and are not implemented.

    return {
        "class_logits": class_logits,
        "scores": scores,
        "box_regression": box_regression,
        "mask_logits": mask_logits,
    }


# ----------------------------------------------------------------------------
# Teacher-Student wrapper (mirrors the PyTorch module)
# ----------------------------------------------------------------------------
class TeacherStudentMaskRCNN:
    def __init__(self, num_classes, box_in_features, key, teacher_momentum=0.999):
        self.num_classes = num_classes
        self.teacher_momentum = teacher_momentum
        self.student = init_mask_rcnn_params(key, num_classes, box_in_features)
        # _copy_student_to_teacher (real copies: teacher masters are donated/aliased
        # by the EMA update, so they must not share storage with the student)
        self.teacher = jax.tree_util.tree_map(jnp.copy, self.student)
        self._forward = jax.jit(
            functools.partial(mask_rcnn_forward, num_classes=num_classes))
        self._ema = make_ema_updater(teacher_momentum)

    def update_teacher(self):
        new_master, new_bf16 = self._ema(self.teacher["master"], self.student["master"])
        self.teacher = {"master": new_master, "bf16": new_bf16}

    def __call__(self, images, targets=None, teacher_eval=False):
        params = self.teacher if teacher_eval else self.student
        # TODO(synk): training-mode loss computation (RPN / ROI losses) not implemented
        return self._forward(params, images)


# ----------------------------------------------------------------------------
if __name__ == "__main__":
    key = jax.random.PRNGKey(0)
    k_img, k_params = jax.random.split(key)

    # small synthetic batch of 2 RGB images, NCHW (torch convention)
    images = jax.random.uniform(k_img, (2, 3, 32, 32), jnp.float32)

    # after stem(conv s2) + maxpool(s2): spatial 8x8, STEM_C real channels
    box_in_features = STEM_C * 8 * 8
    num_classes = 5

    model = TeacherStudentMaskRCNN(num_classes, box_in_features, k_params)

    student_out = model(images, teacher_eval=False)   # student forward
    teacher_out = model(images, teacher_eval=True)    # teacher forward (eval)
    model.update_teacher()                            # EMA update (Pallas, in place)

    jax.block_until_ready(student_out)
    jax.block_until_ready(teacher_out)
    jax.block_until_ready(model.teacher)

    assert student_out["class_logits"].shape == (2, num_classes)
    assert student_out["scores"].shape == (2, num_classes)
    assert student_out["box_regression"].shape == (2, 4 * num_classes)
    assert student_out["mask_logits"].shape == (2, num_classes, 16, 16)
    assert bool(jnp.all(jnp.isfinite(student_out["mask_logits"])))
    # exact (non-approx) softmax: class scores must sum to 1
    assert bool(jnp.allclose(jnp.sum(student_out["scores"], axis=-1), 1.0, atol=1e-3))

    print("KERNEL_OK")
</pallas_src>

<mosaic_0001>
module attributes {stable_mosaic.version = 11 : i64} {
  func.func @_mm_kernel(%arg0: i32, %arg1: i32, %arg2: i32, %arg3: memref<256x256xbf16, #tpu.memory_space<vmem>>, %arg4: memref<256x128xbf16, #tpu.memory_space<vmem>>, %arg5: memref<1x128xf32, #tpu.memory_space<vmem>>, %arg6: memref<256x128xbf16, #tpu.memory_space<vmem>>, %arg7: memref<256x128xf32, #tpu.memory_space<vmem>>) attributes {dimension_semantics = [#tpu.dimension_semantics<parallel>, #tpu.dimension_semantics<parallel>, #tpu.dimension_semantics<arbitrary>], iteration_bounds = array<i64: 2, 1, 1>, scalar_prefetch = 0 : i64, scratch_operands = 1 : i64, tpu.core_type = #tpu.core_type<tc>, window_params = [{transform_indices = @transform_0, window_bounds = array<i64: 256, 256>}, {transform_indices = @transform_1, window_bounds = array<i64: 256, 128>}, {transform_indices = @transform_2, window_bounds = array<i64: 1, 128>}, {transform_indices = @transform_3, window_bounds = array<i64: 256, 128>}]} {
    %c0_i32 = arith.constant 0 : i32
    %0 = arith.cmpi eq, %arg2, %c0_i32 : i32
    %1 = arith.extui %0 : i1 to i32
    %c0_i32_0 = arith.constant 0 : i32
    %2 = arith.cmpi ne, %1, %c0_i32_0 : i32
    scf.if %2 {
      %cst_10 = arith.constant 0.000000e+00 : f32
      %12 = vector.broadcast %cst_10 : f32 to vector<256x128xf32>
      %c0_11 = arith.constant 0 : index
      %c0_12 = arith.constant 0 : index
      %13 = vector.load %arg7[%c0_11, %c0_12] : memref<256x128xf32, #tpu.memory_space<vmem>>, vector<256x128xf32>
      tpu.vector_store %arg7[%c0_11, %c0_12], %12 {strides = array<i32>} : memref<256x128xf32, #tpu.memory_space<vmem>>, vector<256x128xf32>,
    } else {
    }
    %c0 = arith.constant 0 : index
    %c0_1 = arith.constant 0 : index
    %3 = vector.load %arg7[%c0, %c0_1] : memref<256x128xf32, #tpu.memory_space<vmem>>, vector<256x128xf32>
    %c0_2 = arith.constant 0 : index
    %c0_3 = arith.constant 0 : index
    %4 = vector.load %arg3[%c0_2, %c0_3] : memref<256x256xbf16, #tpu.memory_space<vmem>>, vector<256x256xbf16>
    %c0_4 = arith.constant 0 : index
    %c0_5 = arith.constant 0 : index
    %5 = vector.load %arg4[%c0_4, %c0_5] : memref<256x128xbf16, #tpu.memory_space<vmem>>, vector<256x128xbf16>
    %cst = arith.constant dense<0.000000e+00> : vector<256x128xf32>
    %6 = tpu.matmul %4, %5, %cst {dimension_numbers = #tpu.dot_dimension_numbers<[1], [0], [0], [1], [0, 0, 1, 1], [], []>} : vector<256x256xbf16>, vector<256x128xbf16>, vector<256x128xf32> -> vector<256x128xf32>
    %7 = arith.addf %3, %6 : vector<256x128xf32>
    %c0_6 = arith.constant 0 : index
    %c0_7 = arith.constant 0 : index
    %8 = vector.load %arg7[%c0_6, %c0_7] : memref<256x128xf32, #tpu.memory_space<vmem>>, vector<256x128xf32>
    tpu.vector_store %arg7[%c0_6, %c0_7], %7 {strides = array<i32>} : memref<256x128xf32, #tpu.memory_space<vmem>>, vector<256x128xf32>,
    %c0_i32_8 = arith.constant 0 : i32
    %9 = arith.cmpi eq, %arg2, %c0_i32_8 : i32
    %10 = arith.extui %9 : i1 to i32
    %c0_i32_9 = arith.constant 0 : i32
    %11 = arith.cmpi ne, %10, %c0_i32_9 : i32
    scf.if %11 {
      %c0_10 = arith.constant 0 : index
      %c0_11 = arith.constant 0 : index
      %12 = vector.load %arg7[%c0_10, %c0_11] : memref<256x128xf32, #tpu.memory_space<vmem>>, vector<256x128xf32>
      %c0_12 = arith.constant 0 : index
      %c0_13 = arith.constant 0 : index
      %13 = vector.load %arg5[%c0_12, %c0_13] : memref<1x128xf32, #tpu.memory_space<vmem>>, vector<1x128xf32>
      %14 = vector.broadcast %13 : vector<1x128xf32> to vector<256x128xf32>
      %15 = arith.addf %12, %14 : vector<256x128xf32>
      %cst_14 = arith.constant 0.000000e+00 : f32
      %16 = vector.broadcast %cst_14 : f32 to vector<256x128xf32>
      %17 = arith.maximumf %15, %16 : vector<256x128xf32>
      %18 = arith.truncf %17 : vector<256x128xf32> to vector<256x128xbf16>
      %c0_15 = arith.constant 0 : index
      %c0_16 = arith.constant 0 : index
      %19 = vector.load %arg6[%c0_15, %c0_16] : memref<256x128xbf16, #tpu.memory_space<vmem>>, vector<256x128xbf16>
      tpu.vector_store %arg6[%c0_15, %c0_16], %18 {strides = array<i32>} : memref<256x128xbf16, #tpu.memory_space<vmem>>, vector<256x128xbf16>,
    } else {
    }
    return
  }
  func.func @transform_0(%arg0: i32, %arg1: i32, %arg2: i32) -> (i32, i32) {
    %c0_i32 = arith.constant 0 : i32
    return %arg0, %arg2 : i32, i32
  }
  func.func @transform_1(%arg0: i32, %arg1: i32, %arg2: i32) -> (i32, i32) {
    %c0_i32 = arith.constant 0 : i32
    return %arg2, %arg1 : i32, i32
  }
  func.func @transform_2(%arg0: i32, %arg1: i32, %arg2: i32) -> (i32, i32) {
    %c0_i32 = arith.constant 0 : i32
    %c0_i32_0 = arith.constant 0 : i32
    return %c0_i32, %arg1 : i32, i32
  }
  func.func @transform_3(%arg0: i32, %arg1: i32, %arg2: i32) -> (i32, i32) {
    %c0_i32 = arith.constant 0 : i32
    return %arg0, %arg1 : i32, i32
  }
}

module attributes {stable_mosaic.version = 11 : i64} {
  func.func @_box_branch_kernel(%arg0: memref<16x1024xbf16, #tpu.memory_space<vmem>>, %arg1: memref<1024x128xbf16, #tpu.memory_space<vmem>>, %arg2: memref<1x128xf32, #tpu.memory_space<vmem>>, %arg3: memref<128x128xbf16, #tpu.memory_space<vmem>>, %arg4: memref<1x128xf32, #tpu.memory_space<vmem>>, %arg5: memref<128x128xbf16, #tpu.memory_space<vmem>>, %arg6: memref<1x128xf32, #tpu.memory_space<vmem>>, %arg7: memref<16x128xf32, #tpu.memory_space<vmem>>, %arg8: memref<16x128xf32, #tpu.memory_space<vmem>>) attributes {dimension_semantics = [], scalar_prefetch = 0 : i64, scratch_operands = 0 : i64, tpu.core_type = #tpu.core_type<tc>} {
    %c0 = arith.constant 0 : index
    %c0_0 = arith.constant 0 : index
    %0 = vector.load %arg0[%c0, %c0_0] : memref<16x1024xbf16, #tpu.memory_space<vmem>>, vector<16x1024xbf16>
    %c0_1 = arith.constant 0 : index
    %c0_2 = arith.constant 0 : index
    %1 = vector.load %arg1[%c0_1, %c0_2] : memref<1024x128xbf16, #tpu.memory_space<vmem>>, vector<1024x128xbf16>
    %cst = arith.constant dense<0.000000e+00> : vector<16x128xf32>
    %2 = tpu.matmul %0, %1, %cst {dimension_numbers = #tpu.dot_dimension_numbers<[1], [0], [0], [1], [0, 0, 1, 1], [], []>} : vector<16x1024xbf16>, vector<1024x128xbf16>, vector<16x128xf32> -> vector<16x128xf32>
    %c0_3 = arith.constant 0 : index
    %c0_4 = arith.constant 0 : index
    %3 = vector.load %arg2[%c0_3, %c0_4] : memref<1x128xf32, #tpu.memory_space<vmem>>, vector<1x128xf32>
    %4 = vector.broadcast %3 : vector<1x128xf32> to vector<16x128xf32>
    %5 = arith.addf %2, %4 : vector<16x128xf32>
    %cst_5 = arith.constant 0.000000e+00 : f32
    %6 = vector.broadcast %cst_5 : f32 to vector<16x128xf32>
    %7 = arith.maximumf %5, %6 : vector<16x128xf32>
    %8 = arith.truncf %7 : vector<16x128xf32> to vector<16x128xbf16>
    %c0_6 = arith.constant 0 : index
    %c0_7 = arith.constant 0 : index
    %9 = vector.load %arg3[%c0_6, %c0_7] : memref<128x128xbf16, #tpu.memory_space<vmem>>, vector<128x128xbf16>
    %cst_8 = arith.constant dense<0.000000e+00> : vector<16x128xf32>
    %10 = tpu.matmul %8, %9, %cst_8 {dimension_numbers = #tpu.dot_dimension_numbers<[1], [0], [0], [1], [0, 0, 1, 1], [], []>} : vector<16x128xbf16>, vector<128x128xbf16>, vector<16x128xf32> -> vector<16x128xf32>
    %c0_9 = arith.constant 0 : index
    %c0_10 = arith.constant 0 : index
    %11 = vector.load %arg4[%c0_9, %c0_10] : memref<1x128xf32, #tpu.memory_space<vmem>>, vector<1x128xf32>
    %12 = vector.broadcast %11 : vector<1x128xf32> to vector<16x128xf32>
    %13 = arith.addf %10, %12 : vector<16x128xf32>
    %cst_11 = arith.constant 0.000000e+00 : f32
    %14 = vector.broadcast %cst_11 : f32 to vector<16x128xf32>
    %15 = arith.maximumf %13, %14 : vector<16x128xf32>
    %16 = arith.truncf %15 : vector<16x128xf32> to vector<16x128xbf16>
    %c0_12 = arith.constant 0 : index
    %c0_13 = arith.constant 0 : index
    %17 = vector.load %arg5[%c0_12, %c0_13] : memref<128x128xbf16, #tpu.memory_space<vmem>>, vector<128x128xbf16>
    %cst_14 = arith.constant dense<0.000000e+00> : vector<16x128xf32>
    %18 = tpu.matmul %16, %17, %cst_14 {dimension_numbers = #tpu.dot_dimension_numbers<[1], [0], [0], [1], [0, 0, 1, 1], [], []>} : vector<16x128xbf16>, vector<128x128xbf16>, vector<16x128xf32> -> vector<16x128xf32>
    %c0_15 = arith.constant 0 : index
    %c0_16 = arith.constant 0 : index
    %19 = vector.load %arg6[%c0_15, %c0_16] : memref<1x128xf32, #tpu.memory_space<vmem>>, vector<1x128xf32>
    %20 = vector.broadcast %19 : vector<1x128xf32> to vector<16x128xf32>
    %21 = arith.addf %18, %20 : vector<16x128xf32>
    %c0_17 = arith.constant 0 : index
    %c0_18 = arith.constant 0 : index
    %22 = vector.load %arg7[%c0_17, %c0_18] : memref<16x128xf32, #tpu.memory_space<vmem>>, vector<16x128xf32>
    tpu.vector_store %arg7[%c0_17, %c0_18], %21 {strides = array<i32>} : memref<16x128xf32, #tpu.memory_space<vmem>>, vector<16x128xf32>,
    %23 = tpu.iota {dimensions = array<i32: 1>} : vector<16x128xi32>
    %c5_i32 = arith.constant 5 : i32
    %24 = vector.broadcast %c5_i32 : i32 to vector<16x128xi32>
    %25 = arith.cmpi slt, %23, %24 : vector<16x128xi32>
    %cst_19 = arith.constant -1.000000e+30 : f32
    %26 = vector.broadcast %cst_19 : f32 to vector<16x128xf32>
    %27 = arith.select %25, %21, %26 : vector<16x128xi1>, vector<16x128xf32>
    %cst_20 = arith.constant dense<0xFF800000> : vector<16xf32>
    %28 = vector.multi_reduction <maximumf>, %27, %cst_20 [1] : vector<16x128xf32> to vector<16xf32>
    %29 = vector.shape_cast %28 : vector<16xf32> to vector<16x1xf32>
    %30 = vector.broadcast %29 : vector<16x1xf32> to vector<16x128xf32>
    %31 = arith.subf %27, %30 : vector<16x128xf32>
    %32 = math.exp %31 : vector<16x128xf32>
    %cst_21 = arith.constant 0.000000e+00 : f32
    %33 = vector.broadcast %cst_21 : f32 to vector<16x128xf32>
    %34 = arith.select %25, %32, %33 : vector<16x128xi1>, vector<16x128xf32>
    %cst_22 = arith.constant dense<0.000000e+00> : vector<16xf32>
    %35 = vector.multi_reduction <add>, %34, %cst_22 [1] : vector<16x128xf32> to vector<16xf32>
    %36 = vector.shape_cast %35 : vector<16xf32> to vector<16x1xf32>
    %37 = vector.broadcast %36 : vector<16x1xf32> to vector<16x128xf32>
    %38 = arith.divf %34, %37 : vector<16x128xf32>
    %c0_23 = arith.constant 0 : index
    %c0_24 = arith.constant 0 : index
    %39 = vector.load %arg8[%c0_23, %c0_24] : memref<16x128xf32, #tpu.memory_space<vmem>>, vector<16x128xf32>
    tpu.vector_store %arg8[%c0_23, %c0_24], %38 {strides = array<i32>} : memref<16x128xf32, #tpu.memory_space<vmem>>, vector<16x128xf32>,
    return
  }
}

module attributes {stable_mosaic.version = 11 : i64} {
  func.func @_mm_kernel(%arg0: i32, %arg1: i32, %arg2: i32, %arg3: memref<64x1152xbf16, #tpu.memory_space<vmem>>, %arg4: memref<1152x128xbf16, #tpu.memory_space<vmem>>, %arg5: memref<1x128xf32, #tpu.memory_space<vmem>>, %arg6: memref<64x128xbf16, #tpu.memory_space<vmem>>, %arg7: memref<64x128xf32, #tpu.memory_space<vmem>>) attributes {dimension_semantics = [#tpu.dimension_semantics<parallel>, #tpu.dimension_semantics<parallel>, #tpu.dimension_semantics<arbitrary>], iteration_bounds = array<i64: 2, 1, 1>, scalar_prefetch = 0 : i64, scratch_operands = 1 : i64, tpu.core_type = #tpu.core_type<tc>, window_params = [{transform_indices = @transform_0, window_bounds = array<i64: 64, 1152>}, {transform_indices = @transform_1, window_bounds = array<i64: 1152, 128>}, {transform_indices = @transform_2, window_bounds = array<i64: 1, 128>}, {transform_indices = @transform_3, window_bounds = array<i64: 64, 128>}]} {
    %c0_i32 = arith.constant 0 : i32
    %0 = arith.cmpi eq, %arg2, %c0_i32 : i32
    %1 = arith.extui %0 : i1 to i32
    %c0_i32_0 = arith.constant 0 : i32
    %2 = arith.cmpi ne, %1, %c0_i32_0 : i32
    scf.if %2 {
      %cst_10 = arith.constant 0.000000e+00 : f32
      %12 = vector.broadcast %cst_10 : f32 to vector<64x128xf32>
      %c0_11 = arith.constant 0 : index
      %c0_12 = arith.constant 0 : index
      %13 = vector.load %arg7[%c0_11, %c0_12] : memref<64x128xf32, #tpu.memory_space<vmem>>, vector<64x128xf32>
      tpu.vector_store %arg7[%c0_11, %c0_12], %12 {strides = array<i32>} : memref<64x128xf32, #tpu.memory_space<vmem>>, vector<64x128xf32>,
    } else {
    }
    %c0 = arith.constant 0 : index
    %c0_1 = arith.constant 0 : index
    %3 = vector.load %arg7[%c0, %c0_1] : memref<64x128xf32, #tpu.memory_space<vmem>>, vector<64x128xf32>
    %c0_2 = arith.constant 0 : index
    %c0_3 = arith.constant 0 : index
    %4 = vector.load %arg3[%c0_2, %c0_3] : memref<64x1152xbf16, #tpu.memory_space<vmem>>, vector<64x1152xbf16>
    %c0_4 = arith.constant 0 : index
    %c0_5 = arith.constant 0 : index
    %5 = vector.load %arg4[%c0_4, %c0_5] : memref<1152x128xbf16, #tpu.memory_space<vmem>>, vector<1152x128xbf16>
    %cst = arith.constant dense<0.000000e+00> : vector<64x128xf32>
    %6 = tpu.matmul %4, %5, %cst {dimension_numbers = #tpu.dot_dimension_numbers<[1], [0], [0], [1], [0, 0, 1, 1], [], []>} : vector<64x1152xbf16>, vector<1152x128xbf16>, vector<64x128xf32> -> vector<64x128xf32>
    %7 = arith.addf %3, %6 : vector<64x128xf32>
    %c0_6 = arith.constant 0 : index
    %c0_7 = arith.constant 0 : index
    %8 = vector.load %arg7[%c0_6, %c0_7] : memref<64x128xf32, #tpu.memory_space<vmem>>, vector<64x128xf32>
    tpu.vector_store %arg7[%c0_6, %c0_7], %7 {strides = array<i32>} : memref<64x128xf32, #tpu.memory_space<vmem>>, vector<64x128xf32>,
    %c0_i32_8 = arith.constant 0 : i32
    %9 = arith.cmpi eq, %arg2, %c0_i32_8 : i32
    %10 = arith.extui %9 : i1 to i32
    %c0_i32_9 = arith.constant 0 : i32
    %11 = arith.cmpi ne, %10, %c0_i32_9 : i32
    scf.if %11 {
      %c0_10 = arith.constant 0 : index
      %c0_11 = arith.constant 0 : index
      %12 = vector.load %arg7[%c0_10, %c0_11] : memref<64x128xf32, #tpu.memory_space<vmem>>, vector<64x128xf32>
      %c0_12 = arith.constant 0 : index
      %c0_13 = arith.constant 0 : index
      %13 = vector.load %arg5[%c0_12, %c0_13] : memref<1x128xf32, #tpu.memory_space<vmem>>, vector<1x128xf32>
      %14 = vector.broadcast %13 : vector<1x128xf32> to vector<64x128xf32>
      %15 = arith.addf %12, %14 : vector<64x128xf32>
      %cst_14 = arith.constant 0.000000e+00 : f32
      %16 = vector.broadcast %cst_14 : f32 to vector<64x128xf32>
      %17 = arith.maximumf %15, %16 : vector<64x128xf32>
      %18 = arith.truncf %17 : vector<64x128xf32> to vector<64x128xbf16>
      %c0_15 = arith.constant 0 : index
      %c0_16 = arith.constant 0 : index
      %19 = vector.load %arg6[%c0_15, %c0_16] : memref<64x128xbf16, #tpu.memory_space<vmem>>, vector<64x128xbf16>
      tpu.vector_store %arg6[%c0_15, %c0_16], %18 {strides = array<i32>} : memref<64x128xbf16, #tpu.memory_space<vmem>>, vector<64x128xbf16>,
    } else {
    }
    return
  }
  func.func @transform_0(%arg0: i32, %arg1: i32, %arg2: i32) -> (i32, i32) {
    %c0_i32 = arith.constant 0 : i32
    return %arg0, %arg2 : i32, i32
  }
  func.func @transform_1(%arg0: i32, %arg1: i32, %arg2: i32) -> (i32, i32) {
    %c0_i32 = arith.constant 0 : i32
    return %arg2, %arg1 : i32, i32
  }
  func.func @transform_2(%arg0: i32, %arg1: i32, %arg2: i32) -> (i32, i32) {
    %c0_i32 = arith.constant 0 : i32
    %c0_i32_0 = arith.constant 0 : i32
    return %c0_i32, %arg1 : i32, i32
  }
  func.func @transform_3(%arg0: i32, %arg1: i32, %arg2: i32) -> (i32, i32) {
    %c0_i32 = arith.constant 0 : i32
    return %arg0, %arg1 : i32, i32
  }
}

module attributes {stable_mosaic.version = 11 : i64} {
  func.func @_deconv_logits_kernel(%arg0: i32, %arg1: memref<64x128xbf16, #tpu.memory_space<vmem>>, %arg2: memref<128x128xbf16, #tpu.memory_space<vmem>>, %arg3: memref<1x128xf32, #tpu.memory_space<vmem>>, %arg4: memref<128x128xbf16, #tpu.memory_space<vmem>>, %arg5: memref<1x128xf32, #tpu.memory_space<vmem>>, %arg6: memref<64x128xf32, #tpu.memory_space<vmem>>) attributes {dimension_semantics = [#tpu.dimension_semantics<parallel>], iteration_bounds = array<i64: 2>, scalar_prefetch = 0 : i64, scratch_operands = 0 : i64, tpu.core_type = #tpu.core_type<tc>, window_params = [{transform_indices = @transform_0, window_bounds = array<i64: 64, 128>}, {pipeline_mode = #tpu.pipeline_mode<synchronous>, transform_indices = @transform_1, window_bounds = array<i64: 128, 128>}, {pipeline_mode = #tpu.pipeline_mode<synchronous>, transform_indices = @transform_2, window_bounds = array<i64: 1, 128>}, {pipeline_mode = #tpu.pipeline_mode<synchronous>, transform_indices = @transform_3, window_bounds = array<i64: 128, 128>}, {pipeline_mode = #tpu.pipeline_mode<synchronous>, transform_indices = @transform_4, window_bounds = array<i64: 1, 128>}, {transform_indices = @transform_5, window_bounds = array<i64: 64, 128>}]} {
    %c0 = arith.constant 0 : index
    %c0_0 = arith.constant 0 : index
    %0 = vector.load %arg1[%c0, %c0_0] : memref<64x128xbf16, #tpu.memory_space<vmem>>, vector<64x128xbf16>
    %c0_1 = arith.constant 0 : index
    %c0_2 = arith.constant 0 : index
    %1 = vector.load %arg2[%c0_1, %c0_2] : memref<128x128xbf16, #tpu.memory_space<vmem>>, vector<128x128xbf16>
    %cst = arith.constant dense<0.000000e+00> : vector<64x128xf32>
    %2 = tpu.matmul %0, %1, %cst {dimension_numbers = #tpu.dot_dimension_numbers<[1], [0], [0], [1], [0, 0, 1, 1], [], []>} : vector<64x128xbf16>, vector<128x128xbf16>, vector<64x128xf32> -> vector<64x128xf32>
    %c0_3 = arith.constant 0 : index
    %c0_4 = arith.constant 0 : index
    %3 = vector.load %arg3[%c0_3, %c0_4] : memref<1x128xf32, #tpu.memory_space<vmem>>, vector<1x128xf32>
    %4 = vector.broadcast %3 : vector<1x128xf32> to vector<64x128xf32>
    %5 = arith.addf %2, %4 : vector<64x128xf32>
    %cst_5 = arith.constant 0.000000e+00 : f32
    %6 = vector.broadcast %cst_5 : f32 to vector<64x128xf32>
    %7 = arith.maximumf %5, %6 : vector<64x128xf32>
    %8 = arith.truncf %7 : vector<64x128xf32> to vector<64x128xbf16>
    %c0_6 = arith.constant 0 : index
    %c0_7 = arith.constant 0 : index
    %9 = vector.load %arg4[%c0_6, %c0_7] : memref<128x128xbf16, #tpu.memory_space<vmem>>, vector<128x128xbf16>
    %cst_8 = arith.constant dense<0.000000e+00> : vector<64x128xf32>
    %10 = tpu.matmul %8, %9, %cst_8 {dimension_numbers = #tpu.dot_dimension_numbers<[1], [0], [0], [1], [0, 0, 1, 1], [], []>} : vector<64x128xbf16>, vector<128x128xbf16>, vector<64x128xf32> -> vector<64x128xf32>
    %c0_9 = arith.constant 0 : index
    %c0_10 = arith.constant 0 : index
    %11 = vector.load %arg5[%c0_9, %c0_10] : memref<1x128xf32, #tpu.memory_space<vmem>>, vector<1x128xf32>
    %12 = vector.broadcast %11 : vector<1x128xf32> to vector<64x128xf32>
    %13 = arith.addf %10, %12 : vector<64x128xf32>
    %c0_11 = arith.constant 0 : index
    %c0_12 = arith.constant 0 : index
    %14 = vector.load %arg6[%c0_11, %c0_12] : memref<64x128xf32, #tpu.memory_space<vmem>>, vector<64x128xf32>
    tpu.vector_store %arg6[%c0_11, %c0_12], %13 {strides = array<i32>} : memref<64x128xf32, #tpu.memory_space<vmem>>, vector<64x128xf32>,
    return
  }
  func.func @transform_0(%arg0: i32) -> (i32, i32) {
    %c0_i32 = arith.constant 0 : i32
    %c0_i32_0 = arith.constant 0 : i32
    return %arg0, %c0_i32 : i32, i32
  }
  func.func @transform_1(%arg0: i32) -> (i32, i32) {
    %c0_i32 = arith.constant 0 : i32
    %c0_i32_0 = arith.constant 0 : i32
    %c0_i32_1 = arith.constant 0 : i32
    return %c0_i32, %c0_i32_0 : i32, i32
  }
  func.func @transform_2(%arg0: i32) -> (i32, i32) {
    %c0_i32 = arith.constant 0 : i32
    %c0_i32_0 = arith.constant 0 : i32
    %c0_i32_1 = arith.constant 0 : i32
    return %c0_i32, %c0_i32_0 : i32, i32
  }
  func.func @transform_3(%arg0: i32) -> (i32, i32) {
    %c0_i32 = arith.constant 0 : i32
    %c0_i32_0 = arith.constant 0 : i32
    %c0_i32_1 = arith.constant 0 : i32
    return %c0_i32, %c0_i32_0 : i32, i32
  }
  func.func @transform_4(%arg0: i32) -> (i32, i32) {
    %c0_i32 = arith.constant 0 : i32
    %c0_i32_0 = arith.constant 0 : i32
    %c0_i32_1 = arith.constant 0 : i32
    return %c0_i32, %c0_i32_0 : i32, i32
  }
  func.func @transform_5(%arg0: i32) -> (i32, i32) {
    %c0_i32 = arith.constant 0 : i32
    %c0_i32_0 = arith.constant 0 : i32
    return %arg0, %c0_i32 : i32, i32
  }
}

</mosaic_0001>

<llo_original>
// kernel: mask_rcnn_forward.7
$region0: #{mask_rcnn_forward.7}
  #allocation0 [shape = 'u32[]', space=smem, size = 0x4, offset = 0x4, fixed_abs, tag = 'smem constant byte address 0x4 - core index']
  #allocation1 [shape = 'u32[144,128]{1,0:T(1,128)}', space=vmem, size = 0x12000, scoped, tag = 'internal scratch']
  #allocation2 [shape = 'f32[256,128]{1,0:T(8,128)}', space=vmem, size = 0x20000, scoped, tag = 'scratch operand']
  %s0 = inlined_call_operand.vmem [shape: bf16[512,256], index: 0, kind: input, shape index: {}]
  %s1 = inlined_call_operand.vmem [shape: bf16[256,128], index: 1, kind: input, shape index: {}]
  %s2 = inlined_call_operand.vmem [shape: f32[1,128], index: 2, kind: input, shape index: {}]
  %s3 = inlined_call_operand.vmem [shape: bf16[512,128], index: 3, kind: output, shape index: {}]
  %s4 = sld [smem:[#allocation0]]
  $region53: #{mask_rcnn_forward.7} parent=0
    _
  %s6 = ssub.s32 1, %s4
  %s7 = scalar_select 0, %s6, %s4
  loop: start=0, step=1, limit=4
  $region2: #{mask_rcnn_forward.7} parent=0 // loop_pre_header
    _
  $region3: #{mask_rcnn_forward.7} parent=0 // loop_header
    %s9 = sphi 0, %s13
    %p10 = scmp.ge.s32.totalorder %s9, 4
    %s16 = sphi 0, %s35
    %s17 = sphi 0, %s31
    %s18 = sphi 0, %s27
    %s19 = sphi 0, %s16
    %s20 = sphi 0, %s17
    %s21 = sphi 0, %s18
    %s22 = sphi 0, %s19
    %s23 = sphi 0, %s20
    %s24 = sphi 0, %s21
    %s40 = sphi 0, %s42
    %s43 = sphi 0, %s40
    %s44 = sphi 0, %s43
    %s60 = sphi 0, %s44
    %s68 = sphi 0, %s70
    %s71 = sphi 0, %s68
    %s72 = sphi 0, %s71
    %s88 = sphi 0, %s72
    %s94 = sphi 0, %s96
    %s97 = sphi 0, %s94
    %s98 = sphi 0, %s97
    %s114 = sphi 0, %s98
    %s122 = sphi 0, %s124
    %s125 = sphi 0, %s122
    %s126 = sphi 0, %s125
    %s142 = sphi 0, %s126
  $region4: #{mask_rcnn_forward.7} parent=0 // loop_header_branch
    %12 = sbr.rel (%p10) target = $region8
  $region5: #{mask_rcnn_forward.7} parent=0 // loop_body
    %s14 = ssub.s32 %s9, 1
    %s15 = ssub.s32 %s9, 2
    %s25 = sadd.s32 1, %s18
    %p26 = scmp.ge.s32.totalorder %s25, 1
    %s27 = scalar_select %p26, 0, %s25
    %s28 = sadd.s32 1, %s17
    %s29 = scalar_select %p26, %s28, %s17
    %p30 = scmp.ge.s32.totalorder %s29, 1
    %s31 = scalar_select %p30, 0, %s29
    %s32 = sadd.s32 1, %s16
    %s33 = scalar_select %p30, %s32, %s16
    %p34 = scmp.ge.s32.totalorder %s33, 2
    %s35 = scalar_select %p34, 0, %s33
    %s36 = ssub.s32 %s16, %s35
    %s37 = ssub.s32 %s18, %s27
    %s38 = sor.u32 %s36, %s37
    %p39 = scmp.eq.s32.totalorder %s38, 0
    %s41 = sadd.s32 %s40, 1
    %s42 = scalar_select %p39, %s40, %s41
    %p45 = pneg %p39
    %p46 = scmp.eq.s32.totalorder %s9, 1
    %p47 = por %p45, %p46
    %p48 = scmp.ne.s32.totalorder %s40, %s43
    %p49 = scmp.eq.s32.totalorder %s9, 0
    %p50 = por %p48, %p49
    %p51 = scmp.ne.s32.totalorder %s40, %s43
    %p52 = scmp.eq.s32.totalorder %s14, 1
    %p53 = por %p51, %p52
    %p54 = scmp.ne.s32.totalorder %s43, %s44
    %p55 = scmp.eq.s32.totalorder %s14, 0
    %p56 = por %p54, %p55
    %p57 = scmp.ne.s32.totalorder %s43, %s44
    %p58 = scmp.eq.s32.totalorder %s15, 1
    %p59 = por %p57, %p58
    %p61 = scmp.ne.s32.totalorder %s44, %s60
    %p62 = scmp.eq.s32.totalorder %s15, 0
    %p63 = por %p61, %p62
    %s64 = ssub.s32 %s18, %s27
    %s65 = ssub.s32 %s17, %s31
    %s66 = sor.u32 %s64, %s65
    %p67 = scmp.eq.s32.totalorder %s66, 0
    %s69 = sadd.s32 %s68, 1
    %s70 = scalar_select %p67, %s68, %s69
    %p73 = pneg %p67
    %p74 = scmp.eq.s32.totalorder %s9, 1
    %p75 = por %p73, %p74
    %p76 = scmp.ne.s32.totalorder %s68, %s71
    %p77 = scmp.eq.s32.totalorder %s9, 0
    %p78 = por %p76, %p77
    %p79 = scmp.ne.s32.totalorder %s68, %s71
    %p80 = scmp.eq.s32.totalorder %s14, 1
    %p81 = por %p79, %p80
    %p82 = scmp.ne.s32.totalorder %s71, %s72
    %p83 = scmp.eq.s32.totalorder %s14, 0
    %p84 = por %p82, %p83
    %p85 = scmp.ne.s32.totalorder %s71, %s72
    %p86 = scmp.eq.s32.totalorder %s15, 1
    %p87 = por %p85, %p86
    %p89 = scmp.ne.s32.totalorder %s72, %s88
    %p90 = scmp.eq.s32.totalorder %s15, 0
    %p91 = por %p89, %p90
    %s92 = ssub.s32 %s17, %s31
    %p93 = scmp.eq.s32.totalorder %s92, 0
    %s95 = sadd.s32 %s94, 1
    %s96 = scalar_select %p93, %s94, %s95
    %p99 = pneg %p93
    %p100 = scmp.eq.s32.totalorder %s9, 1
    %p101 = por %p99, %p100
    %p102 = scmp.ne.s32.totalorder %s94, %s97
    %p103 = scmp.eq.s32.totalorder %s9, 0
    %p104 = por %p102, %p103
    %p105 = scmp.ne.s32.totalorder %s94, %s97
    %p106 = scmp.eq.s32.totalorder %s14, 1
    %p107 = por %p105, %p106
    %p108 = scmp.ne.s32.totalorder %s97, %s98
    %p109 = scmp.eq.s32.totalorder %s14, 0
    %p110 = por %p108, %p109
    %p111 = scmp.ne.s32.totalorder %s97, %s98
    %p112 = scmp.eq.s32.totalorder %s15, 1
    %p113 = por %p111, %p112
    %p115 = scmp.ne.s32.totalorder %s98, %s114
    %p116 = scmp.eq.s32.totalorder %s15, 0
    %p117 = por %p115, %p116
    %s118 = ssub.s32 %s16, %s35
    %s119 = ssub.s32 %s17, %s31
    %s120 = sor.u32 %s118, %s119
    %p121 = scmp.eq.s32.totalorder %s120, 0
    %s123 = sadd.s32 %s122, 1
    %s124 = scalar_select %p121, %s122, %s123
    %p127 = pneg %p121
    %p128 = scmp.eq.s32.totalorder %s9, 1
    %p129 = por %p127, %p128
    %p130 = scmp.ne.s32.totalorder %s122, %s125
    %p131 = scmp.eq.s32.totalorder %s9, 0
    %p132 = por %p130, %p131
    %p133 = scmp.ne.s32.totalorder %s122, %s125
    %p134 = scmp.eq.s32.totalorder %s14, 1
    %p135 = por %p133, %p134
    %p136 = scmp.ne.s32.totalorder %s125, %s126
    %p137 = scmp.eq.s32.totalorder %s14, 0
    %p138 = por %p136, %p137
    %p139 = scmp.ne.s32.totalorder %s125, %s126
    %p140 = scmp.eq.s32.totalorder %s15, 1
    %p141 = por %p139, %p140
    %p143 = scmp.ne.s32.totalorder %s126, %s142
    %p144 = scmp.eq.s32.totalorder %s15, 0
    %p145 = por %p143, %p144
    %p146 = scmp.le.s32.totalorder 1, %s9
    %p147 = scmp.lt.s32.totalorder %s9, 3
    %p148 = pnand %p146, %p147
    %p149 = pneg %p148
    // Predicated region
    $region9: #{mask_rcnn_forward.7} parent=5 // pred_check
      _
    $region10: #{mask_rcnn_forward.7} parent=5 // pred_check_branch
      %151 = sbr.rel (%p148) target = $region12
    $region11: #{mask_rcnn_forward.7} parent=5 // pred_region
      %s152 = ssub.s32 %s9, 1
      // Predicated region
      $region13: #{mask_rcnn_forward.7} parent=11 // pred_check
        %p153 = pneg %p84
      $region14: #{mask_rcnn_forward.7} parent=11 // pred_check_branch
        %155 = sbr.rel (%p153) target = $region16
      $region15: #{mask_rcnn_forward.7} parent=11 // pred_region
        %s156 = smul.u32 32, %s21
        %p157 = scmp.lt.s32.totalorder %s156, 31
        %s158 = scalar_select %p157, %s156, 31
        %p159 = scmp.lt.s32.totalorder %s20, 0
        %s160 = scalar_select %p159, %s20, 0
        %s161 = sadd.s32 %s160, %s158
        %s162 = smul.addr %s161, 4
        %s163 = scalar_lea.vmem %s1, %s162
        %s164 = smul.u32 32, %s21
      $region16: #{mask_rcnn_forward.7} parent=11 // pred_fallthru
        _
      // Predicated region
      $region17: #{mask_rcnn_forward.7} parent=11 // pred_check
        %p165 = pneg %p110
      $region18: #{mask_rcnn_forward.7} parent=11 // pred_check_branch
        %167 = sbr.rel (%p165) target = $region20
      $region19: #{mask_rcnn_forward.7} parent=11 // pred_region
        %p168 = scmp.lt.s32.totalorder %s20, 0
        %s169 = scalar_select %p168, %s20, 0
        %s170 = scalar_lea.vmem %s2, %s169
      $region20: #{mask_rcnn_forward.7} parent=11 // pred_fallthru
        _
    $region12: #{mask_rcnn_forward.7} parent=5 // pred_fallthru
      _
    %p171 = scmp.lt.s32.totalorder %s9, 2
    // Predicated region
    $region21: #{mask_rcnn_forward.7} parent=5 // pred_check
      %p172 = pneg %p171
    $region22: #{mask_rcnn_forward.7} parent=5 // pred_check_branch
      %174 = sbr.rel (%p172) target = $region24
    $region23: #{mask_rcnn_forward.7} parent=5 // pred_region
      // Predicated region
      $region25: #{mask_rcnn_forward.7} parent=23 // pred_check
        %p175 = pneg %p50
      $region26: #{mask_rcnn_forward.7} parent=23 // pred_check_branch
        %177 = sbr.rel (%p175) target = $region28
      $region27: #{mask_rcnn_forward.7} parent=23 // pred_region
        %s178 = smul.u32 32, %s16
        %s179 = smul.u32 2, %s18
        %p180 = scmp.lt.s32.totalorder %s178, 63
        %s181 = scalar_select %p180, %s178, 63
        %p182 = scmp.lt.s32.totalorder %s179, 1
        %s183 = scalar_select %p182, %s179, 1
        %s184 = smul.addr %s181, 2
        %s185 = sadd.s32 %s183, %s184
        %s186 = smul.addr %s185, 4
        %s187 = scalar_lea.vmem %s0, %s186
        %s188 = smul.u32 32, %s16
        %s189 = smul.u32 2, %s18
      $region28: #{mask_rcnn_forward.7} parent=23 // pred_fallthru
        _
    $region24: #{mask_rcnn_forward.7} parent=5 // pred_fallthru
      _
    %p190 = scmp.le.s32.totalorder 1, %s9
    %p191 = scmp.lt.s32.totalorder %s9, 3
    %p192 = pnand %p190, %p191
    %p193 = pneg %p192
    // Predicated region
    $region29: #{mask_rcnn_forward.7} parent=5 // pred_check
      _
    $region30: #{mask_rcnn_forward.7} parent=5 // pred_check_branch
      %195 = sbr.rel (%p192) target = $region32
    $region31: #{mask_rcnn_forward.7} parent=5 // pred_region
      %s196 = ssub.s32 %s9, 1
      %s197 = smul.u32 32, %s19
      %s198 = smul.u32 2, %s21
      %p199 = scmp.lt.s32.totalorder %s197, 63
      %s200 = scalar_select %p199, %s197, 63
      %p201 = scmp.lt.s32.totalorder %s198, 1
      %s202 = scalar_select %p201, %s198, 1
      %s203 = smul.addr %s200, 2
      %s204 = sadd.s32 %s202, %s203
      %s205 = smul.addr %s204, 4
      %s206 = scalar_lea.vmem %s0, %s205
      %p207 = pneg %p56
      %p208 = pneg %p53
      %s209 = smul.u32 32, %s21
      %p210 = scmp.lt.s32.totalorder %s209, 31
      %s211 = scalar_select %p210, %s209, 31
      %p212 = scmp.lt.s32.totalorder %s20, 0
      %s213 = scalar_select %p212, %s20, 0
      %s214 = sadd.s32 %s213, %s211
      %s215 = smul.addr %s214, 4
      %s216 = scalar_lea.vmem %s1, %s215
      %p217 = pneg %p84
      %p218 = pneg %p81
      %p219 = scmp.lt.s32.totalorder %s20, 0
      %s220 = scalar_select %p219, %s20, 0
      %s221 = scalar_lea.vmem %s2, %s220
      %p222 = pneg %p110
      %p223 = pneg %p107
      %p224 = pneg %p138
      %p225 = pneg %p135
      %s226 = smul.u32 32, %s19
      %p227 = scmp.lt.s32.totalorder %s226, 63
      %s228 = scalar_select %p227, %s226, 63
      %p229 = scmp.lt.s32.totalorder %s20, 0
      %s230 = scalar_select %p229, %s20, 0
      %s231 = sadd.s32 %s230, %s228
      %s232 = smul.addr %s231, 4
      %s233 = scalar_lea.vmem %s3, %s232
      %s234 = smul.u32 32, %s19
      %s235 = smul.u32 2, %s21
      %p236 = scmp.lt.s32.totalorder %s234, 63
      %s237 = scalar_select %p236, %s234, 63
      %p238 = scmp.lt.s32.totalorder %s235, 1
      %s239 = scalar_select %p238, %s235, 1
      %s240 = smul.addr %s237, 2
      %s241 = sadd.s32 %s239, %s240
      %s242 = smul.addr %s241, 4
      %s243 = scalar_lea.vmem %s0, %s242
      %s244 = smul.u32 32, %s19
      %s245 = smul.u32 2, %s21
      %s246 = smul.u32 32, %s21
      %p247 = scmp.lt.s32.totalorder %s246, 31
      %s248 = scalar_select %p247, %s246, 31
      %p249 = scmp.lt.s32.totalorder %s20, 0
      %s250 = scalar_select %p249, %s20, 0
      %s251 = sadd.s32 %s250, %s248
      %s252 = smul.addr %s251, 4
      %s253 = scalar_lea.vmem %s1, %s252
      %s254 = smul.u32 32, %s21
      %p255 = scmp.lt.s32.totalorder %s20, 0
      %s256 = scalar_select %p255, %s20, 0
      %s257 = scalar_lea.vmem %s2, %s256
      %s258 = smul.u32 32, %s19
      %p259 = scmp.lt.s32.totalorder %s258, 63
      %s260 = scalar_select %p259, %s258, 63
      %p261 = scmp.lt.s32.totalorder %s20, 0
      %s262 = scalar_select %p261, %s20, 0
      %s263 = sadd.s32 %s262, %s260
      %s264 = smul.addr %s263, 4
      %s265 = scalar_lea.vmem %s3, %s264
      %s266 = smul.u32 32, %s19
      %p268 = scmp.eq.s32.totalorder %s21, 0
      // Predicated region
      $region33: #{mask_rcnn_forward.7} parent=31 // pred_check
        %p269 = pneg %p268
      $region34: #{mask_rcnn_forward.7} parent=31 // pred_check_branch
        %271 = sbr.rel (%p269) target = $region36
      $region35: #{mask_rcnn_forward.7} parent=31 // pred_region
        %272 = vst [vmem:[#allocation2] sm:$0xff] 0.0
        %273 = vst [vmem:[#allocation2 + $0x8] sm:$0xff] 0.0
        %274 = vst [vmem:[#allocation2 + $0x10] sm:$0xff] 0.0
        %275 = vst [vmem:[#allocation2 + $0x18] sm:$0xff] 0.0
        %276 = vst [vmem:[#allocation2 + $0x20] sm:$0xff] 0.0
        %277 = vst [vmem:[#allocation2 + $0x28] sm:$0xff] 0.0
        %278 = vst [vmem:[#allocation2 + $0x30] sm:$0xff] 0.0
        %279 = vst [vmem:[#allocation2 + $0x38] sm:$0xff] 0.0
        %280 = vst [vmem:[#allocation2 + $0x40] sm:$0xff] 0.0
        %281 = vst [vmem:[#allocation2 + $0x48] sm:$0xff] 0.0
        %282 = vst [vmem:[#allocation2 + $0x50] sm:$0xff] 0.0
        %283 = vst [vmem:[#allocation2 + $0x58] sm:$0xff] 0.0
        %284 = vst [vmem:[#allocation2 + $0x60] sm:$0xff] 0.0
        %285 = vst [vmem:[#allocation2 + $0x68] sm:$0xff] 0.0
        %286 = vst [vmem:[#allocation2 + $0x70] sm:$0xff] 0.0
        %287 = vst [vmem:[#allocation2 + $0x78] sm:$0xff] 0.0
        %288 = vst [vmem:[#allocation2 + $0x80] sm:$0xff] 0.0
        %289 = vst [vmem:[#allocation2 + $0x88] sm:$0xff] 0.0
        %290 = vst [vmem:[#allocation2 + $0x90] sm:$0xff] 0.0
        %291 = vst [vmem:[#allocation2 + $0x98] sm:$0xff] 0.0
        %292 = vst [vmem:[#allocation2 + $0xa0] sm:$0xff] 0.0
        %293 = vst [vmem:[#allocation2 + $0xa8] sm:$0xff] 0.0
        %294 = vst [vmem:[#allocation2 + $0xb0] sm:$0xff] 0.0
        %295 = vst [vmem:[#allocation2 + $0xb8] sm:$0xff] 0.0
        %296 = vst [vmem:[#allocation2 + $0xc0] sm:$0xff] 0.0
        %297 = vst [vmem:[#allocation2 + $0xc8] sm:$0xff] 0.0
        %298 = vst [vmem:[#allocation2 + $0xd0] sm:$0xff] 0.0
        %299 = vst [vmem:[#allocation2 + $0xd8] sm:$0xff] 0.0
        %300 = vst [vmem:[#allocation2 + $0xe0] sm:$0xff] 0.0
        %301 = vst [vmem:[#allocation2 + $0xe8] sm:$0xff] 0.0
        %302 = vst [vmem:[#allocation2 + $0xf0] sm:$0xff] 0.0
        %303 = vst [vmem:[#allocation2 + $0xf8] sm:$0xff] 0.0
      $region36: #{mask_rcnn_forward.7} parent=31 // pred_fallthru
        _
      %v304 = vld [vmem:[#allocation2] sm:$0xff]
      %v305 = vld [vmem:[#allocation2 + $0x8] sm:$0xff]
      %v306 = vld [vmem:[#allocation2 + $0x10] sm:$0xff]
      %v307 = vld [vmem:[#allocation2 + $0x18] sm:$0xff]
      %v308 = vld [vmem:[#allocation2 + $0x20] sm:$0xff]
      %v309 = vld [vmem:[#allocation2 + $0x28] sm:$0xff]
      %v310 = vld [vmem:[#allocation2 + $0x30] sm:$0xff]
      %v311 = vld [vmem:[#allocation2 + $0x38] sm:$0xff]
      %v312 = vld [vmem:[#allocation2 + $0x40] sm:$0xff]
      %v313 = vld [vmem:[#allocation2 + $0x48] sm:$0xff]
      %v314 = vld [vmem:[#allocation2 + $0x50] sm:$0xff]
      %v315 = vld [vmem:[#allocation2 + $0x58] sm:$0xff]
      %v316 = vld [vmem:[#allocation2 + $0x60] sm:$0xff]
      %v317 = vld [vmem:[#allocation2 + $0x68] sm:$0xff]
      %v318 = vld [vmem:[#allocation2 + $0x70] sm:$0xff]
      %v319 = vld [vmem:[#allocation2 + $0x78] sm:$0xff]
      %v320 = vld [vmem:[#allocation2 + $0x80] sm:$0xff]
      %v321 = vld [vmem:[#allocation2 + $0x88] sm:$0xff]
      %v322 = vld [vmem:[#allocation2 + $0x90] sm:$0xff]
      %v323 = vld [vmem:[#allocation2 + $0x98] sm:$0xff]
      %v324 = vld [vmem:[#allocation2 + $0xa0] sm:$0xff]
      %v325 = vld [vmem:[#allocation2 + $0xa8] sm:$0xff]
      %v326 = vld [vmem:[#allocation2 + $0xb0] sm:$0xff]
      %v327 = vld [vmem:[#allocation2 + $0xb8] sm:$0xff]
      %v328 = vld [vmem:[#allocation2 + $0xc0] sm:$0xff]
      %v329 = vld [vmem:[#allocation2 + $0xc8] sm:$0xff]
      %v330 = vld [vmem:[#allocation2 + $0xd0] sm:$0xff]
      %v331 = vld [vmem:[#allocation2 + $0xd8] sm:$0xff]
      %v332 = vld [vmem:[#allocation2 + $0xe0] sm:$0xff]
      %v333 = vld [vmem:[#allocation2 + $0xe8] sm:$0xff]
      %v334 = vld [vmem:[#allocation2 + $0xf0] sm:$0xff]
      %v335 = vld [vmem:[#allocation2 + $0xf8] sm:$0xff]
      %v336 = vld [vmem:[%s243] sm:$0xff]
      %v337 = vld [vmem:[%s243 + $0x8] sm:$0xff]
      %v338 = vld [vmem:[%s243 + $0x10] sm:$0xff]
      %v339 = vld [vmem:[%s243 + $0x18] sm:$0xff]
      %v340 = vld [vmem:[%s243 + $0x20] sm:$0xff]
      %v341 = vld [vmem:[%s243 + $0x28] sm:$0xff]
      %v342 = vld [vmem:[%s243 + $0x30] sm:$0xff]
      %v343 = vld [vmem:[%s243 + $0x38] sm:$0xff]
      %v344 = vld [vmem:[%s243 + $0x40] sm:$0xff]
      %v345 = vld [vmem:[%s243 + $0x48] sm:$0xff]
      %v346 = vld [vmem:[%s243 + $0x50] sm:$0xff]
      %v347 = vld [vmem:[%s243 + $0x58] sm:$0xff]
      %v348 = vld [vmem:[%s243 + $0x60] sm:$0xff]
      %v349 = vld [vmem:[%s243 + $0x68] sm:$0xff]
      %v350 = vld [vmem:[%s243 + $0x70] sm:$0xff]
      %v351 = vld [vmem:[%s243 + $0x78] sm:$0xff]
      %v352 = vld [vmem:[%s243 + $0x80] sm:$0xff]
      %v353 = vld [vmem:[%s243 + $0x88] sm:$0xff]
      %v354 = vld [vmem:[%s243 + $0x90] sm:$0xff]
      %v355 = vld [vmem:[%s243 + $0x98] sm:$0xff]
      %v356 = vld [vmem:[%s243 + $0xa0] sm:$0xff]
      %v357 = vld [vmem:[%s243 + $0xa8] sm:$0xff]
      %v358 = vld [vmem:[%s243 + $0xb0] sm:$0xff]
      %v359 = vld [vmem:[%s243 + $0xb8] sm:$0xff]
      %v360 = vld [vmem:[%s243 + $0xc0] sm:$0xff]
      %v361 = vld [vmem:[%s243 + $0xc8] sm:$0xff]
      %v362 = vld [vmem:[%s243 + $0xd0] sm:$0xff]
      %v363 = vld [vmem:[%s243 + $0xd8] sm:$0xff]
      %v364 = vld [vmem:[%s243 + $0xe0] sm:$0xff]
      %v365 = vld [vmem:[%s243 + $0xe8] sm:$0xff]
      %v366 = vld [vmem:[%s243 + $0xf0] sm:$0xff]
      %v367 = vld [vmem:[%s243 + $0xf8] sm:$0xff]
      %v368 = vld [vmem:[%s253] sm:$0xf]
      %v369 = vld [vmem:[%s253 + $0x4] sm:$0xf]
      %v370 = vld [vmem:[%s253 + $0x8] sm:$0xf]
      %v371 = vld [vmem:[%s253 + $0xc] sm:$0xf]
      %v372 = vld [vmem:[%s253 + $0x10] sm:$0xf]
      %v373 = vld [vmem:[%s253 + $0x14] sm:$0xf]
      %v374 = vld [vmem:[%s253 + $0x18] sm:$0xf]
      %v375 = vld [vmem:[%s253 + $0x1c] sm:$0xf]
      %v376 = vld [vmem:[%s253 + $0x20] sm:$0xf]
      %v377 = vld [vmem:[%s253 + $0x24] sm:$0xf]
      %v378 = vld [vmem:[%s253 + $0x28] sm:$0xf]
      %v379 = vld [vmem:[%s253 + $0x2c] sm:$0xf]
      %v380 = vld [vmem:[%s253 + $0x30] sm:$0xf]
      %v381 = vld [vmem:[%s253 + $0x34] sm:$0xf]
      %v382 = vld [vmem:[%s253 + $0x38] sm:$0xf]
      %v383 = vld [vmem:[%s253 + $0x3c] sm:$0xf]
      %v384 = vld [vmem:[%s253 + $0x40] sm:$0xf]
      %v385 = vld [vmem:[%s253 + $0x44] sm:$0xf]
      %v386 = vld [vmem:[%s253 + $0x48] sm:$0xf]
      %v387 = vld [vmem:[%s253 + $0x4c] sm:$0xf]
      %v388 = vld [vmem:[%s253 + $0x50] sm:$0xf]
      %v389 = vld [vmem:[%s253 + $0x54] sm:$0xf]
      %v390 = vld [vmem:[%s253 + $0x58] sm:$0xf]
      %v391 = vld [vmem:[%s253 + $0x5c] sm:$0xf]
      %v392 = vld [vmem:[%s253 + $0x60] sm:$0xf]
      %v393 = vld [vmem:[%s253 + $0x64] sm:$0xf]
      %v394 = vld [vmem:[%s253 + $0x68] sm:$0xf]
      %v395 = vld [vmem:[%s253 + $0x6c] sm:$0xf]
      %v396 = vld [vmem:[%s253 + $0x70] sm:$0xf]
      %v397 = vld [vmem:[%s253 + $0x74] sm:$0xf]
      %v398 = vld [vmem:[%s253 + $0x78] sm:$0xf]
      %v399 = vld [vmem:[%s253 + $0x7c] sm:$0xf]
      %v432 = vunpack.c.l.b16 %v336
      %v433 = vunpack.c.h.b16 %v336
      %v434 = vunpack.c.l.b16 %v337
      %v435 = vunpack.c.h.b16 %v337
      %v436 = vunpack.c.l.b16 %v338
      %v437 = vunpack.c.h.b16 %v338
      %v438 = vunpack.c.l.b16 %v339
      %v439 = vunpack.c.h.b16 %v339
      %v440 = vunpack.c.l.b16 %v340
      %v441 = vunpack.c.h.b16 %v340
      %v442 = vunpack.c.l.b16 %v341
      %v443 = vunpack.c.h.b16 %v341
      %v444 = vunpack.c.l.b16 %v342
      %v445 = vunpack.c.h.b16 %v342
      %v446 = vunpack.c.l.b16 %v343
      %v447 = vunpack.c.h.b16 %v343
      %v448 = vunpack.c.l.b16 %v344
      %v449 = vunpack.c.h.b16 %v344
      %v450 = vunpack.c.l.b16 %v345
      %v451 = vunpack.c.h.b16 %v345
      %v452 = vunpack.c.l.b16 %v346
      %v453 = vunpack.c.h.b16 %v346
      %v454 = vunpack.c.l.b16 %v347
      %v455 = vunpack.c.h.b16 %v347
      %v456 = vunpack.c.l.b16 %v348
      %v457 = vunpack.c.h.b16 %v348
      %v458 = vunpack.c.l.b16 %v349
      %v459 = vunpack.c.h.b16 %v349
      %v460 = vunpack.c.l.b16 %v350
      %v461 = vunpack.c.h.b16 %v350
      %v462 = vunpack.c.l.b16 %v351
      %v463 = vunpack.c.h.b16 %v351
      %v464 = vunpack.c.l.b16 %v352
      %v465 = vunpack.c.h.b16 %v352
      %v466 = vunpack.c.l.b16 %v353
      %v467 = vunpack.c.h.b16 %v353
      %v468 = vunpack.c.l.b16 %v354
      %v469 = vunpack.c.h.b16 %v354
      %v470 = vunpack.c.l.b16 %v355
      %v471 = vunpack.c.h.b16 %v355
      %v472 = vunpack.c.l.b16 %v356
      %v473 = vunpack.c.h.b16 %v356
      %v474 = vunpack.c.l.b16 %v357
      %v475 = vunpack.c.h.b16 %v357
      %v476 = vunpack.c.l.b16 %v358
      %v477 = vunpack.c.h.b16 %v358
      %v478 = vunpack.c.l.b16 %v359
      %v479 = vunpack.c.h.b16 %v359
      %v480 = vunpack.c.l.b16 %v360
      %v481 = vunpack.c.h.b16 %v360
      %v482 = vunpack.c.l.b16 %v361
      %v483 = vunpack.c.h.b16 %v361
      %v484 = vunpack.c.l.b16 %v362
      %v485 = vunpack.c.h.b16 %v362
      %v486 = vunpack.c.l.b16 %v363
      %v487 = vunpack.c.h.b16 %v363
      %v488 = vunpack.c.l.b16 %v364
      %v489 = vunpack.c.h.b16 %v364
      %v490 = vunpack.c.l.b16 %v365
      %v491 = vunpack.c.h.b16 %v365
      %v492 = vunpack.c.l.b16 %v366
      %v493 = vunpack.c.h.b16 %v366
      %v494 = vunpack.c.l.b16 %v367
      %v495 = vunpack.c.h.b16 %v367
      %v496 = vpack.c.b16 %v434, %v432
      %v497 = vpack.c.b16 %v435, %v433
      %v498 = vpack.c.b16 %v438, %v436
      %v499 = vpack.c.b16 %v439, %v437
      %v500 = vpack.c.b16 %v442, %v440
      %v501 = vpack.c.b16 %v443, %v441
      %v502 = vpack.c.b16 %v446, %v444
      %v503 = vpack.c.b16 %v447, %v445
      %v504 = vpack.c.b16 %v450, %v448
      %v505 = vpack.c.b16 %v451, %v449
      %v506 = vpack.c.b16 %v454, %v452
      %v507 = vpack.c.b16 %v455, %v453
      %v508 = vpack.c.b16 %v458, %v456
      %v509 = vpack.c.b16 %v459, %v457
      %v510 = vpack.c.b16 %v462, %v460
      %v511 = vpack.c.b16 %v463, %v461
      %v512 = vpack.c.b16 %v466, %v464
      %v513 = vpack.c.b16 %v467, %v465
      %v514 = vpack.c.b16 %v470, %v468
      %v515 = vpack.c.b16 %v471, %v469
      %v516 = vpack.c.b16 %v474, %v472
      %v517 = vpack.c.b16 %v475, %v473
      %v518 = vpack.c.b16 %v478, %v476
      %v519 = vpack.c.b16 %v479, %v477
      %v520 = vpack.c.b16 %v482, %v480
      %v521 = vpack.c.b16 %v483, %v481
      %v522 = vpack.c.b16 %v486, %v484
      %v523 = vpack.c.b16 %v487, %v485
      %v524 = vpack.c.b16 %v490, %v488
      %v525 = vpack.c.b16 %v491, %v489
      %v526 = vpack.c.b16 %v494, %v492
      %v527 = vpack.c.b16 %v495, %v493
      %v592 = vunpack.c.l.b16 %v368
      %v593 = vunpack.c.l.b16 %v369
      %v594 = vunpack.c.l.b16 %v370
      %v595 = vunpack.c.l.b16 %v371
      %v596 = vunpack.c.l.b16 %v372
      %v597 = vunpack.c.l.b16 %v373
      %v598 = vunpack.c.l.b16 %v374
      %v599 = vunpack.c.l.b16 %v375
      %v600 = vunpack.c.l.b16 %v376
      %v601 = vunpack.c.l.b16 %v377
      %v602 = vunpack.c.l.b16 %v378
      %v603 = vunpack.c.l.b16 %v379
      %v604 = vunpack.c.l.b16 %v380
      %v605 = vunpack.c.l.b16 %v381
      %v606 = vunpack.c.l.b16 %v382
      %v607 = vunpack.c.l.b16 %v383
      %v608 = vunpack.c.l.b16 %v384
      %v609 = vunpack.c.l.b16 %v385
      %v610 = vunpack.c.l.b16 %v386
      %v611 = vunpack.c.l.b16 %v387
      %v612 = vunpack.c.l.b16 %v388
      %v613 = vunpack.c.l.b16 %v389
      %v614 = vunpack.c.l.b16 %v390
      %v615 = vunpack.c.l.b16 %v391
      %v616 = vunpack.c.l.b16 %v392
      %v617 = vunpack.c.l.b16 %v393
      %v618 = vunpack.c.l.b16 %v394
      %v619 = vunpack.c.l.b16 %v395
      %v620 = vunpack.c.l.b16 %v396
      %v621 = vunpack.c.l.b16 %v397
      %v622 = vunpack.c.l.b16 %v398
      %v623 = vunpack.c.l.b16 %v399
      %v624 = vpack.c.b16 %v593, %v592
      %v625 = vpack.c.b16 %v595, %v594
      %v626 = vpack.c.b16 %v597, %v596
      %v627 = vpack.c.b16 %v599, %v598
      %v628 = vpack.c.b16 %v601, %v600
      %v629 = vpack.c.b16 %v603, %v602
      %v630 = vpack.c.b16 %v605, %v604
      %v631 = vpack.c.b16 %v607, %v606
      %v632 = vpack.c.b16 %v609, %v608
      %v633 = vpack.c.b16 %v611, %v610
      %v634 = vpack.c.b16 %v613, %v612
      %v635 = vpack.c.b16 %v615, %v614
      %v636 = vpack.c.b16 %v617, %v616
      %v637 = vpack.c.b16 %v619, %v618
      %v638 = vpack.c.b16 %v621, %v620
      %v639 = vpack.c.b16 %v623, %v622
      %656 = vmatprep.subr.bf16.mxu0 0
      %657 = vmatpush1.bf16.msra.mxu0 %v631
      %658 = vmatprep.subr.bf16.mxu0 0
      %659 = vmatpush1.bf16.msra.mxu0 %v630
      %660 = vmatprep.subr.bf16.mxu0 0
      %661 = vmatpush1.bf16.msra.mxu0 %v629
      %662 = vmatprep.subr.bf16.mxu0 0
      %663 = vmatpush1.bf16.msra.mxu0 %v628
      %664 = vmatprep.subr.bf16.mxu0 0
      %665 = vmatpush1.bf16.msra.mxu0 %v627
      %666 = vmatprep.subr.bf16.mxu0 0
      %667 = vmatpush1.bf16.msra.mxu0 %v626
      %668 = vmatprep.subr.bf16.mxu0 0
      %669 = vmatpush1.bf16.msra.mxu0 %v625
      %670 = vmatprep.subr.bf16.mxu0 0
      %671 = vmatpush1.bf16.msra.mxu0 %v624
      %672 = vmatprep.subr.bf16.mxu0 0
      %673 = vmatpush2.bf16.msra.mxu0 %v639
      %674 = vmatprep.subr.bf16.mxu0 0
      %675 = vmatpush2.bf16.msra.mxu0 %v638
      %676 = vmatprep.subr.bf16.mxu0 0
      %677 = vmatpush2.bf16.msra.mxu0 %v637
      %678 = vmatprep.subr.bf16.mxu0 0
      %679 = vmatpush2.bf16.msra.mxu0 %v636
      %680 = vmatprep.subr.bf16.mxu0 0
      %681 = vmatpush2.bf16.msra.mxu0 %v635
      %682 = vmatprep.subr.bf16.mxu0 0
      %683 = vmatpush2.bf16.msra.mxu0 %v634
      %684 = vmatprep.subr.bf16.mxu0 0
      %685 = vmatpush2.bf16.msra.mxu0 %v633
      %686 = vmatprep.subr.bf16.mxu0 0
      %687 = vmatpush2.bf16.msra.mxu0 %v632
      %688 = vmatprep.mubr.bf16.mxu0 %v497
      %689 = vmatmul.mubr.bf16.gmra.mxu0 %v496
      %v690 = vpop.f32.mrf.mxu0
      %v691 = vadd.f32 0.0, %v690
      %v692 = vpop.f32.mrf.mxu0
      %v693 = vpop.f32.mrf.mxu0
      %v694 = vadd.f32 0.0, %v693
      %v695 = vpop.f32.mrf.mxu0
      %696 = vmatprep.mubr.bf16.mxu0 %v499
      %697 = vmatmul.mubr.bf16.gmra.mxu0 %v498
      %v698 = vpop.f32.mrf.mxu0
      %v699 = vadd.f32 0.0, %v698
      %v700 = vpop.f32.mrf.mxu0
      %v701 = vpop.f32.mrf.mxu0
      %v702 = vadd.f32 0.0, %v701
      %v703 = vpop.f32.mrf.mxu0
      %704 = vmatprep.mubr.bf16.mxu0 %v501
      %705 = vmatmul.mubr.bf16.gmra.mxu0 %v500
      %v706 = vpop.f32.mrf.mxu0
      %v707 = vadd.f32 0.0, %v706
      %v708 = vpop.f32.mrf.mxu0
      %v709 = vpop.f32.mrf.mxu0
      %v710 = vadd.f32 0.0, %v709
      %v711 = vpop.f32.mrf.mxu0
      %712 = vmatprep.mubr.bf16.mxu0 %v503
      %713 = vmatmul.mubr.bf16.gmra.mxu0 %v502
      %v714 = vpop.f32.mrf.mxu0
      %v715 = vadd.f32 0.0, %v714
      %v716 = vpop.f32.mrf.mxu0
      %v717 = vpop.f32.mrf.mxu0
      %v718 = vadd.f32 0.0, %v717
      %v719 = vpop.f32.mrf.mxu0
      %720 = vmatprep.mubr.bf16.mxu0 %v505
      %721 = vmatmul.mubr.bf16.gmra.mxu0 %v504
      %v722 = vpop.f32.mrf.mxu0
      %v723 = vadd.f32 0.0, %v722
      %v724 = vpop.f32.mrf.mxu0
      %v725 = vpop.f32.mrf.mxu0
      %v726 = vadd.f32 0.0, %v725
      %v727 = vpop.f32.mrf.mxu0
      %728 = vmatprep.mubr.bf16.mxu0 %v507
      %729 = vmatmul.mubr.bf16.gmra.mxu0 %v506
      %v730 = vpop.f32.mrf.mxu0
      %v731 = vadd.f32 0.0, %v730
      %v732 = vpop.f32.mrf.mxu0
      %v733 = vpop.f32.mrf.mxu0
      %v734 = vadd.f32 0.0, %v733
      %v735 = vpop.f32.mrf.mxu0
      %736 = vmatprep.mubr.bf16.mxu0 %v509
      %737 = vmatmul.mubr.bf16.gmra.mxu0 %v508
      %v738 = vpop.f32.mrf.mxu0
      %v739 = vadd.f32 0.0, %v738
      %v740 = vpop.f32.mrf.mxu0
      %v741 = vpop.f32.mrf.mxu0
      %v742 = vadd.f32 0.0, %v741
      %v743 = vpop.f32.mrf.mxu0
      %744 = vmatprep.mubr.bf16.mxu0 %v511
      %745 = vmatmul.mubr.bf16.gmra.mxu0 %v510
      %v746 = vpop.f32.mrf.mxu0
      %v747 = vadd.f32 0.0, %v746
      %v748 = vpop.f32.mrf.mxu0
      %v749 = vpop.f32.mrf.mxu0
      %v750 = vadd.f32 0.0, %v749
      %v751 = vpop.f32.mrf.mxu0
      %752 = vmatprep.mubr.bf16.mxu0 %v513
      %753 = vmatmul.mubr.bf16.gmra.mxu0 %v512
      %v754 = vpop.f32.mrf.mxu0
      %v755 = vadd.f32 0.0, %v754
      %v756 = vpop.f32.mrf.mxu0
      %v757 = vpop.f32.mrf.mxu0
      %v758 = vadd.f32 0.0, %v757
      %v759 = vpop.f32.mrf.mxu0
      %760 = vmatprep.mubr.bf16.mxu0 %v515
      %761 = vmatmul.mubr.bf16.gmra.mxu0 %v514
      %v762 = vpop.f32.mrf.mxu0
      %v763 = vadd.f32 0.0, %v762
      %v764 = vpop.f32.mrf.mxu0
      %v765 = vpop.f32.mrf.mxu0
      %v766 = vadd.f32 0.0, %v765
      %v767 = vpop.f32.mrf.mxu0
      %768 = vmatprep.mubr.bf16.mxu0 %v517
      %769 = vmatmul.mubr.bf16.gmra.mxu0 %v516
      %v770 = vpop.f32.mrf.mxu0
      %v771 = vadd.f32 0.0, %v770
      %v772 = vpop.f32.mrf.mxu0
      %v773 = vpop.f32.mrf.mxu0
      %v774 = vadd.f32 0.0, %v773
      %v775 = vpop.f32.mrf.mxu0
      %776 = vmatprep.mubr.bf16.mxu0 %v519
      %777 = vmatmul.mubr.bf16.gmra.mxu0 %v518
      %v778 = vpop.f32.mrf.mxu0
      %v779 = vadd.f32 0.0, %v778
      %v780 = vpop.f32.mrf.mxu0
      %v781 = vpop.f32.mrf.mxu0
      %v782 = vadd.f32 0.0, %v781
      %v783 = vpop.f32.mrf.mxu0
      %784 = vmatprep.mubr.bf16.mxu0 %v521
      %785 = vmatmul.mubr.bf16.gmra.mxu0 %v520
      %v786 = vpop.f32.mrf.mxu0
      %v787 = vadd.f32 0.0, %v786
      %v788 = vpop.f32.mrf.mxu0
      %v789 = vpop.f32.mrf.mxu0
      %v790 = vadd.f32 0.0, %v789
      %v791 = vpop.f32.mrf.mxu0
      %792 = vmatprep.mubr.bf16.mxu0 %v523
      %793 = vmatmul.mubr.bf16.gmra.mxu0 %v522
      %v794 = vpop.f32.mrf.mxu0
      %v795 = vadd.f32 0.0, %v794
      %v796 = vpop.f32.mrf.mxu0
      %v797 = vpop.f32.mrf.mxu0
      %v798 = vadd.f32 0.0, %v797
      %v799 = vpop.f32.mrf.mxu0
      %800 = vmatprep.mubr.bf16.mxu0 %v525
      %801 = vmatmul.mubr.bf16.gmra.mxu0 %v524
      %v802 = vpop.f32.mrf.mxu0
      %v803 = vadd.f32 0.0, %v802
      %v804 = vpop.f32.mrf.mxu0
      %v805 = vpop.f32.mrf.mxu0
      %v806 = vadd.f32 0.0, %v805
      %v807 = vpop.f32.mrf.mxu0
      %808 = vmatprep.mubr.bf16.mxu0 %v527
      %809 = vmatmul.mubr.bf16.gmra.mxu0 %v526
      %v810 = vpop.f32.mrf.mxu0
      %v811 = vadd.f32 0.0, %v810
      %v812 = vpop.f32.mrf.mxu0
      %v813 = vpop.f32.mrf.mxu0
      %v814 = vadd.f32 0.0, %v813
      %v815 = vpop.f32.mrf.mxu0
      %816 = vdwg.mxu0
      %v817 = vadd.f32 %v304, %v691
      %v818 = vadd.f32 %v305, %v694
      %v819 = vadd.f32 %v306, %v699
      %v820 = vadd.f32 %v307, %v702
      %v821 = vadd.f32 %v308, %v707
      %v822 = vadd.f32 %v309, %v710
      %v823 = vadd.f32 %v310, %v715
      %v824 = vadd.f32 %v311, %v718
      %v825 = vadd.f32 %v312, %v723
      %v826 = vadd.f32 %v313, %v726
      %v827 = vadd.f32 %v314, %v731
      %v828 = vadd.f32 %v315, %v734
      %v829 = vadd.f32 %v316, %v739
      %v830 = vadd.f32 %v317, %v742
      %v831 = vadd.f32 %v318, %v747
      %v832 = vadd.f32 %v319, %v750
      %v833 = vadd.f32 %v320, %v755
      %v834 = vadd.f32 %v321, %v758
      %v835 = vadd.f32 %v322, %v763
      %v836 = vadd.f32 %v323, %v766
      %v837 = vadd.f32 %v324, %v771
      %v838 = vadd.f32 %v325, %v774
      %v839 = vadd.f32 %v326, %v779
      %v840 = vadd.f32 %v327, %v782
      %v841 = vadd.f32 %v328, %v787
      %v842 = vadd.f32 %v329, %v790
      %v843 = vadd.f32 %v330, %v795
      %v844 = vadd.f32 %v331, %v798
      %v845 = vadd.f32 %v332, %v803
      %v846 = vadd.f32 %v333, %v806
      %v847 = vadd.f32 %v334, %v811
      %v848 = vadd.f32 %v335, %v814
      %849 = vst [vmem:[#allocation2] sm:$0xff] %v817
      %850 = vst [vmem:[#allocation2 + $0x8] sm:$0xff] %v818
      %851 = vst [vmem:[#allocation2 + $0x10] sm:$0xff] %v819
      %852 = vst [vmem:[#allocation2 + $0x18] sm:$0xff] %v820
      %853 = vst [vmem:[#allocation2 + $0x20] sm:$0xff] %v821
      %854 = vst [vmem:[#allocation2 + $0x28] sm:$0xff] %v822
      %855 = vst [vmem:[#allocation2 + $0x30] sm:$0xff] %v823
      %856 = vst [vmem:[#allocation2 + $0x38] sm:$0xff] %v824
      %857 = vst [vmem:[#allocation2 + $0x40] sm:$0xff] %v825
      %858 = vst [vmem:[#allocation2 + $0x48] sm:$0xff] %v826
      %859 = vst [vmem:[#allocation2 + $0x50] sm:$0xff] %v827
      %860 = vst [vmem:[#allocation2 + $0x58] sm:$0xff] %v828
      %861 = vst [vmem:[#allocation2 + $0x60] sm:$0xff] %v829
      %862 = vst [vmem:[#allocation2 + $0x68] sm:$0xff] %v830
      %863 = vst [vmem:[#allocation2 + $0x70] sm:$0xff] %v831
      %864 = vst [vmem:[#allocation2 + $0x78] sm:$0xff] %v832
      %865 = vst [vmem:[#allocation2 + $0x80] sm:$0xff] %v833
      %866 = vst [vmem:[#allocation2 + $0x88] sm:$0xff] %v834
      %867 = vst [vmem:[#allocation2 + $0x90] sm:$0xff] %v835
      %868 = vst [vmem:[#allocation2 + $0x98] sm:$0xff] %v836
      %869 = vst [vmem:[#allocation2 + $0xa0] sm:$0xff] %v837
      %870 = vst [vmem:[#allocation2 + $0xa8] sm:$0xff] %v838
      %871 = vst [vmem:[#allocation2 + $0xb0] sm:$0xff] %v839
      %872 = vst [vmem:[#allocation2 + $0xb8] sm:$0xff] %v840
      %873 = vst [vmem:[#allocation2 + $0xc0] sm:$0xff] %v841
      %874 = vst [vmem:[#allocation2 + $0xc8] sm:$0xff] %v842
      %875 = vst [vmem:[#allocation2 + $0xd0] sm:$0xff] %v843
      %876 = vst [vmem:[#allocation2 + $0xd8] sm:$0xff] %v844
      %877 = vst [vmem:[#allocation2 + $0xe0] sm:$0xff] %v845
      %878 = vst [vmem:[#allocation2 + $0xe8] sm:$0xff] %v846
      %879 = vst [vmem:[#allocation2 + $0xf0] sm:$0xff] %v847
      %880 = vst [vmem:[#allocation2 + $0xf8] sm:$0xff] %v848
      // Predicated region
      $region37: #{mask_rcnn_forward.7} parent=31 // pred_check
        %p881 = pneg %p268
      $region38: #{mask_rcnn_forward.7} parent=31 // pred_check_branch
        %883 = sbr.rel (%p881) target = $region40
      $region39: #{mask_rcnn_forward.7} parent=31 // pred_region
        %v884 = vld [vmem:[#allocation2] sm:$0xff]
        %v885 = vld [vmem:[#allocation2 + $0x8] sm:$0xff]
        %v886 = vld [vmem:[#allocation2 + $0x10] sm:$0xff]
        %v887 = vld [vmem:[#allocation2 + $0x18] sm:$0xff]
        %v888 = vld [vmem:[#allocation2 + $0x20] sm:$0xff]
        %v889 = vld [vmem:[#allocation2 + $0x28] sm:$0xff]
        %v890 = vld [vmem:[#allocation2 + $0x30] sm:$0xff]
        %v891 = vld [vmem:[#allocation2 + $0x38] sm:$0xff]
        %v892 = vld [vmem:[#allocation2 + $0x40] sm:$0xff]
        %v893 = vld [vmem:[#allocation2 + $0x48] sm:$0xff]
        %v894 = vld [vmem:[#allocation2 + $0x50] sm:$0xff]
        %v895 = vld [vmem:[#allocation2 + $0x58] sm:$0xff]
        %v896 = vld [vmem:[#allocation2 + $0x60] sm:$0xff]
        %v897 = vld [vmem:[#allocation2 + $0x68] sm:$0xff]
        %v898 = vld [vmem:[#allocation2 + $0x70] sm:$0xff]
        %v899 = vld [vmem:[#allocation2 + $0x78] sm:$0xff]
        %v900 = vld [vmem:[#allocation2 + $0x80] sm:$0xff]
        %v901 = vld [vmem:[#allocation2 + $0x88] sm:$0xff]
        %v902 = vld [vmem:[#allocation2 + $0x90] sm:$0xff]
        %v903 = vld [vmem:[#allocation2 + $0x98] sm:$0xff]
        %v904 = vld [vmem:[#allocation2 + $0xa0] sm:$0xff]
        %v905 = vld [vmem:[#allocation2 + $0xa8] sm:$0xff]
        %v906 = vld [vmem:[#allocation2 + $0xb0] sm:$0xff]
        %v907 = vld [vmem:[#allocation2 + $0xb8] sm:$0xff]
        %v908 = vld [vmem:[#allocation2 + $0xc0] sm:$0xff]
        %v909 = vld [vmem:[#allocation2 + $0xc8] sm:$0xff]
        %v910 = vld [vmem:[#allocation2 + $0xd0] sm:$0xff]
        %v911 = vld [vmem:[#allocation2 + $0xd8] sm:$0xff]
        %v912 = vld [vmem:[#allocation2 + $0xe0] sm:$0xff]
        %v913 = vld [vmem:[#allocation2 + $0xe8] sm:$0xff]
        %v914 = vld [vmem:[#allocation2 + $0xf0] sm:$0xff]
        %v915 = vld [vmem:[#allocation2 + $0xf8] sm:$0xff]
        %v916 = vld [vmem:[%s257] sm:$0x1]
        %v918 = vlaneseq
        %v919 = vshrl.u32 %v918, 7
        %v920 = vsub.s32 0, %v919
        %v921 = vrot.slane %v916, %v920
        %v923 = vadd.f32 %v884, %v921
        %v924 = vadd.f32 %v885, %v921
        %v925 = vadd.f32 %v886, %v921
        %v926 = vadd.f32 %v887, %v921
        %v927 = vadd.f32 %v888, %v921
        %v928 = vadd.f32 %v889, %v921
        %v929 = vadd.f32 %v890, %v921
        %v930 = vadd.f32 %v891, %v921
        %v931 = vadd.f32 %v892, %v921
        %v932 = vadd.f32 %v893, %v921
        %v933 = vadd.f32 %v894, %v921
        %v934 = vadd.f32 %v895, %v921
        %v935 = vadd.f32 %v896, %v921
        %v936 = vadd.f32 %v897, %v921
        %v937 = vadd.f32 %v898, %v921
        %v938 = vadd.f32 %v899, %v921
        %v939 = vadd.f32 %v900, %v921
        %v940 = vadd.f32 %v901, %v921
        %v941 = vadd.f32 %v902, %v921
        %v942 = vadd.f32 %v903, %v921
        %v943 = vadd.f32 %v904, %v921
        %v944 = vadd.f32 %v905, %v921
        %v945 = vadd.f32 %v906, %v921
        %v946 = vadd.f32 %v907, %v921
        %v947 = vadd.f32 %v908, %v921
        %v948 = vadd.f32 %v909, %v921
        %v949 = vadd.f32 %v910, %v921
        %v950 = vadd.f32 %v911, %v921
        %v951 = vadd.f32 %v912, %v921
        %v952 = vadd.f32 %v913, %v921
        %v953 = vadd.f32 %v914, %v921
        %v954 = vadd.f32 %v915, %v921
        %v955 = vmax.f32 %v923, 0.0
        %v956 = vmax.f32 %v924, 0.0
        %v957 = vmax.f32 %v925, 0.0
        %v958 = vmax.f32 %v926, 0.0
        %v959 = vmax.f32 %v927, 0.0
        %v960 = vmax.f32 %v928, 0.0
        %v961 = vmax.f32 %v929, 0.0
        %v962 = vmax.f32 %v930, 0.0
        %v963 = vmax.f32 %v931, 0.0
        %v964 = vmax.f32 %v932, 0.0
        %v965 = vmax.f32 %v933, 0.0
        %v966 = vmax.f32 %v934, 0.0
        %v967 = vmax.f32 %v935, 0.0
        %v968 = vmax.f32 %v936, 0.0
        %v969 = vmax.f32 %v937, 0.0
        %v970 = vmax.f32 %v938, 0.0
        %v971 = vmax.f32 %v939, 0.0
        %v972 = vmax.f32 %v940, 0.0
        %v973 = vmax.f32 %v941, 0.0
        %v974 = vmax.f32 %v942, 0.0
        %v975 = vmax.f32 %v943, 0.0
        %v976 = vmax.f32 %v944, 0.0
        %v977 = vmax.f32 %v945, 0.0
        %v978 = vmax.f32 %v946, 0.0
        %v979 = vmax.f32 %v947, 0.0
        %v980 = vmax.f32 %v948, 0.0
        %v981 = vmax.f32 %v949, 0.0
        %v982 = vmax.f32 %v950, 0.0
        %v983 = vmax.f32 %v951, 0.0
        %v984 = vmax.f32 %v952, 0.0
        %v985 = vmax.f32 %v953, 0.0
        %v986 = vmax.f32 %v954, 0.0
        %v987 = vpack.c.bf16 %v956, %v955
        %v988 = vpack.c.bf16 %v958, %v957
        %v989 = vpack.c.bf16 %v960, %v959
        %v990 = vpack.c.bf16 %v962, %v961
        %v991 = vpack.c.bf16 %v964, %v963
        %v992 = vpack.c.bf16 %v966, %v965
        %v993 = vpack.c.bf16 %v968, %v967
        %v994 = vpack.c.bf16 %v970, %v969
        %v995 = vpack.c.bf16 %v972, %v971
        %v996 = vpack.c.bf16 %v974, %v973
        %v997 = vpack.c.bf16 %v976, %v975
        %v998 = vpack.c.bf16 %v978, %v977
        %v999 = vpack.c.bf16 %v980, %v979
        %v1000 = vpack.c.bf16 %v982, %v981
        %v1001 = vpack.c.bf16 %v984, %v983
        %v1002 = vpack.c.bf16 %v986, %v985
        %v1019 = vunpack.c.l.b16 %v987
        %v1020 = vunpack.c.h.b16 %v987
        %v1021 = vunpack.c.l.b16 %v988
        %v1022 = vunpack.c.h.b16 %v988
        %v1023 = vunpack.c.l.b16 %v989
        %v1024 = vunpack.c.h.b16 %v989
        %v1025 = vunpack.c.l.b16 %v990
        %v1026 = vunpack.c.h.b16 %v990
        %v1027 = vunpack.c.l.b16 %v991
        %v1028 = vunpack.c.h.b16 %v991
        %v1029 = vunpack.c.l.b16 %v992
        %v1030 = vunpack.c.h.b16 %v992
        %v1031 = vunpack.c.l.b16 %v993
        %v1032 = vunpack.c.h.b16 %v993
        %v1033 = vunpack.c.l.b16 %v994
        %v1034 = vunpack.c.h.b16 %v994
        %v1035 = vunpack.c.l.b16 %v995
        %v1036 = vunpack.c.h.b16 %v995
        %v1037 = vunpack.c.l.b16 %v996
        %v1038 = vunpack.c.h.b16 %v996
        %v1039 = vunpack.c.l.b16 %v997
        %v1040 = vunpack.c.h.b16 %v997
        %v1041 = vunpack.c.l.b16 %v998
        %v1042 = vunpack.c.h.b16 %v998
        %v1043 = vunpack.c.l.b16 %v999
        %v1044 = vunpack.c.h.b16 %v999
        %v1045 = vunpack.c.l.b16 %v1000
        %v1046 = vunpack.c.h.b16 %v1000
        %v1047 = vunpack.c.l.b16 %v1001
        %v1048 = vunpack.c.h.b16 %v1001
        %v1049 = vunpack.c.l.b16 %v1002
        %v1050 = vunpack.c.h.b16 %v1002
        %v1051 = vpack.c.b16 %v1019, %v1019
        %v1052 = vpack.c.b16 %v1020, %v1020
        %v1053 = vpack.c.b16 %v1021, %v1021
        %v1054 = vpack.c.b16 %v1022, %v1022
        %v1055 = vpack.c.b16 %v1023, %v1023
        %v1056 = vpack.c.b16 %v1024, %v1024
        %v1057 = vpack.c.b16 %v1025, %v1025
        %v1058 = vpack.c.b16 %v1026, %v1026
        %v1059 = vpack.c.b16 %v1027, %v1027
        %v1060 = vpack.c.b16 %v1028, %v1028
        %v1061 = vpack.c.b16 %v1029, %v1029
        %v1062 = vpack.c.b16 %v1030, %v1030
        %v1063 = vpack.c.b16 %v1031, %v1031
        %v1064 = vpack.c.b16 %v1032, %v1032
        %v1065 = vpack.c.b16 %v1033, %v1033
        %v1066 = vpack.c.b16 %v1034, %v1034
        %v1067 = vpack.c.b16 %v1035, %v1035
        %v1068 = vpack.c.b16 %v1036, %v1036
        %v1069 = vpack.c.b16 %v1037, %v1037
        %v1070 = vpack.c.b16 %v1038, %v1038
        %v1071 = vpack.c.b16 %v1039, %v1039
        %v1072 = vpack.c.b16 %v1040, %v1040
        %v1073 = vpack.c.b16 %v1041, %v1041
        %v1074 = vpack.c.b16 %v1042, %v1042
        %v1075 = vpack.c.b16 %v1043, %v1043
        %v1076 = vpack.c.b16 %v1044, %v1044
        %v1077 = vpack.c.b16 %v1045, %v1045
        %v1078 = vpack.c.b16 %v1046, %v1046
        %v1079 = vpack.c.b16 %v1047, %v1047
        %v1080 = vpack.c.b16 %v1048, %v1048
        %v1081 = vpack.c.b16 %v1049, %v1049
        %v1082 = vpack.c.b16 %v1050, %v1050
        %1115 = vst [vmem:[%s265] sm:$0xf] %v1051
        %1116 = vst [vmem:[%s265 + $0x4] sm:$0xf] %v1052
        %1117 = vst [vmem:[%s265 + $0x8] sm:$0xf] %v1053
        %1118 = vst [vmem:[%s265 + $0xc] sm:$0xf] %v1054
        %1119 = vst [vmem:[%s265 + $0x10] sm:$0xf] %v1055
        %1120 = vst [vmem:[%s265 + $0x14] sm:$0xf] %v1056
        %1121 = vst [vmem:[%s265 + $0x18] sm:$0xf] %v1057
        %1122 = vst [vmem:[%s265 + $0x1c] sm:$0xf] %v1058
        %1123 = vst [vmem:[%s265 + $0x20] sm:$0xf] %v1059
        %1124 = vst [vmem:[%s265 + $0x24] sm:$0xf] %v1060
        %1125 = vst [vmem:[%s265 + $0x28] sm:$0xf] %v1061
        %1126 = vst [vmem:[%s265 + $0x2c] sm:$0xf] %v1062
        %1127 = vst [vmem:[%s265 + $0x30] sm:$0xf] %v1063
        %1128 = vst [vmem:[%s265 + $0x34] sm:$0xf] %v1064
        %1129 = vst [vmem:[%s265 + $0x38] sm:$0xf] %v1065
        %1130 = vst [vmem:[%s265 + $0x3c] sm:$0xf] %v1066
        %1131 = vst [vmem:[%s265 + $0x40] sm:$0xf] %v1067
        %1132 = vst [vmem:[%s265 + $0x44] sm:$0xf] %v1068
        %1133 = vst [vmem:[%s265 + $0x48] sm:$0xf] %v1069
        %1134 = vst [vmem:[%s265 + $0x4c] sm:$0xf] %v1070
        %1135 = vst [vmem:[%s265 + $0x50] sm:$0xf] %v1071
        %1136 = vst [vmem:[%s265 + $0x54] sm:$0xf] %v1072
        %1137 = vst [vmem:[%s265 + $0x58] sm:$0xf] %v1073
        %1138 = vst [vmem:[%s265 + $0x5c] sm:$0xf] %v1074
        %1139 = vst [vmem:[%s265 + $0x60] sm:$0xf] %v1075
        %1140 = vst [vmem:[%s265 + $0x64] sm:$0xf] %v1076
        %1141 = vst [vmem:[%s265 + $0x68] sm:$0xf] %v1077
        %1142 = vst [vmem:[%s265 + $0x6c] sm:$0xf] %v1078
        %1143 = vst [vmem:[%s265 + $0x70] sm:$0xf] %v1079
        %1144 = vst [vmem:[%s265 + $0x74] sm:$0xf] %v1080
        %1145 = vst [vmem:[%s265 + $0x78] sm:$0xf] %v1081
        %1146 = vst [vmem:[%s265 + $0x7c] sm:$0xf] %v1082
      $region40: #{mask_rcnn_forward.7} parent=31 // pred_fallthru
        _
      %s1147 = smul.u32 32, %s19
      %p1148 = scmp.lt.s32.totalorder %s1147, 63
      %s1149 = scalar_select %p1148, %s1147, 63
      %p1150 = scmp.lt.s32.totalorder %s20, 0
      %s1151 = scalar_select %p1150, %s20, 0
      %s1152 = sadd.s32 %s1151, %s1149
      %s1153 = smul.addr %s1152, 4
      %s1154 = scalar_lea.vmem %s3, %s1153
      // Predicated region
      $region41: #{mask_rcnn_forward.7} parent=31 // pred_check
        %p1155 = pneg %p135
      $region42: #{mask_rcnn_forward.7} parent=31 // pred_check_branch
        %1157 = sbr.rel (%p1155) target = $region44
      $region43: #{mask_rcnn_forward.7} parent=31 // pred_region
        %s1158 = smul.u32 32, %s19
      $region44: #{mask_rcnn_forward.7} parent=31 // pred_fallthru
        _
    $region32: #{mask_rcnn_forward.7} parent=5 // pred_fallthru
      _
    %p1159 = scmp.le.s32.totalorder 2, %s9
    // Predicated region
    $region45: #{mask_rcnn_forward.7} parent=5 // pred_check
      %p1160 = pneg %p1159
    $region46: #{mask_rcnn_forward.7} parent=5 // pred_check_branch
      %1162 = sbr.rel (%p1160) target = $region48
    $region47: #{mask_rcnn_forward.7} parent=5 // pred_region
      %s1163 = ssub.s32 %s9, 2
      // Predicated region
      $region49: #{mask_rcnn_forward.7} parent=47 // pred_check
        %p1164 = pneg %p141
      $region50: #{mask_rcnn_forward.7} parent=47 // pred_check_branch
        %1166 = sbr.rel (%p1164) target = $region52
      $region51: #{mask_rcnn_forward.7} parent=47 // pred_region
        %s1167 = smul.u32 32, %s22
        %p1168 = scmp.lt.s32.totalorder %s1167, 63
        %s1169 = scalar_select %p1168, %s1167, 63
        %p1170 = scmp.lt.s32.totalorder %s23, 0
        %s1171 = scalar_select %p1170, %s23, 0
        %s1172 = sadd.s32 %s1171, %s1169
        %s1173 = smul.addr %s1172, 4
        %s1174 = scalar_lea.vmem %s3, %s1173
      $region52: #{mask_rcnn_forward.7} parent=47 // pred_fallthru
        _
    $region48: #{mask_rcnn_forward.7} parent=5 // pred_fallthru
      _
  $region6: #{mask_rcnn_forward.7} parent=0 // loop_footer
    %s13 = sadd.s32 1, %s9
  $region7: #{mask_rcnn_forward.7} parent=0 // loop_footer_branch
    %8 = sbr.rel target = $region3
  $region8: #{mask_rcnn_forward.7} parent=0 // loop_exit
    _

// kernel: mask_rcnn_forward.8
$region0: #{mask_rcnn_forward.8}
  #allocation0 [shape = 'u32[]', space=smem, size = 0x4, offset = 0x4, fixed_abs, tag = 'smem constant byte address 0x4 - core index']
  #allocation1 [shape = 'u32[144,128]{1,0:T(1,128)}', space=vmem, size = 0x12000, scoped, tag = 'internal scratch']
  %s0 = inlined_call_operand.vmem [shape: bf16[16,1024], index: 0, kind: input, shape index: {}]
  %s1 = inlined_call_operand.vmem [shape: bf16[1024,128], index: 1, kind: input, shape index: {}]
  %s2 = inlined_call_operand.vmem [shape: f32[1,128], index: 2, kind: input, shape index: {}]
  %s3 = inlined_call_operand.vmem [shape: bf16[128,128], index: 3, kind: input, shape index: {}]
  %s4 = inlined_call_operand.vmem [shape: f32[1,128], index: 4, kind: input, shape index: {}]
  %s5 = inlined_call_operand.vmem [shape: bf16[128,128], index: 5, kind: input, shape index: {}]
  %s6 = inlined_call_operand.vmem [shape: f32[1,128], index: 6, kind: input, shape index: {}]
  %s7 = inlined_call_operand.vmem [shape: f32[16,128], index: 7, kind: output, shape index: {0}]
  %s8 = inlined_call_operand.vmem [shape: f32[16,128], index: 8, kind: output, shape index: {1}]
  %9 = xla_tuple %s7, %s8
  %s10 = sld [smem:[#allocation0]]
  $region46: #{mask_rcnn_forward.8} parent=0
    _
  %s12 = ssub.s32 1, %s10
  %s13 = scalar_select 0, %s12, %s10
  // Predicated region
  $region2: #{mask_rcnn_forward.8} parent=0 // pred_check
    _
  $region3: #{mask_rcnn_forward.8} parent=0 // pred_check_branch
    %15 = sbr.rel (0) target = $region5
  $region4: #{mask_rcnn_forward.8} parent=0 // pred_region
    _
  $region5: #{mask_rcnn_forward.8} parent=0 // pred_fallthru
    _
  // Predicated region
  $region6: #{mask_rcnn_forward.8} parent=0 // pred_check
    _
  $region7: #{mask_rcnn_forward.8} parent=0 // pred_check_branch
    %17 = sbr.rel (0) target = $region9
  $region8: #{mask_rcnn_forward.8} parent=0 // pred_region
    _
  $region9: #{mask_rcnn_forward.8} parent=0 // pred_fallthru
    _
  // Predicated region
  $region10: #{mask_rcnn_forward.8} parent=0 // pred_check
    _
  $region11: #{mask_rcnn_forward.8} parent=0 // pred_check_branch
    %19 = sbr.rel (0) target = $region13
  $region12: #{mask_rcnn_forward.8} parent=0 // pred_region
    _
  $region13: #{mask_rcnn_forward.8} parent=0 // pred_fallthru
    _
  // Predicated region
  $region14: #{mask_rcnn_forward.8} parent=0 // pred_check
    _
  $region15: #{mask_rcnn_forward.8} parent=0 // pred_check_branch
    %21 = sbr.rel (0) target = $region17
  $region16: #{mask_rcnn_forward.8} parent=0 // pred_region
    _
  $region17: #{mask_rcnn_forward.8} parent=0 // pred_fallthru
    _
  // Predicated region
  $region18: #{mask_rcnn_forward.8} parent=0 // pred_check
    _
  $region19: #{mask_rcnn_forward.8} parent=0 // pred_check_branch
    %23 = sbr.rel (0) target = $region21
  $region20: #{mask_rcnn_forward.8} parent=0 // pred_region
    _
  $region21: #{mask_rcnn_forward.8} parent=0 // pred_fallthru
    _
  // Predicated region
  $region22: #{mask_rcnn_forward.8} parent=0 // pred_check
    _
  $region23: #{mask_rcnn_forward.8} parent=0 // pred_check_branch
    %25 = sbr.rel (0) target = $region25
  $region24: #{mask_rcnn_forward.8} parent=0 // pred_region
    _
  $region25: #{mask_rcnn_forward.8} parent=0 // pred_fallthru
    _
  // Predicated region
  $region26: #{mask_rcnn_forward.8} parent=0 // pred_check
    _
  $region27: #{mask_rcnn_forward.8} parent=0 // pred_check_branch
    %27 = sbr.rel (0) target = $region29
  $region28: #{mask_rcnn_forward.8} parent=0 // pred_region
    _
  $region29: #{mask_rcnn_forward.8} parent=0 // pred_fallthru
    _
  %v29 = vld [vmem:[%s0] sm:$0xff]
  %v30 = vld [vmem:[%s0 + $0x8] sm:$0xff]
  %v31 = vld [vmem:[%s0 + $0x10] sm:$0xff]
  %v32 = vld [vmem:[%s0 + $0x18] sm:$0xff]
  %v33 = vld [vmem:[%s0 + $0x20] sm:$0xff]
  %v34 = vld [vmem:[%s0 + $0x28] sm:$0xff]
  %v35 = vld [vmem:[%s0 + $0x30] sm:$0xff]
  %v36 = vld [vmem:[%s0 + $0x38] sm:$0xff]
  %v37 = vld [vmem:[%s1] sm:$0xf]
  %v38 = vld [vmem:[%s1 + $0x4] sm:$0xf]
  %v39 = vld [vmem:[%s1 + $0x8] sm:$0xf]
  %v40 = vld [vmem:[%s1 + $0xc] sm:$0xf]
  %v41 = vld [vmem:[%s1 + $0x10] sm:$0xf]
  %v42 = vld [vmem:[%s1 + $0x14] sm:$0xf]
  %v43 = vld [vmem:[%s1 + $0x18] sm:$0xf]
  %v44 = vld [vmem:[%s1 + $0x1c] sm:$0xf]
  %v45 = vld [vmem:[%s1 + $0x20] sm:$0xf]
  %v46 = vld [vmem:[%s1 + $0x24] sm:$0xf]
  %v47 = vld [vmem:[%s1 + $0x28] sm:$0xf]
  %v48 = vld [vmem:[%s1 + $0x2c] sm:$0xf]
  %v49 = vld [vmem:[%s1 + $0x30] sm:$0xf]
  %v50 = vld [vmem:[%s1 + $0x34] sm:$0xf]
  %v51 = vld [vmem:[%s1 + $0x38] sm:$0xf]
  %v52 = vld [vmem:[%s1 + $0x3c] sm:$0xf]
  %v53 = vld [vmem:[%s1 + $0x40] sm:$0xf]
  %v54 = vld [vmem:[%s1 + $0x44] sm:$0xf]
  %v55 = vld [vmem:[%s1 + $0x48] sm:$0xf]
  %v56 = vld [vmem:[%s1 + $0x4c] sm:$0xf]
  %v57 = vld [vmem:[%s1 + $0x50] sm:$0xf]
  %v58 = vld [vmem:[%s1 + $0x54] sm:$0xf]
  %v59 = vld [vmem:[%s1 + $0x58] sm:$0xf]
  %v60 = vld [vmem:[%s1 + $0x5c] sm:$0xf]
  %v61 = vld [vmem:[%s1 + $0x60] sm:$0xf]
  %v62 = vld [vmem:[%s1 + $0x64] sm:$0xf]
  %v63 = vld [vmem:[%s1 + $0x68] sm:$0xf]
  %v64 = vld [vmem:[%s1 + $0x6c] sm:$0xf]
  %v65 = vld [vmem:[%s1 + $0x70] sm:$0xf]
  %v66 = vld [vmem:[%s1 + $0x74] sm:$0xf]
  %v67 = vld [vmem:[%s1 + $0x78] sm:$0xf]
  %v68 = vld [vmem:[%s1 + $0x7c] sm:$0xf]
  %v69 = vld [vmem:[%s1 + $0x80] sm:$0xf]
  %v70 = vld [vmem:[%s1 + $0x84] sm:$0xf]
  %v71 = vld [vmem:[%s1 + $0x88] sm:$0xf]
  %v72 = vld [vmem:[%s1 + $0x8c] sm:$0xf]
  %v73 = vld [vmem:[%s1 + $0x90] sm:$0xf]
  %v74 = vld [vmem:[%s1 + $0x94] sm:$0xf]
  %v75 = vld [vmem:[%s1 + $0x98] sm:$0xf]
  %v76 = vld [vmem:[%s1 + $0x9c] sm:$0xf]
  %v77 = vld [vmem:[%s1 + $0xa0] sm:$0xf]
  %v78 = vld [vmem:[%s1 + $0xa4] sm:$0xf]
  %v79 = vld [vmem:[%s1 + $0xa8] sm:$0xf]
  %v80 = vld [vmem:[%s1 + $0xac] sm:$0xf]
  %v81 = vld [vmem:[%s1 + $0xb0] sm:$0xf]
  %v82 = vld [vmem:[%s1 + $0xb4] sm:$0xf]
  %v83 = vld [vmem:[%s1 + $0xb8] sm:$0xf]
  %v84 = vld [vmem:[%s1 + $0xbc] sm:$0xf]
  %v85 = vld [vmem:[%s1 + $0xc0] sm:$0xf]
  %v86 = vld [vmem:[%s1 + $0xc4] sm:$0xf]
  %v87 = vld [vmem:[%s1 + $0xc8] sm:$0xf]
  %v88 = vld [vmem:[%s1 + $0xcc] sm:$0xf]
  %v89 = vld [vmem:[%s1 + $0xd0] sm:$0xf]
  %v90 = vld [vmem:[%s1 + $0xd4] sm:$0xf]
  %v91 = vld [vmem:[%s1 + $0xd8] sm:$0xf]
  %v92 = vld [vmem:[%s1 + $0xdc] sm:$0xf]
  %v93 = vld [vmem:[%s1 + $0xe0] sm:$0xf]
  %v94 = vld [vmem:[%s1 + $0xe4] sm:$0xf]
  %v95 = vld [vmem:[%s1 + $0xe8] sm:$0xf]
  %v96 = vld [vmem:[%s1 + $0xec] sm:$0xf]
  %v97 = vld [vmem:[%s1 + $0xf0] sm:$0xf]
  %v98 = vld [vmem:[%s1 + $0xf4] sm:$0xf]
  %v99 = vld [vmem:[%s1 + $0xf8] sm:$0xf]
  %v100 = vld [vmem:[%s1 + $0xfc] sm:$0xf]
  %v101 = vld [vmem:[%s1 + $0x100] sm:$0xf]
  %v102 = vld [vmem:[%s1 + $0x104] sm:$0xf]
  %v103 = vld [vmem:[%s1 + $0x108] sm:$0xf]
  %v104 = vld [vmem:[%s1 + $0x10c] sm:$0xf]
  %v105 = vld [vmem:[%s1 + $0x110] sm:$0xf]
  %v106 = vld [vmem:[%s1 + $0x114] sm:$0xf]
  %v107 = vld [vmem:[%s1 + $0x118] sm:$0xf]
  %v108 = vld [vmem:[%s1 + $0x11c] sm:$0xf]
  %v109 = vld [vmem:[%s1 + $0x120] sm:$0xf]
  %v110 = vld [vmem:[%s1 + $0x124] sm:$0xf]
  %v111 = vld [vmem:[%s1 + $0x128] sm:$0xf]
  %v112 = vld [vmem:[%s1 + $0x12c] sm:$0xf]
  %v113 = vld [vmem:[%s1 + $0x130] sm:$0xf]
  %v114 = vld [vmem:[%s1 + $0x134] sm:$0xf]
  %v115 = vld [vmem:[%s1 + $0x138] sm:$0xf]
  %v116 = vld [vmem:[%s1 + $0x13c] sm:$0xf]
  %v117 = vld [vmem:[%s1 + $0x140] sm:$0xf]
  %v118 = vld [vmem:[%s1 + $0x144] sm:$0xf]
  %v119 = vld [vmem:[%s1 + $0x148] sm:$0xf]
  %v120 = vld [vmem:[%s1 + $0x14c] sm:$0xf]
  %v121 = vld [vmem:[%s1 + $0x150] sm:$0xf]
  %v122 = vld [vmem:[%s1 + $0x154] sm:$0xf]
  %v123 = vld [vmem:[%s1 + $0x158] sm:$0xf]
  %v124 = vld [vmem:[%s1 + $0x15c] sm:$0xf]
  %v125 = vld [vmem:[%s1 + $0x160] sm:$0xf]
  %v126 = vld [vmem:[%s1 + $0x164] sm:$0xf]
  %v127 = vld [vmem:[%s1 + $0x168] sm:$0xf]
  %v128 = vld [vmem:[%s1 + $0x16c] sm:$0xf]
  %v129 = vld [vmem:[%s1 + $0x170] sm:$0xf]
  %v130 = vld [vmem:[%s1 + $0x174] sm:$0xf]
  %v131 = vld [vmem:[%s1 + $0x178] sm:$0xf]
  %v132 = vld [vmem:[%s1 + $0x17c] sm:$0xf]
  %v133 = vld [vmem:[%s1 + $0x180] sm:$0xf]
  %v134 = vld [vmem:[%s1 + $0x184] sm:$0xf]
  %v135 = vld [vmem:[%s1 + $0x188] sm:$0xf]
  %v136 = vld [vmem:[%s1 + $0x18c] sm:$0xf]
  %v137 = vld [vmem:[%s1 + $0x190] sm:$0xf]
  %v138 = vld [vmem:[%s1 + $0x194] sm:$0xf]
  %v139 = vld [vmem:[%s1 + $0x198] sm:$0xf]
  %v140 = vld [vmem:[%s1 + $0x19c] sm:$0xf]
  %v141 = vld [vmem:[%s1 + $0x1a0] sm:$0xf]
  %v142 = vld [vmem:[%s1 + $0x1a4] sm:$0xf]
  %v143 = vld [vmem:[%s1 + $0x1a8] sm:$0xf]
  %v144 = vld [vmem:[%s1 + $0x1ac] sm:$0xf]
  %v145 = vld [vmem:[%s1 + $0x1b0] sm:$0xf]
  %v146 = vld [vmem:[%s1 + $0x1b4] sm:$0xf]
  %v147 = vld [vmem:[%s1 + $0x1b8] sm:$0xf]
  %v148 = vld [vmem:[%s1 + $0x1bc] sm:$0xf]
  %v149 = vld [vmem:[%s1 + $0x1c0] sm:$0xf]
  %v150 = vld [vmem:[%s1 + $0x1c4] sm:$0xf]
  %v151 = vld [vmem:[%s1 + $0x1c8] sm:$0xf]
  %v152 = vld [vmem:[%s1 + $0x1cc] sm:$0xf]
  %v153 = vld [vmem:[%s1 + $0x1d0] sm:$0xf]
  %v154 = vld [vmem:[%s1 + $0x1d4] sm:$0xf]
  %v155 = vld [vmem:[%s1 + $0x1d8] sm:$0xf]
  %v156 = vld [vmem:[%s1 + $0x1dc] sm:$0xf]
  %v157 = vld [vmem:[%s1 + $0x1e0] sm:$0xf]
  %v158 = vld [vmem:[%s1 + $0x1e4] sm:$0xf]
  %v159 = vld [vmem:[%s1 + $0x1e8] sm:$0xf]
  %v160 = vld [vmem:[%s1 + $0x1ec] sm:$0xf]
  %v161 = vld [vmem:[%s1 + $0x1f0] sm:$0xf]
  %v162 = vld [vmem:[%s1 + $0x1f4] sm:$0xf]
  %v163 = vld [vmem:[%s1 + $0x1f8] sm:$0xf]
  %v164 = vld [vmem:[%s1 + $0x1fc] sm:$0xf]
  %v165 = vld [vmem:[%s2] sm:$0x1]
  %v167 = vlaneseq
  %v168 = vshrl.u32 %v167, 7
  %v169 = vsub.s32 0, %v168
  %v170 = vrot.slane %v165, %v169
  %v180 = vunpack.c.l.b16 %v29
  %v181 = vunpack.c.h.b16 %v29
  %v182 = vunpack.c.l.b16 %v30
  %v183 = vunpack.c.h.b16 %v30
  %v184 = vunpack.c.l.b16 %v31
  %v185 = vunpack.c.h.b16 %v31
  %v186 = vunpack.c.l.b16 %v32
  %v187 = vunpack.c.h.b16 %v32
  %v188 = vunpack.c.l.b16 %v33
  %v189 = vunpack.c.h.b16 %v33
  %v190 = vunpack.c.l.b16 %v34
  %v191 = vunpack.c.h.b16 %v34
  %v192 = vunpack.c.l.b16 %v35
  %v193 = vunpack.c.h.b16 %v35
  %v194 = vunpack.c.l.b16 %v36
  %v195 = vunpack.c.h.b16 %v36
  %v196 = vpack.c.b16 %v188, %v180
  %v197 = vpack.c.b16 %v189, %v181
  %v198 = vpack.c.b16 %v190, %v182
  %v199 = vpack.c.b16 %v191, %v183
  %v200 = vpack.c.b16 %v192, %v184
  %v201 = vpack.c.b16 %v193, %v185
  %v202 = vpack.c.b16 %v194, %v186
  %v203 = vpack.c.b16 %v195, %v187
  %v340 = vunpack.c.l.b16 %v37
  %v341 = vunpack.c.l.b16 %v38
  %v342 = vunpack.c.l.b16 %v39
  %v343 = vunpack.c.l.b16 %v40
  %v344 = vunpack.c.l.b16 %v41
  %v345 = vunpack.c.l.b16 %v42
  %v346 = vunpack.c.l.b16 %v43
  %v347 = vunpack.c.l.b16 %v44
  %v348 = vunpack.c.l.b16 %v45
  %v349 = vunpack.c.l.b16 %v46
  %v350 = vunpack.c.l.b16 %v47
  %v351 = vunpack.c.l.b16 %v48
  %v352 = vunpack.c.l.b16 %v49
  %v353 = vunpack.c.l.b16 %v50
  %v354 = vunpack.c.l.b16 %v51
  %v355 = vunpack.c.l.b16 %v52
  %v356 = vunpack.c.l.b16 %v53
  %v357 = vunpack.c.l.b16 %v54
  %v358 = vunpack.c.l.b16 %v55
  %v359 = vunpack.c.l.b16 %v56
  %v360 = vunpack.c.l.b16 %v57
  %v361 = vunpack.c.l.b16 %v58
  %v362 = vunpack.c.l.b16 %v59
  %v363 = vunpack.c.l.b16 %v60
  %v364 = vunpack.c.l.b16 %v61
  %v365 = vunpack.c.l.b16 %v62
  %v366 = vunpack.c.l.b16 %v63
  %v367 = vunpack.c.l.b16 %v64
  %v368 = vunpack.c.l.b16 %v65
  %v369 = vunpack.c.l.b16 %v66
  %v370 = vunpack.c.l.b16 %v67
  %v371 = vunpack.c.l.b16 %v68
  %v372 = vunpack.c.l.b16 %v69
  %v373 = vunpack.c.l.b16 %v70
  %v374 = vunpack.c.l.b16 %v71
  %v375 = vunpack.c.l.b16 %v72
  %v376 = vunpack.c.l.b16 %v73
  %v377 = vunpack.c.l.b16 %v74
  %v378 = vunpack.c.l.b16 %v75
  %v379 = vunpack.c.l.b16 %v76
  %v380 = vunpack.c.l.b16 %v77
  %v381 = vunpack.c.l.b16 %v78
  %v382 = vunpack.c.l.b16 %v79
  %v383 = vunpack.c.l.b16 %v80
  %v384 = vunpack.c.l.b16 %v81
  %v385 = vunpack.c.l.b16 %v82
  %v386 = vunpack.c.l.b16 %v83
  %v387 = vunpack.c.l.b16 %v84
  %v388 = vunpack.c.l.b16 %v85
  %v389 = vunpack.c.l.b16 %v86
  %v390 = vunpack.c.l.b16 %v87
  %v391 = vunpack.c.l.b16 %v88
  %v392 = vunpack.c.l.b16 %v89
  %v393 = vunpack.c.l.b16 %v90
  %v394 = vunpack.c.l.b16 %v91
  %v395 = vunpack.c.l.b16 %v92
  %v396 = vunpack.c.l.b16 %v93
  %v397 = vunpack.c.l.b16 %v94
  %v398 = vunpack.c.l.b16 %v95
  %v399 = vunpack.c.l.b16 %v96
  %v400 = vunpack.c.l.b16 %v97
  %v401 = vunpack.c.l.b16 %v98
  %v402 = vunpack.c.l.b16 %v99
  %v403 = vunpack.c.l.b16 %v100
  %v404 = vunpack.c.l.b16 %v101
  %v405 = vunpack.c.l.b16 %v102
  %v406 = vunpack.c.l.b16 %v103
  %v407 = vunpack.c.l.b16 %v104
  %v408 = vunpack.c.l.b16 %v105
  %v409 = vunpack.c.l.b16 %v106
  %v410 = vunpack.c.l.b16 %v107
  %v411 = vunpack.c.l.b16 %v108
  %v412 = vunpack.c.l.b16 %v109
  %v413 = vunpack.c.l.b16 %v110
  %v414 = vunpack.c.l.b16 %v111
  %v415 = vunpack.c.l.b16 %v112
  %v416 = vunpack.c.l.b16 %v113
  %v417 = vunpack.c.l.b16 %v114
  %v418 = vunpack.c.l.b16 %v115
  %v419 = vunpack.c.l.b16 %v116
  %v420 = vunpack.c.l.b16 %v117
  %v421 = vunpack.c.l.b16 %v118
  %v422 = vunpack.c.l.b16 %v119
  %v423 = vunpack.c.l.b16 %v120
  %v424 = vunpack.c.l.b16 %v121
  %v425 = vunpack.c.l.b16 %v122
  %v426 = vunpack.c.l.b16 %v123
  %v427 = vunpack.c.l.b16 %v124
  %v428 = vunpack.c.l.b16 %v125
  %v429 = vunpack.c.l.b16 %v126
  %v430 = vunpack.c.l.b16 %v127
  %v431 = vunpack.c.l.b16 %v128
  %v432 = vunpack.c.l.b16 %v129
  %v433 = vunpack.c.l.b16 %v130
  %v434 = vunpack.c.l.b16 %v131
  %v435 = vunpack.c.l.b16 %v132
  %v436 = vunpack.c.l.b16 %v133
  %v437 = vunpack.c.l.b16 %v134
  %v438 = vunpack.c.l.b16 %v135
  %v439 = vunpack.c.l.b16 %v136
  %v440 = vunpack.c.l.b16 %v137
  %v441 = vunpack.c.l.b16 %v138
  %v442 = vunpack.c.l.b16 %v139
  %v443 = vunpack.c.l.b16 %v140
  %v444 = vunpack.c.l.b16 %v141
  %v445 = vunpack.c.l.b16 %v142
  %v446 = vunpack.c.l.b16 %v143
  %v447 = vunpack.c.l.b16 %v144
  %v448 = vunpack.c.l.b16 %v145
  %v449 = vunpack.c.l.b16 %v146
  %v450 = vunpack.c.l.b16 %v147
  %v451 = vunpack.c.l.b16 %v148
  %v452 = vunpack.c.l.b16 %v149
  %v453 = vunpack.c.l.b16 %v150
  %v454 = vunpack.c.l.b16 %v151
  %v455 = vunpack.c.l.b16 %v152
  %v456 = vunpack.c.l.b16 %v153
  %v457 = vunpack.c.l.b16 %v154
  %v458 = vunpack.c.l.b16 %v155
  %v459 = vunpack.c.l.b16 %v156
  %v460 = vunpack.c.l.b16 %v157
  %v461 = vunpack.c.l.b16 %v158
  %v462 = vunpack.c.l.b16 %v159
  %v463 = vunpack.c.l.b16 %v160
  %v464 = vunpack.c.l.b16 %v161
  %v465 = vunpack.c.l.b16 %v162
  %v466 = vunpack.c.l.b16 %v163
  %v467 = vunpack.c.l.b16 %v164
  %v468 = vpack.c.b16 %v341, %v340
  %v469 = vpack.c.b16 %v343, %v342
  %v470 = vpack.c.b16 %v345, %v344
  %v471 = vpack.c.b16 %v347, %v346
  %v472 = vpack.c.b16 %v349, %v348
  %v473 = vpack.c.b16 %v351, %v350
  %v474 = vpack.c.b16 %v353, %v352
  %v475 = vpack.c.b16 %v355, %v354
  %v476 = vpack.c.b16 %v357, %v356
  %v477 = vpack.c.b16 %v359, %v358
  %v478 = vpack.c.b16 %v361, %v360
  %v479 = vpack.c.b16 %v363, %v362
  %v480 = vpack.c.b16 %v365, %v364
  %v481 = vpack.c.b16 %v367, %v366
  %v482 = vpack.c.b16 %v369, %v368
  %v483 = vpack.c.b16 %v371, %v370
  %v484 = vpack.c.b16 %v373, %v372
  %v485 = vpack.c.b16 %v375, %v374
  %v486 = vpack.c.b16 %v377, %v376
  %v487 = vpack.c.b16 %v379, %v378
  %v488 = vpack.c.b16 %v381, %v380
  %v489 = vpack.c.b16 %v383, %v382
  %v490 = vpack.c.b16 %v385, %v384
  %v491 = vpack.c.b16 %v387, %v386
  %v492 = vpack.c.b16 %v389, %v388
  %v493 = vpack.c.b16 %v391, %v390
  %v494 = vpack.c.b16 %v393, %v392
  %v495 = vpack.c.b16 %v395, %v394
  %v496 = vpack.c.b16 %v397, %v396
  %v497 = vpack.c.b16 %v399, %v398
  %v498 = vpack.c.b16 %v401, %v400
  %v499 = vpack.c.b16 %v403, %v402
  %v500 = vpack.c.b16 %v405, %v404
  %v501 = vpack.c.b16 %v407, %v406
  %v502 = vpack.c.b16 %v409, %v408
  %v503 = vpack.c.b16 %v411, %v410
  %v504 = vpack.c.b16 %v413, %v412
  %v505 = vpack.c.b16 %v415, %v414
  %v506 = vpack.c.b16 %v417, %v416
  %v507 = vpack.c.b16 %v419, %v418
  %v508 = vpack.c.b16 %v421, %v420
  %v509 = vpack.c.b16 %v423, %v422
  %v510 = vpack.c.b16 %v425, %v424
  %v511 = vpack.c.b16 %v427, %v426
  %v512 = vpack.c.b16 %v429, %v428
  %v513 = vpack.c.b16 %v431, %v430
  %v514 = vpack.c.b16 %v433, %v432
  %v515 = vpack.c.b16 %v435, %v434
  %v516 = vpack.c.b16 %v437, %v436
  %v517 = vpack.c.b16 %v439, %v438
  %v518 = vpack.c.b16 %v441, %v440
  %v519 = vpack.c.b16 %v443, %v442
  %v520 = vpack.c.b16 %v445, %v444
  %v521 = vpack.c.b16 %v447, %v446
  %v522 = vpack.c.b16 %v449, %v448
  %v523 = vpack.c.b16 %v451, %v450
  %v524 = vpack.c.b16 %v453, %v452
  %v525 = vpack.c.b16 %v455, %v454
  %v526 = vpack.c.b16 %v457, %v456
  %v527 = vpack.c.b16 %v459, %v458
  %v528 = vpack.c.b16 %v461, %v460
  %v529 = vpack.c.b16 %v463, %v462
  %v530 = vpack.c.b16 %v465, %v464
  %v531 = vpack.c.b16 %v467, %v466
  %596 = vmatprep.subr.bf16.mxu0 0
  %597 = vmatpush1.bf16.msra.mxu0 %v475
  %598 = vmatprep.subr.bf16.mxu0 0
  %599 = vmatpush1.bf16.msra.mxu0 %v474
  %600 = vmatprep.subr.bf16.mxu0 0
  %601 = vmatpush1.bf16.msra.mxu0 %v473
  %602 = vmatprep.subr.bf16.mxu0 0
  %603 = vmatpush1.bf16.msra.mxu0 %v472
  %604 = vmatprep.subr.bf16.mxu0 0
  %605 = vmatpush1.bf16.msra.mxu0 %v471
  %606 = vmatprep.subr.bf16.mxu0 0
  %607 = vmatpush1.bf16.msra.mxu0 %v470
  %608 = vmatprep.subr.bf16.mxu0 0
  %609 = vmatpush1.bf16.msra.mxu0 %v469
  %610 = vmatprep.subr.bf16.mxu0 0
  %611 = vmatpush1.bf16.msra.mxu0 %v468
  %612 = vmatprep.subr.bf16.mxu0 0
  %613 = vmatpush2.bf16.msra.mxu0 %v483
  %614 = vmatprep.subr.bf16.mxu0 0
  %615 = vmatpush2.bf16.msra.mxu0 %v482
  %616 = vmatprep.subr.bf16.mxu0 0
  %617 = vmatpush2.bf16.msra.mxu0 %v481
  %618 = vmatprep.subr.bf16.mxu0 0
  %619 = vmatpush2.bf16.msra.mxu0 %v480
  %620 = vmatprep.subr.bf16.mxu0 0
  %621 = vmatpush2.bf16.msra.mxu0 %v479
  %622 = vmatprep.subr.bf16.mxu0 0
  %623 = vmatpush2.bf16.msra.mxu0 %v478
  %624 = vmatprep.subr.bf16.mxu0 0
  %625 = vmatpush2.bf16.msra.mxu0 %v477
  %626 = vmatprep.subr.bf16.mxu0 0
  %627 = vmatpush2.bf16.msra.mxu0 %v476
  %628 = vmatprep.mubr.bf16.mxu0 %v197
  %629 = vmatmul.mubr.bf16.gmra.mxu0 %v196
  %v630 = vpop.f32.mrf.mxu0
  %v631 = vadd.f32 %v170, %v630
  %v632 = vpop.f32.mrf.mxu0
  %v633 = vpop.f32.mrf.mxu0
  %v634 = vadd.f32 %v170, %v633
  %v635 = vpop.f32.mrf.mxu0
  %636 = vdwg.mxu0
  %637 = vmatprep.subr.bf16.mxu0 0
  %638 = vmatpush1.bf16.msra.mxu0 %v491
  %639 = vmatprep.subr.bf16.mxu0 0
  %640 = vmatpush1.bf16.msra.mxu0 %v490
  %641 = vmatprep.subr.bf16.mxu0 0
  %642 = vmatpush1.bf16.msra.mxu0 %v489
  %643 = vmatprep.subr.bf16.mxu0 0
  %644 = vmatpush1.bf16.msra.mxu0 %v488
  %645 = vmatprep.subr.bf16.mxu0 0
  %646 = vmatpush1.bf16.msra.mxu0 %v487
  %647 = vmatprep.subr.bf16.mxu0 0
  %648 = vmatpush1.bf16.msra.mxu0 %v486
  %649 = vmatprep.subr.bf16.mxu0 0
  %650 = vmatpush1.bf16.msra.mxu0 %v485
  %651 = vmatprep.subr.bf16.mxu0 0
  %652 = vmatpush1.bf16.msra.mxu0 %v484
  %653 = vmatprep.subr.bf16.mxu0 0
  %654 = vmatpush2.bf16.msra.mxu0 %v499
  %655 = vmatprep.subr.bf16.mxu0 0
  %656 = vmatpush2.bf16.msra.mxu0 %v498
  %657 = vmatprep.subr.bf16.mxu0 0
  %658 = vmatpush2.bf16.msra.mxu0 %v497
  %659 = vmatprep.subr.bf16.mxu0 0
  %660 = vmatpush2.bf16.msra.mxu0 %v496
  %661 = vmatprep.subr.bf16.mxu0 0
  %662 = vmatpush2.bf16.msra.mxu0 %v495
  %663 = vmatprep.subr.bf16.mxu0 0
  %664 = vmatpush2.bf16.msra.mxu0 %v494
  %665 = vmatprep.subr.bf16.mxu0 0
  %666 = vmatpush2.bf16.msra.mxu0 %v493
  %667 = vmatprep.subr.bf16.mxu0 0
  %668 = vmatpush2.bf16.msra.mxu0 %v492
  %669 = vmatprep.mubr.bf16.mxu0 %v199
  %670 = vmatmul.mubr.bf16.gmra.mxu0 %v198
  %v671 = vpop.f32.mrf.mxu0
  %v672 = vadd.f32 %v631, %v671
  %v673 = vpop.f32.mrf.mxu0
  %v674 = vpop.f32.mrf.mxu0
  %v675 = vadd.f32 %v634, %v674
  %v676 = vpop.f32.mrf.mxu0
  %677 = vdwg.mxu0
  %678 = vmatprep.subr.bf16.mxu0 0
  %679 = vmatpush1.bf16.msra.mxu0 %v507
  %680 = vmatprep.subr.bf16.mxu0 0
  %681 = vmatpush1.bf16.msra.mxu0 %v506
  %682 = vmatprep.subr.bf16.mxu0 0
  %683 = vmatpush1.bf16.msra.mxu0 %v505
  %684 = vmatprep.subr.bf16.mxu0 0
  %685 = vmatpush1.bf16.msra.mxu0 %v504
  %686 = vmatprep.subr.bf16.mxu0 0
  %687 = vmatpush1.bf16.msra.mxu0 %v503
  %688 = vmatprep.subr.bf16.mxu0 0
  %689 = vmatpush1.bf16.msra.mxu0 %v502
  %690 = vmatprep.subr.bf16.mxu0 0
  %691 = vmatpush1.bf16.msra.mxu0 %v501
  %692 = vmatprep.subr.bf16.mxu0 0
  %693 = vmatpush1.bf16.msra.mxu0 %v500
  %694 = vmatprep.subr.bf16.mxu0 0
  %695 = vmatpush2.bf16.msra.mxu0 %v515
  %696 = vmatprep.subr.bf16.mxu0 0
  %697 = vmatpush2.bf16.msra.mxu0 %v514
  %698 = vmatprep.subr.bf16.mxu0 0
  %699 = vmatpush2.bf16.msra.mxu0 %v513
  %700 = vmatprep.subr.bf16.mxu0 0
  %701 = vmatpush2.bf16.msra.mxu0 %v512
  %702 = vmatprep.subr.bf16.mxu0 0
  %703 = vmatpush2.bf16.msra.mxu0 %v511
  %704 = vmatprep.subr.bf16.mxu0 0
  %705 = vmatpush2.bf16.msra.mxu0 %v510
  %706 = vmatprep.subr.bf16.mxu0 0
  %707 = vmatpush2.bf16.msra.mxu0 %v509
  %708 = vmatprep.subr.bf16.mxu0 0
  %709 = vmatpush2.bf16.msra.mxu0 %v508
  %710 = vmatprep.mubr.bf16.mxu0 %v201
  %711 = vmatmul.mubr.bf16.gmra.mxu0 %v200
  %v712 = vpop.f32.mrf.mxu0
  %v713 = vadd.f32 %v672, %v712
  %v714 = vpop.f32.mrf.mxu0
  %v715 = vpop.f32.mrf.mxu0
  %v716 = vadd.f32 %v675, %v715
  %v717 = vpop.f32.mrf.mxu0
  %718 = vdwg.mxu0
  %719 = vmatprep.subr.bf16.mxu0 0
  %720 = vmatpush1.bf16.msra.mxu0 %v523
  %721 = vmatprep.subr.bf16.mxu0 0
  %722 = vmatpush1.bf16.msra.mxu0 %v522
  %723 = vmatprep.subr.bf16.mxu0 0
  %724 = vmatpush1.bf16.msra.mxu0 %v521
  %725 = vmatprep.subr.bf16.mxu0 0
  %726 = vmatpush1.bf16.msra.mxu0 %v520
  %727 = vmatprep.subr.bf16.mxu0 0
  %728 = vmatpush1.bf16.msra.mxu0 %v519
  %729 = vmatprep.subr.bf16.mxu0 0
  %730 = vmatpush1.bf16.msra.mxu0 %v518
  %731 = vmatprep.subr.bf16.mxu0 0
  %732 = vmatpush1.bf16.msra.mxu0 %v517
  %733 = vmatprep.subr.bf16.mxu0 0
  %734 = vmatpush1.bf16.msra.mxu0 %v516
  %735 = vmatprep.subr.bf16.mxu0 0
  %736 = vmatpush2.bf16.msra.mxu0 %v531
  %737 = vmatprep.subr.bf16.mxu0 0
  %738 = vmatpush2.bf16.msra.mxu0 %v530
  %739 = vmatprep.subr.bf16.mxu0 0
  %740 = vmatpush2.bf16.msra.mxu0 %v529
  %741 = vmatprep.subr.bf16.mxu0 0
  %742 = vmatpush2.bf16.msra.mxu0 %v528
  %743 = vmatprep.subr.bf16.mxu0 0
  %744 = vmatpush2.bf16.msra.mxu0 %v527
  %745 = vmatprep.subr.bf16.mxu0 0
  %746 = vmatpush2.bf16.msra.mxu0 %v526
  %747 = vmatprep.subr.bf16.mxu0 0
  %748 = vmatpush2.bf16.msra.mxu0 %v525
  %749 = vmatprep.subr.bf16.mxu0 0
  %750 = vmatpush2.bf16.msra.mxu0 %v524
  %751 = vmatprep.mubr.bf16.mxu0 %v203
  %752 = vmatmul.mubr.bf16.gmra.mxu0 %v202
  %v753 = vpop.f32.mrf.mxu0
  %v754 = vadd.f32 %v713, %v753
  %v755 = vpop.f32.mrf.mxu0
  %v756 = vpop.f32.mrf.mxu0
  %v757 = vadd.f32 %v716, %v756
  %v758 = vpop.f32.mrf.mxu0
  %759 = vdwg.mxu0
  %v760 = vmax.f32 %v754, 0.0
  %v761 = vmax.f32 %v757, 0.0
  %v762 = vpack.c.bf16 %v761, %v760
  %v763 = vld [vmem:[%s3] sm:$0xf]
  %v764 = vld [vmem:[%s3 + $0x4] sm:$0xf]
  %v765 = vld [vmem:[%s3 + $0x8] sm:$0xf]
  %v766 = vld [vmem:[%s3 + $0xc] sm:$0xf]
  %v767 = vld [vmem:[%s3 + $0x10] sm:$0xf]
  %v768 = vld [vmem:[%s3 + $0x14] sm:$0xf]
  %v769 = vld [vmem:[%s3 + $0x18] sm:$0xf]
  %v770 = vld [vmem:[%s3 + $0x1c] sm:$0xf]
  %v771 = vld [vmem:[%s3 + $0x20] sm:$0xf]
  %v772 = vld [vmem:[%s3 + $0x24] sm:$0xf]
  %v773 = vld [vmem:[%s3 + $0x28] sm:$0xf]
  %v774 = vld [vmem:[%s3 + $0x2c] sm:$0xf]
  %v775 = vld [vmem:[%s3 + $0x30] sm:$0xf]
  %v776 = vld [vmem:[%s3 + $0x34] sm:$0xf]
  %v777 = vld [vmem:[%s3 + $0x38] sm:$0xf]
  %v778 = vld [vmem:[%s3 + $0x3c] sm:$0xf]
  %v779 = vld [vmem:[%s4] sm:$0x1]
  %v781 = vlaneseq
  %v782 = vshrl.u32 %v781, 7
  %v783 = vsub.s32 0, %v782
  %v784 = vrot.slane %v779, %v783
  %v802 = vunpack.c.l.b16 %v763
  %v803 = vunpack.c.l.b16 %v764
  %v804 = vunpack.c.l.b16 %v765
  %v805 = vunpack.c.l.b16 %v766
  %v806 = vunpack.c.l.b16 %v767
  %v807 = vunpack.c.l.b16 %v768
  %v808 = vunpack.c.l.b16 %v769
  %v809 = vunpack.c.l.b16 %v770
  %v810 = vunpack.c.l.b16 %v771
  %v811 = vunpack.c.l.b16 %v772
  %v812 = vunpack.c.l.b16 %v773
  %v813 = vunpack.c.l.b16 %v774
  %v814 = vunpack.c.l.b16 %v775
  %v815 = vunpack.c.l.b16 %v776
  %v816 = vunpack.c.l.b16 %v777
  %v817 = vunpack.c.l.b16 %v778
  %v818 = vpack.c.b16 %v803, %v802
  %v819 = vpack.c.b16 %v805, %v804
  %v820 = vpack.c.b16 %v807, %v806
  %v821 = vpack.c.b16 %v809, %v808
  %v822 = vpack.c.b16 %v811, %v810
  %v823 = vpack.c.b16 %v813, %v812
  %v824 = vpack.c.b16 %v815, %v814
  %v825 = vpack.c.b16 %v817, %v816
  %834 = vmatprep.subr.bf16.mxu0 0
  %835 = vmatpush1.bf16.msra.mxu0 %v825
  %836 = vmatprep.subr.bf16.mxu0 0
  %837 = vmatpush1.bf16.msra.mxu0 %v824
  %838 = vmatprep.subr.bf16.mxu0 0
  %839 = vmatpush1.bf16.msra.mxu0 %v823
  %840 = vmatprep.subr.bf16.mxu0 0
  %841 = vmatpush1.bf16.msra.mxu0 %v822
  %842 = vmatprep.subr.bf16.mxu0 0
  %843 = vmatpush1.bf16.msra.mxu0 %v821
  %844 = vmatprep.subr.bf16.mxu0 0
  %845 = vmatpush1.bf16.msra.mxu0 %v820
  %846 = vmatprep.subr.bf16.mxu0 0
  %847 = vmatpush1.bf16.msra.mxu0 %v819
  %848 = vmatprep.subr.bf16.mxu0 0
  %849 = vmatpush1.bf16.msra.mxu0 %v818
  %850 = vmatprep.subr.bf16.mxu0 0
  %851 = vmatpush2.bf16.msra.mxu0 0
  %852 = vmatprep.subr.bf16.mxu0 0
  %853 = vmatpush2.bf16.msra.mxu0 0
  %854 = vmatprep.subr.bf16.mxu0 0
  %855 = vmatpush2.bf16.msra.mxu0 0
  %856 = vmatprep.subr.bf16.mxu0 0
  %857 = vmatpush2.bf16.msra.mxu0 0
  %858 = vmatprep.subr.bf16.mxu0 0
  %859 = vmatpush2.bf16.msra.mxu0 0
  %860 = vmatprep.subr.bf16.mxu0 0
  %861 = vmatpush2.bf16.msra.mxu0 0
  %862 = vmatprep.subr.bf16.mxu0 0
  %863 = vmatpush2.bf16.msra.mxu0 0
  %864 = vmatprep.subr.bf16.mxu0 0
  %865 = vmatpush2.bf16.msra.mxu0 0
  %866 = vmatprep.mubr.bf16.mxu0 0
  %867 = vmatmul.mubr.bf16.gmra.mxu0 %v762
  %v868 = vpop.f32.mrf.mxu0
  %v869 = vadd.f32 %v784, %v868
  %v870 = vpop.f32.mrf.mxu0
  %v871 = vpop.f32.mrf.mxu0
  %v872 = vadd.f32 %v784, %v871
  %v873 = vpop.f32.mrf.mxu0
  %874 = vdwg.mxu0
  %v875 = vmax.f32 %v869, 0.0
  %v876 = vmax.f32 %v872, 0.0
  %v877 = vpack.c.bf16 %v876, %v875
  %v878 = vld [vmem:[%s5] sm:$0xf]
  %v879 = vld [vmem:[%s5 + $0x4] sm:$0xf]
  %v880 = vld [vmem:[%s5 + $0x8] sm:$0xf]
  %v881 = vld [vmem:[%s5 + $0xc] sm:$0xf]
  %v882 = vld [vmem:[%s5 + $0x10] sm:$0xf]
  %v883 = vld [vmem:[%s5 + $0x14] sm:$0xf]
  %v884 = vld [vmem:[%s5 + $0x18] sm:$0xf]
  %v885 = vld [vmem:[%s5 + $0x1c] sm:$0xf]
  %v886 = vld [vmem:[%s5 + $0x20] sm:$0xf]
  %v887 = vld [vmem:[%s5 + $0x24] sm:$0xf]
  %v888 = vld [vmem:[%s5 + $0x28] sm:$0xf]
  %v889 = vld [vmem:[%s5 + $0x2c] sm:$0xf]
  %v890 = vld [vmem:[%s5 + $0x30] sm:$0xf]
  %v891 = vld [vmem:[%s5 + $0x34] sm:$0xf]
  %v892 = vld [vmem:[%s5 + $0x38] sm:$0xf]
  %v893 = vld [vmem:[%s5 + $0x3c] sm:$0xf]
  %v894 = vld [vmem:[%s6] sm:$0x1]
  %v896 = vlaneseq
  %v897 = vshrl.u32 %v896, 7
  %v898 = vsub.s32 0, %v897
  %v899 = vrot.slane %v894, %v898
  %v917 = vunpack.c.l.b16 %v878
  %v918 = vunpack.c.l.b16 %v879
  %v919 = vunpack.c.l.b16 %v880
  %v920 = vunpack.c.l.b16 %v881
  %v921 = vunpack.c.l.b16 %v882
  %v922 = vunpack.c.l.b16 %v883
  %v923 = vunpack.c.l.b16 %v884
  %v924 = vunpack.c.l.b16 %v885
  %v925 = vunpack.c.l.b16 %v886
  %v926 = vunpack.c.l.b16 %v887
  %v927 = vunpack.c.l.b16 %v888
  %v928 = vunpack.c.l.b16 %v889
  %v929 = vunpack.c.l.b16 %v890
  %v930 = vunpack.c.l.b16 %v891
  %v931 = vunpack.c.l.b16 %v892
  %v932 = vunpack.c.l.b16 %v893
  %v933 = vpack.c.b16 %v918, %v917
  %v934 = vpack.c.b16 %v920, %v919
  %v935 = vpack.c.b16 %v922, %v921
  %v936 = vpack.c.b16 %v924, %v923
  %v937 = vpack.c.b16 %v926, %v925
  %v938 = vpack.c.b16 %v928, %v927
  %v939 = vpack.c.b16 %v930, %v929
  %v940 = vpack.c.b16 %v932, %v931
  %949 = vmatprep.subr.bf16.mxu0 0
  %950 = vmatpush1.bf16.msra.mxu0 %v940
  %951 = vmatprep.subr.bf16.mxu0 0
  %952 = vmatpush1.bf16.msra.mxu0 %v939
  %953 = vmatprep.subr.bf16.mxu0 0
  %954 = vmatpush1.bf16.msra.mxu0 %v938
  %955 = vmatprep.subr.bf16.mxu0 0
  %956 = vmatpush1.bf16.msra.mxu0 %v937
  %957 = vmatprep.subr.bf16.mxu0 0
  %958 = vmatpush1.bf16.msra.mxu0 %v936
  %959 = vmatprep.subr.bf16.mxu0 0
  %960 = vmatpush1.bf16.msra.mxu0 %v935
  %961 = vmatprep.subr.bf16.mxu0 0
  %962 = vmatpush1.bf16.msra.mxu0 %v934
  %963 = vmatprep.subr.bf16.mxu0 0
  %964 = vmatpush1.bf16.msra.mxu0 %v933
  %965 = vmatprep.subr.bf16.mxu0 0
  %966 = vmatpush2.bf16.msra.mxu0 0
  %967 = vmatprep.subr.bf16.mxu0 0
  %968 = vmatpush2.bf16.msra.mxu0 0
  %969 = vmatprep.subr.bf16.mxu0 0
  %970 = vmatpush2.bf16.msra.mxu0 0
  %971 = vmatprep.subr.bf16.mxu0 0
  %972 = vmatpush2.bf16.msra.mxu0 0
  %973 = vmatprep.subr.bf16.mxu0 0
  %974 = vmatpush2.bf16.msra.mxu0 0
  %975 = vmatprep.subr.bf16.mxu0 0
  %976 = vmatpush2.bf16.msra.mxu0 0
  %977 = vmatprep.subr.bf16.mxu0 0
  %978 = vmatpush2.bf16.msra.mxu0 0
  %979 = vmatprep.subr.bf16.mxu0 0
  %980 = vmatpush2.bf16.msra.mxu0 0
  %981 = vmatprep.mubr.bf16.mxu0 0
  %982 = vmatmul.mubr.bf16.gmra.mxu0 %v877
  %v983 = vpop.f32.mrf.mxu0
  %v984 = vadd.f32 %v899, %v983
  %v985 = vpop.f32.mrf.mxu0
  %v986 = vpop.f32.mrf.mxu0
  %v987 = vadd.f32 %v899, %v986
  %v988 = vpop.f32.mrf.mxu0
  %989 = vdwg.mxu0
  %990 = vst [vmem:[%s7] sm:$0xff] %v984
  %991 = vst [vmem:[%s7 + $0x8] sm:$0xff] %v987
  %v992 = vlaneseq
  %v993 = vand.u32 %v992, 127
  %vm994 = vcmp.lt.s32.totalorder %v993, 5
  %v995 = vsel %vm994, %v984, -1e+30
  %v996 = vsel %vm994, %v987, -1e+30
  %997 = vmax.xlane.f32.xlu0 %v995
  %v998 = vpop.xlane.xlu0 %997
  %999 = vmax.xlane.f32.xlu0 %v996
  %v1000 = vpop.xlane.xlu0 %999
  %v1001 = vsub.f32 %v995, %v998
  %v1002 = vsub.f32 %v996, %v1000
  %v1003 = vmul.f32 %v1001, 1.442695
  %v1004 = vpow.pop %v1003
  %v1005 = vmul.f32 %v1002, 1.442695
  %v1006 = vpow.pop %v1005
  %v1007 = vsel %vm994, %v1004, 0.0
  %v1008 = vsel %vm994, %v1006, 0.0
  %1009 = vadd.xlane.f32.xlu0 %v1007
  %v1010 = vpop.xlane.xlu0 %1009
  %1011 = vadd.xlane.f32.xlu0 %v1008
  %v1012 = vpop.xlane.xlu0 %1011
  %v1013 = vrcp.pop %v1010
  %v1014 = vmul.f32 %v1007, %v1013
  %v1015 = vrcp.pop %v1012
  %v1016 = vmul.f32 %v1008, %v1015
  %1017 = vst [vmem:[%s8] sm:$0xff] %v1014
  %1018 = vst [vmem:[%s8 + $0x8] sm:$0xff] %v1016
  // Predicated region
  $region30: #{mask_rcnn_forward.8} parent=0 // pred_check
    _
  $region31: #{mask_rcnn_forward.8} parent=0 // pred_check_branch
    %1020 = sbr.rel (0) target = $region33
  $region32: #{mask_rcnn_forward.8} parent=0 // pred_region
    _
  $region33: #{mask_rcnn_forward.8} parent=0 // pred_fallthru
    _
  // Predicated region
  $region34: #{mask_rcnn_forward.8} parent=0 // pred_check
    _
  $region35: #{mask_rcnn_forward.8} parent=0 // pred_check_branch
    %1022 = sbr.rel (0) target = $region37
  $region36: #{mask_rcnn_forward.8} parent=0 // pred_region
    _
  $region37: #{mask_rcnn_forward.8} parent=0 // pred_fallthru
    _
  // Predicated region
  $region38: #{mask_rcnn_forward.8} parent=0 // pred_check
    _
  $region39: #{mask_rcnn_forward.8} parent=0 // pred_check_branch
    %1024 = sbr.rel (0) target = $region41
  $region40: #{mask_rcnn_forward.8} parent=0 // pred_region
    _
  $region41: #{mask_rcnn_forward.8} parent=0 // pred_fallthru
    _
  // Predicated region
  $region42: #{mask_rcnn_forward.8} parent=0 // pred_check
    _
  $region43: #{mask_rcnn_forward.8} parent=0 // pred_check_branch
    %1026 = sbr.rel (0) target = $region45
  $region44: #{mask_rcnn_forward.8} parent=0 // pred_region
    _
  $region45: #{mask_rcnn_forward.8} parent=0 // pred_fallthru
    _

// kernel: mask_rcnn_forward.9
$region0: #{mask_rcnn_forward.9}
  #allocation0 [shape = 'u32[]', space=smem, size = 0x4, offset = 0x4, fixed_abs, tag = 'smem constant byte address 0x4 - core index']
  #allocation1 [shape = 'u32[144,128]{1,0:T(1,128)}', space=vmem, size = 0x12000, scoped, tag = 'internal scratch']
  #allocation2 [shape = 'f32[64,128]{1,0:T(8,128)}', space=vmem, size = 0x8000, scoped, tag = 'scratch operand']
  %s0 = inlined_call_operand.vmem [shape: bf16[128,1152], index: 0, kind: input, shape index: {}]
  %s1 = inlined_call_operand.vmem [shape: bf16[1152,128], index: 1, kind: input, shape index: {}]
  %s2 = inlined_call_operand.vmem [shape: f32[1,128], index: 2, kind: input, shape index: {}]
  %s3 = inlined_call_operand.vmem [shape: bf16[128,128], index: 3, kind: output, shape index: {}]
  %s4 = sld [smem:[#allocation0]]
  $region53: #{mask_rcnn_forward.9} parent=0
    _
  %s6 = ssub.s32 1, %s4
  %s7 = scalar_select 0, %s6, %s4
  loop: start=0, step=1, limit=4
  $region2: #{mask_rcnn_forward.9} parent=0 // loop_pre_header
    _
  $region3: #{mask_rcnn_forward.9} parent=0 // loop_header
    %s9 = sphi 0, %s13
    %p10 = scmp.ge.s32.totalorder %s9, 4
    %s16 = sphi 0, %s35
    %s17 = sphi 0, %s31
    %s18 = sphi 0, %s27
    %s19 = sphi 0, %s16
    %s20 = sphi 0, %s17
    %s21 = sphi 0, %s18
    %s22 = sphi 0, %s19
    %s23 = sphi 0, %s20
    %s24 = sphi 0, %s21
    %s40 = sphi 0, %s42
    %s43 = sphi 0, %s40
    %s44 = sphi 0, %s43
    %s60 = sphi 0, %s44
    %s68 = sphi 0, %s70
    %s71 = sphi 0, %s68
    %s72 = sphi 0, %s71
    %s88 = sphi 0, %s72
    %s94 = sphi 0, %s96
    %s97 = sphi 0, %s94
    %s98 = sphi 0, %s97
    %s114 = sphi 0, %s98
    %s122 = sphi 0, %s124
    %s125 = sphi 0, %s122
    %s126 = sphi 0, %s125
    %s142 = sphi 0, %s126
  $region4: #{mask_rcnn_forward.9} parent=0 // loop_header_branch
    %12 = sbr.rel (%p10) target = $region8
  $region5: #{mask_rcnn_forward.9} parent=0 // loop_body
    %s14 = ssub.s32 %s9, 1
    %s15 = ssub.s32 %s9, 2
    %s25 = sadd.s32 1, %s18
    %p26 = scmp.ge.s32.totalorder %s25, 1
    %s27 = scalar_select %p26, 0, %s25
    %s28 = sadd.s32 1, %s17
    %s29 = scalar_select %p26, %s28, %s17
    %p30 = scmp.ge.s32.totalorder %s29, 1
    %s31 = scalar_select %p30, 0, %s29
    %s32 = sadd.s32 1, %s16
    %s33 = scalar_select %p30, %s32, %s16
    %p34 = scmp.ge.s32.totalorder %s33, 2
    %s35 = scalar_select %p34, 0, %s33
    %s36 = ssub.s32 %s16, %s35
    %s37 = ssub.s32 %s18, %s27
    %s38 = sor.u32 %s36, %s37
    %p39 = scmp.eq.s32.totalorder %s38, 0
    %s41 = sadd.s32 %s40, 1
    %s42 = scalar_select %p39, %s40, %s41
    %p45 = pneg %p39
    %p46 = scmp.eq.s32.totalorder %s9, 1
    %p47 = por %p45, %p46
    %p48 = scmp.ne.s32.totalorder %s40, %s43
    %p49 = scmp.eq.s32.totalorder %s9, 0
    %p50 = por %p48, %p49
    %p51 = scmp.ne.s32.totalorder %s40, %s43
    %p52 = scmp.eq.s32.totalorder %s14, 1
    %p53 = por %p51, %p52
    %p54 = scmp.ne.s32.totalorder %s43, %s44
    %p55 = scmp.eq.s32.totalorder %s14, 0
    %p56 = por %p54, %p55
    %p57 = scmp.ne.s32.totalorder %s43, %s44
    %p58 = scmp.eq.s32.totalorder %s15, 1
    %p59 = por %p57, %p58
    %p61 = scmp.ne.s32.totalorder %s44, %s60
    %p62 = scmp.eq.s32.totalorder %s15, 0
    %p63 = por %p61, %p62
    %s64 = ssub.s32 %s18, %s27
    %s65 = ssub.s32 %s17, %s31
    %s66 = sor.u32 %s64, %s65
    %p67 = scmp.eq.s32.totalorder %s66, 0
    %s69 = sadd.s32 %s68, 1
    %s70 = scalar_select %p67, %s68, %s69
    %p73 = pneg %p67
    %p74 = scmp.eq.s32.totalorder %s9, 1
    %p75 = por %p73, %p74
    %p76 = scmp.ne.s32.totalorder %s68, %s71
    %p77 = scmp.eq.s32.totalorder %s9, 0
    %p78 = por %p76, %p77
    %p79 = scmp.ne.s32.totalorder %s68, %s71
    %p80 = scmp.eq.s32.totalorder %s14, 1
    %p81 = por %p79, %p80
    %p82 = scmp.ne.s32.totalorder %s71, %s72
    %p83 = scmp.eq.s32.totalorder %s14, 0
    %p84 = por %p82, %p83
    %p85 = scmp.ne.s32.totalorder %s71, %s72
    %p86 = scmp.eq.s32.totalorder %s15, 1
    %p87 = por %p85, %p86
    %p89 = scmp.ne.s32.totalorder %s72, %s88
    %p90 = scmp.eq.s32.totalorder %s15, 0
    %p91 = por %p89, %p90
    %s92 = ssub.s32 %s17, %s31
    %p93 = scmp.eq.s32.totalorder %s92, 0
    %s95 = sadd.s32 %s94, 1
    %s96 = scalar_select %p93, %s94, %s95
    %p99 = pneg %p93
    %p100 = scmp.eq.s32.totalorder %s9, 1
    %p101 = por %p99, %p100
    %p102 = scmp.ne.s32.totalorder %s94, %s97
    %p103 = scmp.eq.s32.totalorder %s9, 0
    %p104 = por %p102, %p103
    %p105 = scmp.ne.s32.totalorder %s94, %s97
    %p106 = scmp.eq.s32.totalorder %s14, 1
    %p107 = por %p105, %p106
    %p108 = scmp.ne.s32.totalorder %s97, %s98
    %p109 = scmp.eq.s32.totalorder %s14, 0
    %p110 = por %p108, %p109
    %p111 = scmp.ne.s32.totalorder %s97, %s98
    %p112 = scmp.eq.s32.totalorder %s15, 1
    %p113 = por %p111, %p112
    %p115 = scmp.ne.s32.totalorder %s98, %s114
    %p116 = scmp.eq.s32.totalorder %s15, 0
    %p117 = por %p115, %p116
    %s118 = ssub.s32 %s16, %s35
    %s119 = ssub.s32 %s17, %s31
    %s120 = sor.u32 %s118, %s119
    %p121 = scmp.eq.s32.totalorder %s120, 0
    %s123 = sadd.s32 %s122, 1
    %s124 = scalar_select %p121, %s122, %s123
    %p127 = pneg %p121
    %p128 = scmp.eq.s32.totalorder %s9, 1
    %p129 = por %p127, %p128
    %p130 = scmp.ne.s32.totalorder %s122, %s125
    %p131 = scmp.eq.s32.totalorder %s9, 0
    %p132 = por %p130, %p131
    %p133 = scmp.ne.s32.totalorder %s122, %s125
    %p134 = scmp.eq.s32.totalorder %s14, 1
    %p135 = por %p133, %p134
    %p136 = scmp.ne.s32.totalorder %s125, %s126
    %p137 = scmp.eq.s32.totalorder %s14, 0
    %p138 = por %p136, %p137
    %p139 = scmp.ne.s32.totalorder %s125, %s126
    %p140 = scmp.eq.s32.totalorder %s15, 1
    %p141 = por %p139, %p140
    %p143 = scmp.ne.s32.totalorder %s126, %s142
    %p144 = scmp.eq.s32.totalorder %s15, 0
    %p145 = por %p143, %p144
    %p146 = scmp.le.s32.totalorder 1, %s9
    %p147 = scmp.lt.s32.totalorder %s9, 3
    %p148 = pnand %p146, %p147
    %p149 = pneg %p148
    // Predicated region
    $region9: #{mask_rcnn_forward.9} parent=5 // pred_check
      _
    $region10: #{mask_rcnn_forward.9} parent=5 // pred_check_branch
      %151 = sbr.rel (%p148) target = $region12
    $region11: #{mask_rcnn_forward.9} parent=5 // pred_region
      %s152 = ssub.s32 %s9, 1
      // Predicated region
      $region13: #{mask_rcnn_forward.9} parent=11 // pred_check
        %p153 = pneg %p84
      $region14: #{mask_rcnn_forward.9} parent=11 // pred_check_branch
        %155 = sbr.rel (%p153) target = $region16
      $region15: #{mask_rcnn_forward.9} parent=11 // pred_region
        %s156 = smul.u32 144, %s21
        %p157 = scmp.lt.s32.totalorder %s156, 143
        %s158 = scalar_select %p157, %s156, 143
        %p159 = scmp.lt.s32.totalorder %s20, 0
        %s160 = scalar_select %p159, %s20, 0
        %s161 = sadd.s32 %s160, %s158
        %s162 = smul.addr %s161, 4
        %s163 = scalar_lea.vmem %s1, %s162
        %s164 = smul.u32 144, %s21
      $region16: #{mask_rcnn_forward.9} parent=11 // pred_fallthru
        _
      // Predicated region
      $region17: #{mask_rcnn_forward.9} parent=11 // pred_check
        %p165 = pneg %p110
      $region18: #{mask_rcnn_forward.9} parent=11 // pred_check_branch
        %167 = sbr.rel (%p165) target = $region20
      $region19: #{mask_rcnn_forward.9} parent=11 // pred_region
        %p168 = scmp.lt.s32.totalorder %s20, 0
        %s169 = scalar_select %p168, %s20, 0
        %s170 = scalar_lea.vmem %s2, %s169
      $region20: #{mask_rcnn_forward.9} parent=11 // pred_fallthru
        _
    $region12: #{mask_rcnn_forward.9} parent=5 // pred_fallthru
      _
    %p171 = scmp.lt.s32.totalorder %s9, 2
    // Predicated region
    $region21: #{mask_rcnn_forward.9} parent=5 // pred_check
      %p172 = pneg %p171
    $region22: #{mask_rcnn_forward.9} parent=5 // pred_check_branch
      %174 = sbr.rel (%p172) target = $region24
    $region23: #{mask_rcnn_forward.9} parent=5 // pred_region
      // Predicated region
      $region25: #{mask_rcnn_forward.9} parent=23 // pred_check
        %p175 = pneg %p50
      $region26: #{mask_rcnn_forward.9} parent=23 // pred_check_branch
        %177 = sbr.rel (%p175) target = $region28
      $region27: #{mask_rcnn_forward.9} parent=23 // pred_region
        %s178 = smul.u32 8, %s16
        %s179 = smul.u32 9, %s18
        %p180 = scmp.lt.s32.totalorder %s178, 15
        %s181 = scalar_select %p180, %s178, 15
        %p182 = scmp.lt.s32.totalorder %s179, 8
        %s183 = scalar_select %p182, %s179, 8
        %s184 = smul.addr %s181, 9
        %s185 = sadd.s32 %s183, %s184
        %s186 = smul.addr %s185, 4
        %s187 = scalar_lea.vmem %s0, %s186
        %s188 = smul.u32 8, %s16
        %s189 = smul.u32 9, %s18
      $region28: #{mask_rcnn_forward.9} parent=23 // pred_fallthru
        _
    $region24: #{mask_rcnn_forward.9} parent=5 // pred_fallthru
      _
    %p190 = scmp.le.s32.totalorder 1, %s9
    %p191 = scmp.lt.s32.totalorder %s9, 3
    %p192 = pnand %p190, %p191
    %p193 = pneg %p192
    // Predicated region
    $region29: #{mask_rcnn_forward.9} parent=5 // pred_check
      _
    $region30: #{mask_rcnn_forward.9} parent=5 // pred_check_branch
      %195 = sbr.rel (%p192) target = $region32
    $region31: #{mask_rcnn_forward.9} parent=5 // pred_region
      %s196 = ssub.s32 %s9, 1
      %s197 = smul.u32 8, %s19
      %s198 = smul.u32 9, %s21
      %p199 = scmp.lt.s32.totalorder %s197, 15
      %s200 = scalar_select %p199, %s197, 15
      %p201 = scmp.lt.s32.totalorder %s198, 8
      %s202 = scalar_select %p201, %s198, 8
      %s203 = smul.addr %s200, 9
      %s204 = sadd.s32 %s202, %s203
      %s205 = smul.addr %s204, 4
      %s206 = scalar_lea.vmem %s0, %s205
      %p207 = pneg %p56
      %p208 = pneg %p53
      %s209 = smul.u32 144, %s21
      %p210 = scmp.lt.s32.totalorder %s209, 143
      %s211 = scalar_select %p210, %s209, 143
      %p212 = scmp.lt.s32.totalorder %s20, 0
      %s213 = scalar_select %p212, %s20, 0
      %s214 = sadd.s32 %s213, %s211
      %s215 = smul.addr %s214, 4
      %s216 = scalar_lea.vmem %s1, %s215
      %p217 = pneg %p84
      %p218 = pneg %p81
      %p219 = scmp.lt.s32.totalorder %s20, 0
      %s220 = scalar_select %p219, %s20, 0
      %s221 = scalar_lea.vmem %s2, %s220
      %p222 = pneg %p110
      %p223 = pneg %p107
      %p224 = pneg %p138
      %p225 = pneg %p135
      %s226 = smul.u32 8, %s19
      %p227 = scmp.lt.s32.totalorder %s226, 15
      %s228 = scalar_select %p227, %s226, 15
      %p229 = scmp.lt.s32.totalorder %s20, 0
      %s230 = scalar_select %p229, %s20, 0
      %s231 = sadd.s32 %s230, %s228
      %s232 = smul.addr %s231, 4
      %s233 = scalar_lea.vmem %s3, %s232
      %s234 = smul.u32 8, %s19
      %s235 = smul.u32 9, %s21
      %p236 = scmp.lt.s32.totalorder %s234, 15
      %s237 = scalar_select %p236, %s234, 15
      %p238 = scmp.lt.s32.totalorder %s235, 8
      %s239 = scalar_select %p238, %s235, 8
      %s240 = smul.addr %s237, 9
      %s241 = sadd.s32 %s239, %s240
      %s242 = smul.addr %s241, 4
      %s243 = scalar_lea.vmem %s0, %s242
      %s244 = smul.u32 8, %s19
      %s245 = smul.u32 9, %s21
      %s246 = smul.u32 144, %s21
      %p247 = scmp.lt.s32.totalorder %s246, 143
      %s248 = scalar_select %p247, %s246, 143
      %p249 = scmp.lt.s32.totalorder %s20, 0
      %s250 = scalar_select %p249, %s20, 0
      %s251 = sadd.s32 %s250, %s248
      %s252 = smul.addr %s251, 4
      %s253 = scalar_lea.vmem %s1, %s252
      %s254 = smul.u32 144, %s21
      %p255 = scmp.lt.s32.totalorder %s20, 0
      %s256 = scalar_select %p255, %s20, 0
      %s257 = scalar_lea.vmem %s2, %s256
      %s258 = smul.u32 8, %s19
      %p259 = scmp.lt.s32.totalorder %s258, 15
      %s260 = scalar_select %p259, %s258, 15
      %p261 = scmp.lt.s32.totalorder %s20, 0
      %s262 = scalar_select %p261, %s20, 0
      %s263 = sadd.s32 %s262, %s260
      %s264 = smul.addr %s263, 4
      %s265 = scalar_lea.vmem %s3, %s264
      %s266 = smul.u32 8, %s19
      %p268 = scmp.eq.s32.totalorder %s21, 0
      // Predicated region
      $region33: #{mask_rcnn_forward.9} parent=31 // pred_check
        %p269 = pneg %p268
      $region34: #{mask_rcnn_forward.9} parent=31 // pred_check_branch
        %271 = sbr.rel (%p269) target = $region36
      $region35: #{mask_rcnn_forward.9} parent=31 // pred_region
        %272 = vst [vmem:[#allocation2] sm:$0xff] 0.0
        %273 = vst [vmem:[#allocation2 + $0x8] sm:$0xff] 0.0
        %274 = vst [vmem:[#allocation2 + $0x10] sm:$0xff] 0.0
        %275 = vst [vmem:[#allocation2 + $0x18] sm:$0xff] 0.0
        %276 = vst [vmem:[#allocation2 + $0x20] sm:$0xff] 0.0
        %277 = vst [vmem:[#allocation2 + $0x28] sm:$0xff] 0.0
        %278 = vst [vmem:[#allocation2 + $0x30] sm:$0xff] 0.0
        %279 = vst [vmem:[#allocation2 + $0x38] sm:$0xff] 0.0
      $region36: #{mask_rcnn_forward.9} parent=31 // pred_fallthru
        _
      %v280 = vld [vmem:[#allocation2] sm:$0xff]
      %v281 = vld [vmem:[#allocation2 + $0x8] sm:$0xff]
      %v282 = vld [vmem:[#allocation2 + $0x10] sm:$0xff]
      %v283 = vld [vmem:[#allocation2 + $0x18] sm:$0xff]
      %v284 = vld [vmem:[#allocation2 + $0x20] sm:$0xff]
      %v285 = vld [vmem:[#allocation2 + $0x28] sm:$0xff]
      %v286 = vld [vmem:[#allocation2 + $0x30] sm:$0xff]
      %v287 = vld [vmem:[#allocation2 + $0x38] sm:$0xff]
      %v288 = vld [vmem:[%s243] sm:$0xff]
      %v289 = vld [vmem:[%s243 + $0x8] sm:$0xff]
      %v290 = vld [vmem:[%s243 + $0x10] sm:$0xff]
      %v291 = vld [vmem:[%s243 + $0x18] sm:$0xff]
      %v292 = vld [vmem:[%s243 + $0x20] sm:$0xf]
      %v293 = vld [vmem:[%s243 + $0x24] sm:$0xff]
      %v294 = vld [vmem:[%s243 + $0x2c] sm:$0xff]
      %v295 = vld [vmem:[%s243 + $0x34] sm:$0xff]
      %v296 = vld [vmem:[%s243 + $0x3c] sm:$0xff]
      %v297 = vld [vmem:[%s243 + $0x44] sm:$0xf]
      %v298 = vld [vmem:[%s243 + $0x48] sm:$0xff]
      %v299 = vld [vmem:[%s243 + $0x50] sm:$0xff]
      %v300 = vld [vmem:[%s243 + $0x58] sm:$0xff]
      %v301 = vld [vmem:[%s243 + $0x60] sm:$0xff]
      %v302 = vld [vmem:[%s243 + $0x68] sm:$0xf]
      %v303 = vld [vmem:[%s243 + $0x6c] sm:$0xff]
      %v304 = vld [vmem:[%s243 + $0x74] sm:$0xff]
      %v305 = vld [vmem:[%s243 + $0x7c] sm:$0xff]
      %v306 = vld [vmem:[%s243 + $0x84] sm:$0xff]
      %v307 = vld [vmem:[%s243 + $0x8c] sm:$0xf]
      %v308 = vld [vmem:[%s243 + $0x90] sm:$0xff]
      %v309 = vld [vmem:[%s243 + $0x98] sm:$0xff]
      %v310 = vld [vmem:[%s243 + $0xa0] sm:$0xff]
      %v311 = vld [vmem:[%s243 + $0xa8] sm:$0xff]
      %v312 = vld [vmem:[%s243 + $0xb0] sm:$0xf]
      %v313 = vld [vmem:[%s243 + $0xb4] sm:$0xff]
      %v314 = vld [vmem:[%s243 + $0xbc] sm:$0xff]
      %v315 = vld [vmem:[%s243 + $0xc4] sm:$0xff]
      %v316 = vld [vmem:[%s243 + $0xcc] sm:$0xff]
      %v317 = vld [vmem:[%s243 + $0xd4] sm:$0xf]
      %v318 = vld [vmem:[%s243 + $0xd8] sm:$0xff]
      %v319 = vld [vmem:[%s243 + $0xe0] sm:$0xff]
      %v320 = vld [vmem:[%s243 + $0xe8] sm:$0xff]
      %v321 = vld [vmem:[%s243 + $0xf0] sm:$0xff]
      %v322 = vld [vmem:[%s243 + $0xf8] sm:$0xf]
      %v323 = vld [vmem:[%s243 + $0xfc] sm:$0xff]
      %v324 = vld [vmem:[%s243 + $0x104] sm:$0xff]
      %v325 = vld [vmem:[%s243 + $0x10c] sm:$0xff]
      %v326 = vld [vmem:[%s243 + $0x114] sm:$0xff]
      %v327 = vld [vmem:[%s243 + $0x11c] sm:$0xf]
      %v328 = vld [vmem:[%s253] sm:$0xf]
      %v329 = vld [vmem:[%s253 + $0x4] sm:$0xf]
      %v330 = vld [vmem:[%s253 + $0x8] sm:$0xf]
      %v331 = vld [vmem:[%s253 + $0xc] sm:$0xf]
      %v332 = vld [vmem:[%s253 + $0x10] sm:$0xf]
      %v333 = vld [vmem:[%s253 + $0x14] sm:$0xf]
      %v334 = vld [vmem:[%s253 + $0x18] sm:$0xf]
      %v335 = vld [vmem:[%s253 + $0x1c] sm:$0xf]
      %v336 = vld [vmem:[%s253 + $0x20] sm:$0xf]
      %v337 = vld [vmem:[%s253 + $0x24] sm:$0xf]
      %v338 = vld [vmem:[%s253 + $0x28] sm:$0xf]
      %v339 = vld [vmem:[%s253 + $0x2c] sm:$0xf]
      %v340 = vld [vmem:[%s253 + $0x30] sm:$0xf]
      %v341 = vld [vmem:[%s253 + $0x34] sm:$0xf]
      %v342 = vld [vmem:[%s253 + $0x38] sm:$0xf]
      %v343 = vld [vmem:[%s253 + $0x3c] sm:$0xf]
      %v344 = vld [vmem:[%s253 + $0x40] sm:$0xf]
      %v345 = vld [vmem:[%s253 + $0x44] sm:$0xf]
      %v346 = vld [vmem:[%s253 + $0x48] sm:$0xf]
      %v347 = vld [vmem:[%s253 + $0x4c] sm:$0xf]
      %v348 = vld [vmem:[%s253 + $0x50] sm:$0xf]
      %v349 = vld [vmem:[%s253 + $0x54] sm:$0xf]
      %v350 = vld [vmem:[%s253 + $0x58] sm:$0xf]
      %v351 = vld [vmem:[%s253 + $0x5c] sm:$0xf]
      %v352 = vld [vmem:[%s253 + $0x60] sm:$0xf]
      %v353 = vld [vmem:[%s253 + $0x64] sm:$0xf]
      %v354 = vld [vmem:[%s253 + $0x68] sm:$0xf]
      %v355 = vld [vmem:[%s253 + $0x6c] sm:$0xf]
      %v356 = vld [vmem:[%s253 + $0x70] sm:$0xf]
      %v357 = vld [vmem:[%s253 + $0x74] sm:$0xf]
      %v358 = vld [vmem:[%s253 + $0x78] sm:$0xf]
      %v359 = vld [vmem:[%s253 + $0x7c] sm:$0xf]
      %v360 = vld [vmem:[%s253 + $0x80] sm:$0xf]
      %v361 = vld [vmem:[%s253 + $0x84] sm:$0xf]
      %v362 = vld [vmem:[%s253 + $0x88] sm:$0xf]
      %v363 = vld [vmem:[%s253 + $0x8c] sm:$0xf]
      %v364 = vld [vmem:[%s253 + $0x90] sm:$0xf]
      %v365 = vld [vmem:[%s253 + $0x94] sm:$0xf]
      %v366 = vld [vmem:[%s253 + $0x98] sm:$0xf]
      %v367 = vld [vmem:[%s253 + $0x9c] sm:$0xf]
      %v368 = vld [vmem:[%s253 + $0xa0] sm:$0xf]
      %v369 = vld [vmem:[%s253 + $0xa4] sm:$0xf]
      %v370 = vld [vmem:[%s253 + $0xa8] sm:$0xf]
      %v371 = vld [vmem:[%s253 + $0xac] sm:$0xf]
      %v372 = vld [vmem:[%s253 + $0xb0] sm:$0xf]
      %v373 = vld [vmem:[%s253 + $0xb4] sm:$0xf]
      %v374 = vld [vmem:[%s253 + $0xb8] sm:$0xf]
      %v375 = vld [vmem:[%s253 + $0xbc] sm:$0xf]
      %v376 = vld [vmem:[%s253 + $0xc0] sm:$0xf]
      %v377 = vld [vmem:[%s253 + $0xc4] sm:$0xf]
      %v378 = vld [vmem:[%s253 + $0xc8] sm:$0xf]
      %v379 = vld [vmem:[%s253 + $0xcc] sm:$0xf]
      %v380 = vld [vmem:[%s253 + $0xd0] sm:$0xf]
      %v381 = vld [vmem:[%s253 + $0xd4] sm:$0xf]
      %v382 = vld [vmem:[%s253 + $0xd8] sm:$0xf]
      %v383 = vld [vmem:[%s253 + $0xdc] sm:$0xf]
      %v384 = vld [vmem:[%s253 + $0xe0] sm:$0xf]
      %v385 = vld [vmem:[%s253 + $0xe4] sm:$0xf]
      %v386 = vld [vmem:[%s253 + $0xe8] sm:$0xf]
      %v387 = vld [vmem:[%s253 + $0xec] sm:$0xf]
      %v388 = vld [vmem:[%s253 + $0xf0] sm:$0xf]
      %v389 = vld [vmem:[%s253 + $0xf4] sm:$0xf]
      %v390 = vld [vmem:[%s253 + $0xf8] sm:$0xf]
      %v391 = vld [vmem:[%s253 + $0xfc] sm:$0xf]
      %v392 = vld [vmem:[%s253 + $0x100] sm:$0xf]
      %v393 = vld [vmem:[%s253 + $0x104] sm:$0xf]
      %v394 = vld [vmem:[%s253 + $0x108] sm:$0xf]
      %v395 = vld [vmem:[%s253 + $0x10c] sm:$0xf]
      %v396 = vld [vmem:[%s253 + $0x110] sm:$0xf]
      %v397 = vld [vmem:[%s253 + $0x114] sm:$0xf]
      %v398 = vld [vmem:[%s253 + $0x118] sm:$0xf]
      %v399 = vld [vmem:[%s253 + $0x11c] sm:$0xf]
      %v400 = vld [vmem:[%s253 + $0x120] sm:$0xf]
      %v401 = vld [vmem:[%s253 + $0x124] sm:$0xf]
      %v402 = vld [vmem:[%s253 + $0x128] sm:$0xf]
      %v403 = vld [vmem:[%s253 + $0x12c] sm:$0xf]
      %v404 = vld [vmem:[%s253 + $0x130] sm:$0xf]
      %v405 = vld [vmem:[%s253 + $0x134] sm:$0xf]
      %v406 = vld [vmem:[%s253 + $0x138] sm:$0xf]
      %v407 = vld [vmem:[%s253 + $0x13c] sm:$0xf]
      %v408 = vld [vmem:[%s253 + $0x140] sm:$0xf]
      %v409 = vld [vmem:[%s253 + $0x144] sm:$0xf]
      %v410 = vld [vmem:[%s253 + $0x148] sm:$0xf]
      %v411 = vld [vmem:[%s253 + $0x14c] sm:$0xf]
      %v412 = vld [vmem:[%s253 + $0x150] sm:$0xf]
      %v413 = vld [vmem:[%s253 + $0x154] sm:$0xf]
      %v414 = vld [vmem:[%s253 + $0x158] sm:$0xf]
      %v415 = vld [vmem:[%s253 + $0x15c] sm:$0xf]
      %v416 = vld [vmem:[%s253 + $0x160] sm:$0xf]
      %v417 = vld [vmem:[%s253 + $0x164] sm:$0xf]
      %v418 = vld [vmem:[%s253 + $0x168] sm:$0xf]
      %v419 = vld [vmem:[%s253 + $0x16c] sm:$0xf]
      %v420 = vld [vmem:[%s253 + $0x170] sm:$0xf]
      %v421 = vld [vmem:[%s253 + $0x174] sm:$0xf]
      %v422 = vld [vmem:[%s253 + $0x178] sm:$0xf]
      %v423 = vld [vmem:[%s253 + $0x17c] sm:$0xf]
      %v424 = vld [vmem:[%s253 + $0x180] sm:$0xf]
      %v425 = vld [vmem:[%s253 + $0x184] sm:$0xf]
      %v426 = vld [vmem:[%s253 + $0x188] sm:$0xf]
      %v427 = vld [vmem:[%s253 + $0x18c] sm:$0xf]
      %v428 = vld [vmem:[%s253 + $0x190] sm:$0xf]
      %v429 = vld [vmem:[%s253 + $0x194] sm:$0xf]
      %v430 = vld [vmem:[%s253 + $0x198] sm:$0xf]
      %v431 = vld [vmem:[%s253 + $0x19c] sm:$0xf]
      %v432 = vld [vmem:[%s253 + $0x1a0] sm:$0xf]
      %v433 = vld [vmem:[%s253 + $0x1a4] sm:$0xf]
      %v434 = vld [vmem:[%s253 + $0x1a8] sm:$0xf]
      %v435 = vld [vmem:[%s253 + $0x1ac] sm:$0xf]
      %v436 = vld [vmem:[%s253 + $0x1b0] sm:$0xf]
      %v437 = vld [vmem:[%s253 + $0x1b4] sm:$0xf]
      %v438 = vld [vmem:[%s253 + $0x1b8] sm:$0xf]
      %v439 = vld [vmem:[%s253 + $0x1bc] sm:$0xf]
      %v440 = vld [vmem:[%s253 + $0x1c0] sm:$0xf]
      %v441 = vld [vmem:[%s253 + $0x1c4] sm:$0xf]
      %v442 = vld [vmem:[%s253 + $0x1c8] sm:$0xf]
      %v443 = vld [vmem:[%s253 + $0x1cc] sm:$0xf]
      %v444 = vld [vmem:[%s253 + $0x1d0] sm:$0xf]
      %v445 = vld [vmem:[%s253 + $0x1d4] sm:$0xf]
      %v446 = vld [vmem:[%s253 + $0x1d8] sm:$0xf]
      %v447 = vld [vmem:[%s253 + $0x1dc] sm:$0xf]
      %v448 = vld [vmem:[%s253 + $0x1e0] sm:$0xf]
      %v449 = vld [vmem:[%s253 + $0x1e4] sm:$0xf]
      %v450 = vld [vmem:[%s253 + $0x1e8] sm:$0xf]
      %v451 = vld [vmem:[%s253 + $0x1ec] sm:$0xf]
      %v452 = vld [vmem:[%s253 + $0x1f0] sm:$0xf]
      %v453 = vld [vmem:[%s253 + $0x1f4] sm:$0xf]
      %v454 = vld [vmem:[%s253 + $0x1f8] sm:$0xf]
      %v455 = vld [vmem:[%s253 + $0x1fc] sm:$0xf]
      %v456 = vld [vmem:[%s253 + $0x200] sm:$0xf]
      %v457 = vld [vmem:[%s253 + $0x204] sm:$0xf]
      %v458 = vld [vmem:[%s253 + $0x208] sm:$0xf]
      %v459 = vld [vmem:[%s253 + $0x20c] sm:$0xf]
      %v460 = vld [vmem:[%s253 + $0x210] sm:$0xf]
      %v461 = vld [vmem:[%s253 + $0x214] sm:$0xf]
      %v462 = vld [vmem:[%s253 + $0x218] sm:$0xf]
      %v463 = vld [vmem:[%s253 + $0x21c] sm:$0xf]
      %v464 = vld [vmem:[%s253 + $0x220] sm:$0xf]
      %v465 = vld [vmem:[%s253 + $0x224] sm:$0xf]
      %v466 = vld [vmem:[%s253 + $0x228] sm:$0xf]
      %v467 = vld [vmem:[%s253 + $0x22c] sm:$0xf]
      %v468 = vld [vmem:[%s253 + $0x230] sm:$0xf]
      %v469 = vld [vmem:[%s253 + $0x234] sm:$0xf]
      %v470 = vld [vmem:[%s253 + $0x238] sm:$0xf]
      %v471 = vld [vmem:[%s253 + $0x23c] sm:$0xf]
      %v512 = vunpack.c.l.b16 %v288
      %v513 = vunpack.c.h.b16 %v288
      %v514 = vunpack.c.l.b16 %v289
      %v515 = vunpack.c.h.b16 %v289
      %v516 = vunpack.c.l.b16 %v290
      %v517 = vunpack.c.h.b16 %v290
      %v518 = vunpack.c.l.b16 %v291
      %v519 = vunpack.c.h.b16 %v291
      %v520 = vunpack.c.l.b16 %v292
      %v521 = vunpack.c.l.b16 %v293
      %v522 = vunpack.c.h.b16 %v293
      %v523 = vunpack.c.l.b16 %v294
      %v524 = vunpack.c.h.b16 %v294
      %v525 = vunpack.c.l.b16 %v295
      %v526 = vunpack.c.h.b16 %v295
      %v527 = vunpack.c.l.b16 %v296
      %v528 = vunpack.c.h.b16 %v296
      %v529 = vunpack.c.l.b16 %v297
      %v530 = vunpack.c.l.b16 %v298
      %v531 = vunpack.c.h.b16 %v298
      %v532 = vunpack.c.l.b16 %v299
      %v533 = vunpack.c.h.b16 %v299
      %v534 = vunpack.c.l.b16 %v300
      %v535 = vunpack.c.h.b16 %v300
      %v536 = vunpack.c.l.b16 %v301
      %v537 = vunpack.c.h.b16 %v301
      %v538 = vunpack.c.l.b16 %v302
      %v539 = vunpack.c.l.b16 %v303
      %v540 = vunpack.c.h.b16 %v303
      %v541 = vunpack.c.l.b16 %v304
      %v542 = vunpack.c.h.b16 %v304
      %v543 = vunpack.c.l.b16 %v305
      %v544 = vunpack.c.h.b16 %v305
      %v545 = vunpack.c.l.b16 %v306
      %v546 = vunpack.c.h.b16 %v306
      %v547 = vunpack.c.l.b16 %v307
      %v548 = vunpack.c.l.b16 %v308
      %v549 = vunpack.c.h.b16 %v308
      %v550 = vunpack.c.l.b16 %v309
      %v551 = vunpack.c.h.b16 %v309
      %v552 = vunpack.c.l.b16 %v310
      %v553 = vunpack.c.h.b16 %v310
      %v554 = vunpack.c.l.b16 %v311
      %v555 = vunpack.c.h.b16 %v311
      %v556 = vunpack.c.l.b16 %v312
      %v557 = vunpack.c.l.b16 %v313
      %v558 = vunpack.c.h.b16 %v313
      %v559 = vunpack.c.l.b16 %v314
      %v560 = vunpack.c.h.b16 %v314
      %v561 = vunpack.c.l.b16 %v315
      %v562 = vunpack.c.h.b16 %v315
      %v563 = vunpack.c.l.b16 %v316
      %v564 = vunpack.c.h.b16 %v316
      %v565 = vunpack.c.l.b16 %v317
      %v566 = vunpack.c.l.b16 %v318
      %v567 = vunpack.c.h.b16 %v318
      %v568 = vunpack.c.l.b16 %v319
      %v569 = vunpack.c.h.b16 %v319
      %v570 = vunpack.c.l.b16 %v320
      %v571 = vunpack.c.h.b16 %v320
      %v572 = vunpack.c.l.b16 %v321
      %v573 = vunpack.c.h.b16 %v321
      %v574 = vunpack.c.l.b16 %v322
      %v575 = vunpack.c.l.b16 %v323
      %v576 = vunpack.c.h.b16 %v323
      %v577 = vunpack.c.l.b16 %v324
      %v578 = vunpack.c.h.b16 %v324
      %v579 = vunpack.c.l.b16 %v325
      %v580 = vunpack.c.h.b16 %v325
      %v581 = vunpack.c.l.b16 %v326
      %v582 = vunpack.c.h.b16 %v326
      %v583 = vunpack.c.l.b16 %v327
      %v584 = vpack.c.b16 %v521, %v512
      %v585 = vpack.c.b16 %v522, %v513
      %v586 = vpack.c.b16 %v523, %v514
      %v587 = vpack.c.b16 %v524, %v515
      %v588 = vpack.c.b16 %v525, %v516
      %v589 = vpack.c.b16 %v526, %v517
      %v590 = vpack.c.b16 %v527, %v518
      %v591 = vpack.c.b16 %v528, %v519
      %v592 = vpack.c.b16 %v529, %v520
      %v593 = vpack.c.b16 %v539, %v530
      %v594 = vpack.c.b16 %v540, %v531
      %v595 = vpack.c.b16 %v541, %v532
      %v596 = vpack.c.b16 %v542, %v533
      %v597 = vpack.c.b16 %v543, %v534
      %v598 = vpack.c.b16 %v544, %v535
      %v599 = vpack.c.b16 %v545, %v536
      %v600 = vpack.c.b16 %v546, %v537
      %v601 = vpack.c.b16 %v547, %v538
      %v602 = vpack.c.b16 %v557, %v548
      %v603 = vpack.c.b16 %v558, %v549
      %v604 = vpack.c.b16 %v559, %v550
      %v605 = vpack.c.b16 %v560, %v551
      %v606 = vpack.c.b16 %v561, %v552
      %v607 = vpack.c.b16 %v562, %v553
      %v608 = vpack.c.b16 %v563, %v554
      %v609 = vpack.c.b16 %v564, %v555
      %v610 = vpack.c.b16 %v565, %v556
      %v611 = vpack.c.b16 %v575, %v566
      %v612 = vpack.c.b16 %v576, %v567
      %v613 = vpack.c.b16 %v577, %v568
      %v614 = vpack.c.b16 %v578, %v569
      %v615 = vpack.c.b16 %v579, %v570
      %v616 = vpack.c.b16 %v580, %v571
      %v617 = vpack.c.b16 %v581, %v572
      %v618 = vpack.c.b16 %v582, %v573
      %v619 = vpack.c.b16 %v583, %v574
      %v800 = vunpack.c.l.b16 %v328
      %v801 = vunpack.c.l.b16 %v329
      %v802 = vunpack.c.l.b16 %v330
      %v803 = vunpack.c.l.b16 %v331
      %v804 = vunpack.c.l.b16 %v332
      %v805 = vunpack.c.l.b16 %v333
      %v806 = vunpack.c.l.b16 %v334
      %v807 = vunpack.c.l.b16 %v335
      %v808 = vunpack.c.l.b16 %v336
      %v809 = vunpack.c.l.b16 %v337
      %v810 = vunpack.c.l.b16 %v338
      %v811 = vunpack.c.l.b16 %v339
      %v812 = vunpack.c.l.b16 %v340
      %v813 = vunpack.c.l.b16 %v341
      %v814 = vunpack.c.l.b16 %v342
      %v815 = vunpack.c.l.b16 %v343
      %v816 = vunpack.c.l.b16 %v344
      %v817 = vunpack.c.l.b16 %v345
      %v818 = vunpack.c.l.b16 %v346
      %v819 = vunpack.c.l.b16 %v347
      %v820 = vunpack.c.l.b16 %v348
      %v821 = vunpack.c.l.b16 %v349
      %v822 = vunpack.c.l.b16 %v350
      %v823 = vunpack.c.l.b16 %v351
      %v824 = vunpack.c.l.b16 %v352
      %v825 = vunpack.c.l.b16 %v353
      %v826 = vunpack.c.l.b16 %v354
      %v827 = vunpack.c.l.b16 %v355
      %v828 = vunpack.c.l.b16 %v356
      %v829 = vunpack.c.l.b16 %v357
      %v830 = vunpack.c.l.b16 %v358
      %v831 = vunpack.c.l.b16 %v359
      %v832 = vunpack.c.l.b16 %v360
      %v833 = vunpack.c.l.b16 %v361
      %v834 = vunpack.c.l.b16 %v362
      %v835 = vunpack.c.l.b16 %v363
      %v836 = vunpack.c.l.b16 %v364
      %v837 = vunpack.c.l.b16 %v365
      %v838 = vunpack.c.l.b16 %v366
      %v839 = vunpack.c.l.b16 %v367
      %v840 = vunpack.c.l.b16 %v368
      %v841 = vunpack.c.l.b16 %v369
      %v842 = vunpack.c.l.b16 %v370
      %v843 = vunpack.c.l.b16 %v371
      %v844 = vunpack.c.l.b16 %v372
      %v845 = vunpack.c.l.b16 %v373
      %v846 = vunpack.c.l.b16 %v374
      %v847 = vunpack.c.l.b16 %v375
      %v848 = vunpack.c.l.b16 %v376
      %v849 = vunpack.c.l.b16 %v377
      %v850 = vunpack.c.l.b16 %v378
      %v851 = vunpack.c.l.b16 %v379
      %v852 = vunpack.c.l.b16 %v380
      %v853 = vunpack.c.l.b16 %v381
      %v854 = vunpack.c.l.b16 %v382
      %v855 = vunpack.c.l.b16 %v383
      %v856 = vunpack.c.l.b16 %v384
      %v857 = vunpack.c.l.b16 %v385
      %v858 = vunpack.c.l.b16 %v386
      %v859 = vunpack.c.l.b16 %v387
      %v860 = vunpack.c.l.b16 %v388
      %v861 = vunpack.c.l.b16 %v389
      %v862 = vunpack.c.l.b16 %v390
      %v863 = vunpack.c.l.b16 %v391
      %v864 = vunpack.c.l.b16 %v392
      %v865 = vunpack.c.l.b16 %v393
      %v866 = vunpack.c.l.b16 %v394
      %v867 = vunpack.c.l.b16 %v395
      %v868 = vunpack.c.l.b16 %v396
      %v869 = vunpack.c.l.b16 %v397
      %v870 = vunpack.c.l.b16 %v398
      %v871 = vunpack.c.l.b16 %v399
      %v872 = vunpack.c.l.b16 %v400
      %v873 = vunpack.c.l.b16 %v401
      %v874 = vunpack.c.l.b16 %v402
      %v875 = vunpack.c.l.b16 %v403
      %v876 = vunpack.c.l.b16 %v404
      %v877 = vunpack.c.l.b16 %v405
      %v878 = vunpack.c.l.b16 %v406
      %v879 = vunpack.c.l.b16 %v407
      %v880 = vunpack.c.l.b16 %v408
      %v881 = vunpack.c.l.b16 %v409
      %v882 = vunpack.c.l.b16 %v410
      %v883 = vunpack.c.l.b16 %v411
      %v884 = vunpack.c.l.b16 %v412
      %v885 = vunpack.c.l.b16 %v413
      %v886 = vunpack.c.l.b16 %v414
      %v887 = vunpack.c.l.b16 %v415
      %v888 = vunpack.c.l.b16 %v416
      %v889 = vunpack.c.l.b16 %v417
      %v890 = vunpack.c.l.b16 %v418
      %v891 = vunpack.c.l.b16 %v419
      %v892 = vunpack.c.l.b16 %v420
      %v893 = vunpack.c.l.b16 %v421
      %v894 = vunpack.c.l.b16 %v422
      %v895 = vunpack.c.l.b16 %v423
      %v896 = vunpack.c.l.b16 %v424
      %v897 = vunpack.c.l.b16 %v425
      %v898 = vunpack.c.l.b16 %v426
      %v899 = vunpack.c.l.b16 %v427
      %v900 = vunpack.c.l.b16 %v428
      %v901 = vunpack.c.l.b16 %v429
      %v902 = vunpack.c.l.b16 %v430
      %v903 = vunpack.c.l.b16 %v431
      %v904 = vunpack.c.l.b16 %v432
      %v905 = vunpack.c.l.b16 %v433
      %v906 = vunpack.c.l.b16 %v434
      %v907 = vunpack.c.l.b16 %v435
      %v908 = vunpack.c.l.b16 %v436
      %v909 = vunpack.c.l.b16 %v437
      %v910 = vunpack.c.l.b16 %v438
      %v911 = vunpack.c.l.b16 %v439
      %v912 = vunpack.c.l.b16 %v440
      %v913 = vunpack.c.l.b16 %v441
      %v914 = vunpack.c.l.b16 %v442
      %v915 = vunpack.c.l.b16 %v443
      %v916 = vunpack.c.l.b16 %v444
      %v917 = vunpack.c.l.b16 %v445
      %v918 = vunpack.c.l.b16 %v446
      %v919 = vunpack.c.l.b16 %v447
      %v920 = vunpack.c.l.b16 %v448
      %v921 = vunpack.c.l.b16 %v449
      %v922 = vunpack.c.l.b16 %v450
      %v923 = vunpack.c.l.b16 %v451
      %v924 = vunpack.c.l.b16 %v452
      %v925 = vunpack.c.l.b16 %v453
      %v926 = vunpack.c.l.b16 %v454
      %v927 = vunpack.c.l.b16 %v455
      %v928 = vunpack.c.l.b16 %v456
      %v929 = vunpack.c.l.b16 %v457
      %v930 = vunpack.c.l.b16 %v458
      %v931 = vunpack.c.l.b16 %v459
      %v932 = vunpack.c.l.b16 %v460
      %v933 = vunpack.c.l.b16 %v461
      %v934 = vunpack.c.l.b16 %v462
      %v935 = vunpack.c.l.b16 %v463
      %v936 = vunpack.c.l.b16 %v464
      %v937 = vunpack.c.l.b16 %v465
      %v938 = vunpack.c.l.b16 %v466
      %v939 = vunpack.c.l.b16 %v467
      %v940 = vunpack.c.l.b16 %v468
      %v941 = vunpack.c.l.b16 %v469
      %v942 = vunpack.c.l.b16 %v470
      %v943 = vunpack.c.l.b16 %v471
      %v944 = vpack.c.b16 %v801, %v800
      %v945 = vpack.c.b16 %v803, %v802
      %v946 = vpack.c.b16 %v805, %v804
      %v947 = vpack.c.b16 %v807, %v806
      %v948 = vpack.c.b16 %v809, %v808
      %v949 = vpack.c.b16 %v811, %v810
      %v950 = vpack.c.b16 %v813, %v812
      %v951 = vpack.c.b16 %v815, %v814
      %v952 = vpack.c.b16 %v817, %v816
      %v953 = vpack.c.b16 %v819, %v818
      %v954 = vpack.c.b16 %v821, %v820
      %v955 = vpack.c.b16 %v823, %v822
      %v956 = vpack.c.b16 %v825, %v824
      %v957 = vpack.c.b16 %v827, %v826
      %v958 = vpack.c.b16 %v829, %v828
      %v959 = vpack.c.b16 %v831, %v830
      %v960 = vpack.c.b16 %v833, %v832
      %v961 = vpack.c.b16 %v835, %v834
      %v962 = vpack.c.b16 %v837, %v836
      %v963 = vpack.c.b16 %v839, %v838
      %v964 = vpack.c.b16 %v841, %v840
      %v965 = vpack.c.b16 %v843, %v842
      %v966 = vpack.c.b16 %v845, %v844
      %v967 = vpack.c.b16 %v847, %v846
      %v968 = vpack.c.b16 %v849, %v848
      %v969 = vpack.c.b16 %v851, %v850
      %v970 = vpack.c.b16 %v853, %v852
      %v971 = vpack.c.b16 %v855, %v854
      %v972 = vpack.c.b16 %v857, %v856
      %v973 = vpack.c.b16 %v859, %v858
      %v974 = vpack.c.b16 %v861, %v860
      %v975 = vpack.c.b16 %v863, %v862
      %v976 = vpack.c.b16 %v865, %v864
      %v977 = vpack.c.b16 %v867, %v866
      %v978 = vpack.c.b16 %v869, %v868
      %v979 = vpack.c.b16 %v871, %v870
      %v980 = vpack.c.b16 %v873, %v872
      %v981 = vpack.c.b16 %v875, %v874
      %v982 = vpack.c.b16 %v877, %v876
      %v983 = vpack.c.b16 %v879, %v878
      %v984 = vpack.c.b16 %v881, %v880
      %v985 = vpack.c.b16 %v883, %v882
      %v986 = vpack.c.b16 %v885, %v884
      %v987 = vpack.c.b16 %v887, %v886
      %v988 = vpack.c.b16 %v889, %v888
      %v989 = vpack.c.b16 %v891, %v890
      %v990 = vpack.c.b16 %v893, %v892
      %v991 = vpack.c.b16 %v895, %v894
      %v992 = vpack.c.b16 %v897, %v896
      %v993 = vpack.c.b16 %v899, %v898
      %v994 = vpack.c.b16 %v901, %v900
      %v995 = vpack.c.b16 %v903, %v902
      %v996 = vpack.c.b16 %v905, %v904
      %v997 = vpack.c.b16 %v907, %v906
      %v998 = vpack.c.b16 %v909, %v908
      %v999 = vpack.c.b16 %v911, %v910
      %v1000 = vpack.c.b16 %v913, %v912
      %v1001 = vpack.c.b16 %v915, %v914
      %v1002 = vpack.c.b16 %v917, %v916
      %v1003 = vpack.c.b16 %v919, %v918
      %v1004 = vpack.c.b16 %v921, %v920
      %v1005 = vpack.c.b16 %v923, %v922
      %v1006 = vpack.c.b16 %v925, %v924
      %v1007 = vpack.c.b16 %v927, %v926
      %v1008 = vpack.c.b16 %v929, %v928
      %v1009 = vpack.c.b16 %v931, %v930
      %v1010 = vpack.c.b16 %v933, %v932
      %v1011 = vpack.c.b16 %v935, %v934
      %v1012 = vpack.c.b16 %v937, %v936
      %v1013 = vpack.c.b16 %v939, %v938
      %v1014 = vpack.c.b16 %v941, %v940
      %v1015 = vpack.c.b16 %v943, %v942
      %1088 = vmatprep.subr.bf16.mxu0 0
      %1089 = vmatpush1.bf16.msra.mxu0 %v951
      %1090 = vmatprep.subr.bf16.mxu0 0
      %1091 = vmatpush1.bf16.msra.mxu0 %v950
      %1092 = vmatprep.subr.bf16.mxu0 0
      %1093 = vmatpush1.bf16.msra.mxu0 %v949
      %1094 = vmatprep.subr.bf16.mxu0 0
      %1095 = vmatpush1.bf16.msra.mxu0 %v948
      %1096 = vmatprep.subr.bf16.mxu0 0
      %1097 = vmatpush1.bf16.msra.mxu0 %v947
      %1098 = vmatprep.subr.bf16.mxu0 0
      %1099 = vmatpush1.bf16.msra.mxu0 %v946
      %1100 = vmatprep.subr.bf16.mxu0 0
      %1101 = vmatpush1.bf16.msra.mxu0 %v945
      %1102 = vmatprep.subr.bf16.mxu0 0
      %1103 = vmatpush1.bf16.msra.mxu0 %v944
      %1104 = vmatprep.subr.bf16.mxu0 0
      %1105 = vmatpush2.bf16.msra.mxu0 %v959
      %1106 = vmatprep.subr.bf16.mxu0 0
      %1107 = vmatpush2.bf16.msra.mxu0 %v958
      %1108 = vmatprep.subr.bf16.mxu0 0
      %1109 = vmatpush2.bf16.msra.mxu0 %v957
      %1110 = vmatprep.subr.bf16.mxu0 0
      %1111 = vmatpush2.bf16.msra.mxu0 %v956
      %1112 = vmatprep.subr.bf16.mxu0 0
      %1113 = vmatpush2.bf16.msra.mxu0 %v955
      %1114 = vmatprep.subr.bf16.mxu0 0
      %1115 = vmatpush2.bf16.msra.mxu0 %v954
      %1116 = vmatprep.subr.bf16.mxu0 0
      %1117 = vmatpush2.bf16.msra.mxu0 %v953
      %1118 = vmatprep.subr.bf16.mxu0 0
      %1119 = vmatpush2.bf16.msra.mxu0 %v952
      %1120 = vmatprep.mubr.bf16.mxu0 %v585
      %1121 = vmatmul.mubr.bf16.gmra.mxu0 %v584
      %v1122 = vpop.f32.mrf.mxu0
      %v1123 = vadd.f32 0.0, %v1122
      %v1124 = vpop.f32.mrf.mxu0
      %v1125 = vpop.f32.mrf.mxu0
      %v1126 = vadd.f32 0.0, %v1125
      %v1127 = vpop.f32.mrf.mxu0
      %1128 = vmatprep.mubr.bf16.mxu0 %v594
      %1129 = vmatmul.mubr.bf16.gmra.mxu0 %v593
      %v1130 = vpop.f32.mrf.mxu0
      %v1131 = vadd.f32 0.0, %v1130
      %v1132 = vpop.f32.mrf.mxu0
      %v1133 = vpop.f32.mrf.mxu0
      %v1134 = vadd.f32 0.0, %v1133
      %v1135 = vpop.f32.mrf.mxu0
      %1136 = vmatprep.mubr.bf16.mxu0 %v603
      %1137 = vmatmul.mubr.bf16.gmra.mxu0 %v602
      %v1138 = vpop.f32.mrf.mxu0
      %v1139 = vadd.f32 0.0, %v1138
      %v1140 = vpop.f32.mrf.mxu0
      %v1141 = vpop.f32.mrf.mxu0
      %v1142 = vadd.f32 0.0, %v1141
      %v1143 = vpop.f32.mrf.mxu0
      %1144 = vmatprep.mubr.bf16.mxu0 %v612
      %1145 = vmatmul.mubr.bf16.gmra.mxu0 %v611
      %v1146 = vpop.f32.mrf.mxu0
      %v1147 = vadd.f32 0.0, %v1146
      %v1148 = vpop.f32.mrf.mxu0
      %v1149 = vpop.f32.mrf.mxu0
      %v1150 = vadd.f32 0.0, %v1149
      %v1151 = vpop.f32.mrf.mxu0
      %1152 = vdwg.mxu0
      %1153 = vmatprep.subr.bf16.mxu0 0
      %1154 = vmatpush1.bf16.msra.mxu0 %v967
      %1155 = vmatprep.subr.bf16.mxu0 0
      %1156 = vmatpush1.bf16.msra.mxu0 %v966
      %1157 = vmatprep.subr.bf16.mxu0 0
      %1158 = vmatpush1.bf16.msra.mxu0 %v965
      %1159 = vmatprep.subr.bf16.mxu0 0
      %1160 = vmatpush1.bf16.msra.mxu0 %v964
      %1161 = vmatprep.subr.bf16.mxu0 0
      %1162 = vmatpush1.bf16.msra.mxu0 %v963
      %1163 = vmatprep.subr.bf16.mxu0 0
      %1164 = vmatpush1.bf16.msra.mxu0 %v962
      %1165 = vmatprep.subr.bf16.mxu0 0
      %1166 = vmatpush1.bf16.msra.mxu0 %v961
      %1167 = vmatprep.subr.bf16.mxu0 0
      %1168 = vmatpush1.bf16.msra.mxu0 %v960
      %1169 = vmatprep.subr.bf16.mxu0 0
      %1170 = vmatpush2.bf16.msra.mxu0 %v975
      %1171 = vmatprep.subr.bf16.mxu0 0
      %1172 = vmatpush2.bf16.msra.mxu0 %v974
      %1173 = vmatprep.subr.bf16.mxu0 0
      %1174 = vmatpush2.bf16.msra.mxu0 %v973
      %1175 = vmatprep.subr.bf16.mxu0 0
      %1176 = vmatpush2.bf16.msra.mxu0 %v972
      %1177 = vmatprep.subr.bf16.mxu0 0
      %1178 = vmatpush2.bf16.msra.mxu0 %v971
      %1179 = vmatprep.subr.bf16.mxu0 0
      %1180 = vmatpush2.bf16.msra.mxu0 %v970
      %1181 = vmatprep.subr.bf16.mxu0 0
      %1182 = vmatpush2.bf16.msra.mxu0 %v969
      %1183 = vmatprep.subr.bf16.mxu0 0
      %1184 = vmatpush2.bf16.msra.mxu0 %v968
      %1185 = vmatprep.mubr.bf16.mxu0 %v587
      %1186 = vmatmul.mubr.bf16.gmra.mxu0 %v586
      %v1187 = vpop.f32.mrf.mxu0
      %v1188 = vadd.f32 %v1123, %v1187
      %v1189 = vpop.f32.mrf.mxu0
      %v1190 = vpop.f32.mrf.mxu0
      %v1191 = vadd.f32 %v1126, %v1190
      %v1192 = vpop.f32.mrf.mxu0
      %1193 = vmatprep.mubr.bf16.mxu0 %v596
      %1194 = vmatmul.mubr.bf16.gmra.mxu0 %v595
      %v1195 = vpop.f32.mrf.mxu0
      %v1196 = vadd.f32 %v1131, %v1195
      %v1197 = vpop.f32.mrf.mxu0
      %v1198 = vpop.f32.mrf.mxu0
      %v1199 = vadd.f32 %v1134, %v1198
      %v1200 = vpop.f32.mrf.mxu0
      %1201 = vmatprep.mubr.bf16.mxu0 %v605
      %1202 = vmatmul.mubr.bf16.gmra.mxu0 %v604
      %v1203 = vpop.f32.mrf.mxu0
      %v1204 = vadd.f32 %v1139, %v1203
      %v1205 = vpop.f32.mrf.mxu0
      %v1206 = vpop.f32.mrf.mxu0
      %v1207 = vadd.f32 %v1142, %v1206
      %v1208 = vpop.f32.mrf.mxu0
      %1209 = vmatprep.mubr.bf16.mxu0 %v614
      %1210 = vmatmul.mubr.bf16.gmra.mxu0 %v613
      %v1211 = vpop.f32.mrf.mxu0
      %v1212 = vadd.f32 %v1147, %v1211
      %v1213 = vpop.f32.mrf.mxu0
      %v1214 = vpop.f32.mrf.mxu0
      %v1215 = vadd.f32 %v1150, %v1214
      %v1216 = vpop.f32.mrf.mxu0
      %1217 = vdwg.mxu0
      %1218 = vmatprep.subr.bf16.mxu0 0
      %1219 = vmatpush1.bf16.msra.mxu0 %v983
      %1220 = vmatprep.subr.bf16.mxu0 0
      %1221 = vmatpush1.bf16.msra.mxu0 %v982
      %1222 = vmatprep.subr.bf16.mxu0 0
      %1223 = vmatpush1.bf16.msra.mxu0 %v981
      %1224 = vmatprep.subr.bf16.mxu0 0
      %1225 = vmatpush1.bf16.msra.mxu0 %v980
      %1226 = vmatprep.subr.bf16.mxu0 0
      %1227 = vmatpush1.bf16.msra.mxu0 %v979
      %1228 = vmatprep.subr.bf16.mxu0 0
      %1229 = vmatpush1.bf16.msra.mxu0 %v978
      %1230 = vmatprep.subr.bf16.mxu0 0
      %1231 = vmatpush1.bf16.msra.mxu0 %v977
      %1232 = vmatprep.subr.bf16.mxu0 0
      %1233 = vmatpush1.bf16.msra.mxu0 %v976
      %1234 = vmatprep.subr.bf16.mxu0 0
      %1235 = vmatpush2.bf16.msra.mxu0 %v991
      %1236 = vmatprep.subr.bf16.mxu0 0
      %1237 = vmatpush2.bf16.msra.mxu0 %v990
      %1238 = vmatprep.subr.bf16.mxu0 0
      %1239 = vmatpush2.bf16.msra.mxu0 %v989
      %1240 = vmatprep.subr.bf16.mxu0 0
      %1241 = vmatpush2.bf16.msra.mxu0 %v988
      %1242 = vmatprep.subr.bf16.mxu0 0
      %1243 = vmatpush2.bf16.msra.mxu0 %v987
      %1244 = vmatprep.subr.bf16.mxu0 0
      %1245 = vmatpush2.bf16.msra.mxu0 %v986
      %1246 = vmatprep.subr.bf16.mxu0 0
      %1247 = vmatpush2.bf16.msra.mxu0 %v985
      %1248 = vmatprep.subr.bf16.mxu0 0
      %1249 = vmatpush2.bf16.msra.mxu0 %v984
      %1250 = vmatprep.mubr.bf16.mxu0 %v589
      %1251 = vmatmul.mubr.bf16.gmra.mxu0 %v588
      %v1252 = vpop.f32.mrf.mxu0
      %v1253 = vadd.f32 %v1188, %v1252
      %v1254 = vpop.f32.mrf.mxu0
      %v1255 = vpop.f32.mrf.mxu0
      %v1256 = vadd.f32 %v1191, %v1255
      %v1257 = vpop.f32.mrf.mxu0
      %1258 = vmatprep.mubr.bf16.mxu0 %v598
      %1259 = vmatmul.mubr.bf16.gmra.mxu0 %v597
      %v1260 = vpop.f32.mrf.mxu0
      %v1261 = vadd.f32 %v1196, %v1260
      %v1262 = vpop.f32.mrf.mxu0
      %v1263 = vpop.f32.mrf.mxu0
      %v1264 = vadd.f32 %v1199, %v1263
      %v1265 = vpop.f32.mrf.mxu0
      %1266 = vmatprep.mubr.bf16.mxu0 %v607
      %1267 = vmatmul.mubr.bf16.gmra.mxu0 %v606
      %v1268 = vpop.f32.mrf.mxu0
      %v1269 = vadd.f32 %v1204, %v1268
      %v1270 = vpop.f32.mrf.mxu0
      %v1271 = vpop.f32.mrf.mxu0
      %v1272 = vadd.f32 %v1207, %v1271
      %v1273 = vpop.f32.mrf.mxu0
      %1274 = vmatprep.mubr.bf16.mxu0 %v616
      %1275 = vmatmul.mubr.bf16.gmra.mxu0 %v615
      %v1276 = vpop.f32.mrf.mxu0
      %v1277 = vadd.f32 %v1212, %v1276
      %v1278 = vpop.f32.mrf.mxu0
      %v1279 = vpop.f32.mrf.mxu0
      %v1280 = vadd.f32 %v1215, %v1279
      %v1281 = vpop.f32.mrf.mxu0
      %1282 = vdwg.mxu0
      %1283 = vmatprep.subr.bf16.mxu0 0
      %1284 = vmatpush1.bf16.msra.mxu0 %v999
      %1285 = vmatprep.subr.bf16.mxu0 0
      %1286 = vmatpush1.bf16.msra.mxu0 %v998
      %1287 = vmatprep.subr.bf16.mxu0 0
      %1288 = vmatpush1.bf16.msra.mxu0 %v997
      %1289 = vmatprep.subr.bf16.mxu0 0
      %1290 = vmatpush1.bf16.msra.mxu0 %v996
      %1291 = vmatprep.subr.bf16.mxu0 0
      %1292 = vmatpush1.bf16.msra.mxu0 %v995
      %1293 = vmatprep.subr.bf16.mxu0 0
      %1294 = vmatpush1.bf16.msra.mxu0 %v994
      %1295 = vmatprep.subr.bf16.mxu0 0
      %1296 = vmatpush1.bf16.msra.mxu0 %v993
      %1297 = vmatprep.subr.bf16.mxu0 0
      %1298 = vmatpush1.bf16.msra.mxu0 %v992
      %1299 = vmatprep.subr.bf16.mxu0 0
      %1300 = vmatpush2.bf16.msra.mxu0 %v1007
      %1301 = vmatprep.subr.bf16.mxu0 0
      %1302 = vmatpush2.bf16.msra.mxu0 %v1006
      %1303 = vmatprep.subr.bf16.mxu0 0
      %1304 = vmatpush2.bf16.msra.mxu0 %v1005
      %1305 = vmatprep.subr.bf16.mxu0 0
      %1306 = vmatpush2.bf16.msra.mxu0 %v1004
      %1307 = vmatprep.subr.bf16.mxu0 0
      %1308 = vmatpush2.bf16.msra.mxu0 %v1003
      %1309 = vmatprep.subr.bf16.mxu0 0
      %1310 = vmatpush2.bf16.msra.mxu0 %v1002
      %1311 = vmatprep.subr.bf16.mxu0 0
      %1312 = vmatpush2.bf16.msra.mxu0 %v1001
      %1313 = vmatprep.subr.bf16.mxu0 0
      %1314 = vmatpush2.bf16.msra.mxu0 %v1000
      %1315 = vmatprep.mubr.bf16.mxu0 %v591
      %1316 = vmatmul.mubr.bf16.gmra.mxu0 %v590
      %v1317 = vpop.f32.mrf.mxu0
      %v1318 = vadd.f32 %v1253, %v1317
      %v1319 = vpop.f32.mrf.mxu0
      %v1320 = vpop.f32.mrf.mxu0
      %v1321 = vadd.f32 %v1256, %v1320
      %v1322 = vpop.f32.mrf.mxu0
      %1323 = vmatprep.mubr.bf16.mxu0 %v600
      %1324 = vmatmul.mubr.bf16.gmra.mxu0 %v599
      %v1325 = vpop.f32.mrf.mxu0
      %v1326 = vadd.f32 %v1261, %v1325
      %v1327 = vpop.f32.mrf.mxu0
      %v1328 = vpop.f32.mrf.mxu0
      %v1329 = vadd.f32 %v1264, %v1328
      %v1330 = vpop.f32.mrf.mxu0
      %1331 = vmatprep.mubr.bf16.mxu0 %v609
      %1332 = vmatmul.mubr.bf16.gmra.mxu0 %v608
      %v1333 = vpop.f32.mrf.mxu0
      %v1334 = vadd.f32 %v1269, %v1333
      %v1335 = vpop.f32.mrf.mxu0
      %v1336 = vpop.f32.mrf.mxu0
      %v1337 = vadd.f32 %v1272, %v1336
      %v1338 = vpop.f32.mrf.mxu0
      %1339 = vmatprep.mubr.bf16.mxu0 %v618
      %1340 = vmatmul.mubr.bf16.gmra.mxu0 %v617
      %v1341 = vpop.f32.mrf.mxu0
      %v1342 = vadd.f32 %v1277, %v1341
      %v1343 = vpop.f32.mrf.mxu0
      %v1344 = vpop.f32.mrf.mxu0
      %v1345 = vadd.f32 %v1280, %v1344
      %v1346 = vpop.f32.mrf.mxu0
      %1347 = vdwg.mxu0
      %1348 = vmatprep.subr.bf16.mxu0 0
      %1349 = vmatpush1.bf16.msra.mxu0 %v1015
      %1350 = vmatprep.subr.bf16.mxu0 0
      %1351 = vmatpush1.bf16.msra.mxu0 %v1014
      %1352 = vmatprep.subr.bf16.mxu0 0
      %1353 = vmatpush1.bf16.msra.mxu0 %v1013
      %1354 = vmatprep.subr.bf16.mxu0 0
      %1355 = vmatpush1.bf16.msra.mxu0 %v1012
      %1356 = vmatprep.subr.bf16.mxu0 0
      %1357 = vmatpush1.bf16.msra.mxu0 %v1011
      %1358 = vmatprep.subr.bf16.mxu0 0
      %1359 = vmatpush1.bf16.msra.mxu0 %v1010
      %1360 = vmatprep.subr.bf16.mxu0 0
      %1361 = vmatpush1.bf16.msra.mxu0 %v1009
      %1362 = vmatprep.subr.bf16.mxu0 0
      %1363 = vmatpush1.bf16.msra.mxu0 %v1008
      %1364 = vmatprep.subr.bf16.mxu0 0
      %1365 = vmatpush2.bf16.msra.mxu0 0
      %1366 = vmatprep.subr.bf16.mxu0 0
      %1367 = vmatpush2.bf16.msra.mxu0 0
      %1368 = vmatprep.subr.bf16.mxu0 0
      %1369 = vmatpush2.bf16.msra.mxu0 0
      %1370 = vmatprep.subr.bf16.mxu0 0
      %1371 = vmatpush2.bf16.msra.mxu0 0
      %1372 = vmatprep.subr.bf16.mxu0 0
      %1373 = vmatpush2.bf16.msra.mxu0 0
      %1374 = vmatprep.subr.bf16.mxu0 0
      %1375 = vmatpush2.bf16.msra.mxu0 0
      %1376 = vmatprep.subr.bf16.mxu0 0
      %1377 = vmatpush2.bf16.msra.mxu0 0
      %1378 = vmatprep.subr.bf16.mxu0 0
      %1379 = vmatpush2.bf16.msra.mxu0 0
      %1380 = vmatprep.mubr.bf16.mxu0 0
      %1381 = vmatmul.mubr.bf16.gmra.mxu0 %v592
      %v1382 = vpop.f32.mrf.mxu0
      %v1383 = vadd.f32 %v1318, %v1382
      %v1384 = vpop.f32.mrf.mxu0
      %v1385 = vpop.f32.mrf.mxu0
      %v1386 = vadd.f32 %v1321, %v1385
      %v1387 = vpop.f32.mrf.mxu0
      %1388 = vmatprep.mubr.bf16.mxu0 0
      %1389 = vmatmul.mubr.bf16.gmra.mxu0 %v601
      %v1390 = vpop.f32.mrf.mxu0
      %v1391 = vadd.f32 %v1326, %v1390
      %v1392 = vpop.f32.mrf.mxu0
      %v1393 = vpop.f32.mrf.mxu0
      %v1394 = vadd.f32 %v1329, %v1393
      %v1395 = vpop.f32.mrf.mxu0
      %1396 = vmatprep.mubr.bf16.mxu0 0
      %1397 = vmatmul.mubr.bf16.gmra.mxu0 %v610
      %v1398 = vpop.f32.mrf.mxu0
      %v1399 = vadd.f32 %v1334, %v1398
      %v1400 = vpop.f32.mrf.mxu0
      %v1401 = vpop.f32.mrf.mxu0
      %v1402 = vadd.f32 %v1337, %v1401
      %v1403 = vpop.f32.mrf.mxu0
      %1404 = vmatprep.mubr.bf16.mxu0 0
      %1405 = vmatmul.mubr.bf16.gmra.mxu0 %v619
      %v1406 = vpop.f32.mrf.mxu0
      %v1407 = vadd.f32 %v1342, %v1406
      %v1408 = vpop.f32.mrf.mxu0
      %v1409 = vpop.f32.mrf.mxu0
      %v1410 = vadd.f32 %v1345, %v1409
      %v1411 = vpop.f32.mrf.mxu0
      %1412 = vdwg.mxu0
      %v1413 = vadd.f32 %v280, %v1383
      %v1414 = vadd.f32 %v281, %v1386
      %v1415 = vadd.f32 %v282, %v1391
      %v1416 = vadd.f32 %v283, %v1394
      %v1417 = vadd.f32 %v284, %v1399
      %v1418 = vadd.f32 %v285, %v1402
      %v1419 = vadd.f32 %v286, %v1407
      %v1420 = vadd.f32 %v287, %v1410
      %1421 = vst [vmem:[#allocation2] sm:$0xff] %v1413
      %1422 = vst [vmem:[#allocation2 + $0x8] sm:$0xff] %v1414
      %1423 = vst [vmem:[#allocation2 + $0x10] sm:$0xff] %v1415
      %1424 = vst [vmem:[#allocation2 + $0x18] sm:$0xff] %v1416
      %1425 = vst [vmem:[#allocation2 + $0x20] sm:$0xff] %v1417
      %1426 = vst [vmem:[#allocation2 + $0x28] sm:$0xff] %v1418
      %1427 = vst [vmem:[#allocation2 + $0x30] sm:$0xff] %v1419
      %1428 = vst [vmem:[#allocation2 + $0x38] sm:$0xff] %v1420
      // Predicated region
      $region37: #{mask_rcnn_forward.9} parent=31 // pred_check
        %p1429 = pneg %p268
      $region38: #{mask_rcnn_forward.9} parent=31 // pred_check_branch
        %1431 = sbr.rel (%p1429) target = $region40
      $region39: #{mask_rcnn_forward.9} parent=31 // pred_region
        %v1432 = vld [vmem:[#allocation2] sm:$0xff]
        %v1433 = vld [vmem:[#allocation2 + $0x8] sm:$0xff]
        %v1434 = vld [vmem:[#allocation2 + $0x10] sm:$0xff]
        %v1435 = vld [vmem:[#allocation2 + $0x18] sm:$0xff]
        %v1436 = vld [vmem:[#allocation2 + $0x20] sm:$0xff]
        %v1437 = vld [vmem:[#allocation2 + $0x28] sm:$0xff]
        %v1438 = vld [vmem:[#allocation2 + $0x30] sm:$0xff]
        %v1439 = vld [vmem:[#allocation2 + $0x38] sm:$0xff]
        %v1440 = vld [vmem:[%s257] sm:$0x1]
        %v1442 = vlaneseq
        %v1443 = vshrl.u32 %v1442, 7
        %v1444 = vsub.s32 0, %v1443
        %v1445 = vrot.slane %v1440, %v1444
        %v1447 = vadd.f32 %v1432, %v1445
        %v1448 = vadd.f32 %v1433, %v1445
        %v1449 = vadd.f32 %v1434, %v1445
        %v1450 = vadd.f32 %v1435, %v1445
        %v1451 = vadd.f32 %v1436, %v1445
        %v1452 = vadd.f32 %v1437, %v1445
        %v1453 = vadd.f32 %v1438, %v1445
        %v1454 = vadd.f32 %v1439, %v1445
        %v1455 = vmax.f32 %v1447, 0.0
        %v1456 = vmax.f32 %v1448, 0.0
        %v1457 = vmax.f32 %v1449, 0.0
        %v1458 = vmax.f32 %v1450, 0.0
        %v1459 = vmax.f32 %v1451, 0.0
        %v1460 = vmax.f32 %v1452, 0.0
        %v1461 = vmax.f32 %v1453, 0.0
        %v1462 = vmax.f32 %v1454, 0.0
        %v1463 = vpack.c.bf16 %v1456, %v1455
        %v1464 = vpack.c.bf16 %v1458, %v1457
        %v1465 = vpack.c.bf16 %v1460, %v1459
        %v1466 = vpack.c.bf16 %v1462, %v1461
        %v1471 = vunpack.c.l.b16 %v1463
        %v1472 = vunpack.c.h.b16 %v1463
        %v1473 = vunpack.c.l.b16 %v1464
        %v1474 = vunpack.c.h.b16 %v1464
        %v1475 = vunpack.c.l.b16 %v1465
        %v1476 = vunpack.c.h.b16 %v1465
        %v1477 = vunpack.c.l.b16 %v1466
        %v1478 = vunpack.c.h.b16 %v1466
        %v1479 = vpack.c.b16 %v1471, %v1471
        %v1480 = vpack.c.b16 %v1472, %v1472
        %v1481 = vpack.c.b16 %v1473, %v1473
        %v1482 = vpack.c.b16 %v1474, %v1474
        %v1483 = vpack.c.b16 %v1475, %v1475
        %v1484 = vpack.c.b16 %v1476, %v1476
        %v1485 = vpack.c.b16 %v1477, %v1477
        %v1486 = vpack.c.b16 %v1478, %v1478
        %1495 = vst [vmem:[%s265] sm:$0xf] %v1479
        %1496 = vst [vmem:[%s265 + $0x4] sm:$0xf] %v1480
        %1497 = vst [vmem:[%s265 + $0x8] sm:$0xf] %v1481
        %1498 = vst [vmem:[%s265 + $0xc] sm:$0xf] %v1482
        %1499 = vst [vmem:[%s265 + $0x10] sm:$0xf] %v1483
        %1500 = vst [vmem:[%s265 + $0x14] sm:$0xf] %v1484
        %1501 = vst [vmem:[%s265 + $0x18] sm:$0xf] %v1485
        %1502 = vst [vmem:[%s265 + $0x1c] sm:$0xf] %v1486
      $region40: #{mask_rcnn_forward.9} parent=31 // pred_fallthru
        _
      %s1503 = smul.u32 8, %s19
      %p1504 = scmp.lt.s32.totalorder %s1503, 15
      %s1505 = scalar_select %p1504, %s1503, 15
      %p1506 = scmp.lt.s32.totalorder %s20, 0
      %s1507 = scalar_select %p1506, %s20, 0
      %s1508 = sadd.s32 %s1507, %s1505
      %s1509 = smul.addr %s1508, 4
      %s1510 = scalar_lea.vmem %s3, %s1509
      // Predicated region
      $region41: #{mask_rcnn_forward.9} parent=31 // pred_check
        %p1511 = pneg %p135
      $region42: #{mask_rcnn_forward.9} parent=31 // pred_check_branch
        %1513 = sbr.rel (%p1511) target = $region44
      $region43: #{mask_rcnn_forward.9} parent=31 // pred_region
        %s1514 = smul.u32 8, %s19
      $region44: #{mask_rcnn_forward.9} parent=31 // pred_fallthru
        _
    $region32: #{mask_rcnn_forward.9} parent=5 // pred_fallthru
      _
    %p1515 = scmp.le.s32.totalorder 2, %s9
    // Predicated region
    $region45: #{mask_rcnn_forward.9} parent=5 // pred_check
      %p1516 = pneg %p1515
    $region46: #{mask_rcnn_forward.9} parent=5 // pred_check_branch
      %1518 = sbr.rel (%p1516) target = $region48
    $region47: #{mask_rcnn_forward.9} parent=5 // pred_region
      %s1519 = ssub.s32 %s9, 2
      // Predicated region
      $region49: #{mask_rcnn_forward.9} parent=47 // pred_check
        %p1520 = pneg %p141
      $region50: #{mask_rcnn_forward.9} parent=47 // pred_check_branch
        %1522 = sbr.rel (%p1520) target = $region52
      $region51: #{mask_rcnn_forward.9} parent=47 // pred_region
        %s1523 = smul.u32 8, %s22
        %p1524 = scmp.lt.s32.totalorder %s1523, 15
        %s1525 = scalar_select %p1524, %s1523, 15
        %p1526 = scmp.lt.s32.totalorder %s23, 0
        %s1527 = scalar_select %p1526, %s23, 0
        %s1528 = sadd.s32 %s1527, %s1525
        %s1529 = smul.addr %s1528, 4
        %s1530 = scalar_lea.vmem %s3, %s1529
      $region52: #{mask_rcnn_forward.9} parent=47 // pred_fallthru
        _
    $region48: #{mask_rcnn_forward.9} parent=5 // pred_fallthru
      _
  $region6: #{mask_rcnn_forward.9} parent=0 // loop_footer
    %s13 = sadd.s32 1, %s9
  $region7: #{mask_rcnn_forward.9} parent=0 // loop_footer_branch
    %8 = sbr.rel target = $region3
  $region8: #{mask_rcnn_forward.9} parent=0 // loop_exit
    _

// kernel: mask_rcnn_forward.13
$region0: #{mask_rcnn_forward.13}
  #allocation0 [shape = 'u32[]', space=smem, size = 0x4, offset = 0x4, fixed_abs, tag = 'smem constant byte address 0x4 - core index']
  #allocation1 [shape = 'u32[144,128]{1,0:T(1,128)}', space=vmem, size = 0x12000, scoped, tag = 'internal scratch']
  %s0 = inlined_call_operand.vmem [shape: bf16[128,128], index: 0, kind: input, shape index: {}]
  %s1 = inlined_call_operand.vmem [shape: bf16[128,128], index: 1, kind: input, shape index: {}]
  %s2 = inlined_call_operand.vmem [shape: f32[1,128], index: 2, kind: input, shape index: {}]
  %s3 = inlined_call_operand.vmem [shape: bf16[128,128], index: 3, kind: input, shape index: {}]
  %s4 = inlined_call_operand.vmem [shape: f32[1,128], index: 4, kind: input, shape index: {}]
  %s5 = inlined_call_operand.vmem [shape: f32[128,128], index: 5, kind: output, shape index: {}]
  %s6 = sld [smem:[#allocation0]]
  $region53: #{mask_rcnn_forward.13} parent=0
    _
  %s8 = ssub.s32 1, %s6
  %s9 = scalar_select 0, %s8, %s6
  loop: start=0, step=1, limit=4
  $region2: #{mask_rcnn_forward.13} parent=0 // loop_pre_header
    _
  $region3: #{mask_rcnn_forward.13} parent=0 // loop_header
    %s11 = sphi 0, %s15
    %p12 = scmp.ge.s32.totalorder %s11, 4
    %s21 = sphi 0, %s23
    %s24 = sphi 0, %s21
    %s25 = sphi 0, %s24
    %s41 = sphi 0, %s25
    %s45 = sphi 0, %s45
    %s47 = sphi 0, %s45
    %s48 = sphi 0, %s47
    %s62 = sphi 0, %s48
    %s66 = sphi 0, %s66
    %s68 = sphi 0, %s66
    %s69 = sphi 0, %s68
    %s83 = sphi 0, %s69
    %s87 = sphi 0, %s87
    %s89 = sphi 0, %s87
    %s90 = sphi 0, %s89
    %s104 = sphi 0, %s90
    %s108 = sphi 0, %s108
    %s110 = sphi 0, %s108
    %s111 = sphi 0, %s110
    %s125 = sphi 0, %s111
    %s131 = sphi 0, %s133
    %s134 = sphi 0, %s131
    %s135 = sphi 0, %s134
    %s151 = sphi 0, %s135
  $region4: #{mask_rcnn_forward.13} parent=0 // loop_header_branch
    %14 = sbr.rel (%p12) target = $region8
  $region5: #{mask_rcnn_forward.13} parent=0 // loop_body
    %s16 = ssub.s32 %s11, 1
    %s17 = ssub.s32 %s11, 2
    %s18 = sadd.s32 %s11, 1
    %s19 = ssub.s32 %s11, %s18
    %p20 = scmp.eq.s32.totalorder %s19, 0
    %s22 = sadd.s32 %s21, 1
    %s23 = scalar_select %p20, %s21, %s22
    %p26 = pneg %p20
    %p27 = scmp.eq.s32.totalorder %s11, 1
    %p28 = por %p26, %p27
    %p29 = scmp.ne.s32.totalorder %s21, %s24
    %p30 = scmp.eq.s32.totalorder %s11, 0
    %p31 = por %p29, %p30
    %p32 = scmp.ne.s32.totalorder %s21, %s24
    %p33 = scmp.eq.s32.totalorder %s16, 1
    %p34 = por %p32, %p33
    %p35 = scmp.ne.s32.totalorder %s24, %s25
    %p36 = scmp.eq.s32.totalorder %s16, 0
    %p37 = por %p35, %p36
    %p38 = scmp.ne.s32.totalorder %s24, %s25
    %p39 = scmp.eq.s32.totalorder %s17, 1
    %p40 = por %p38, %p39
    %p42 = scmp.ne.s32.totalorder %s25, %s41
    %p43 = scmp.eq.s32.totalorder %s17, 0
    %p44 = por %p42, %p43
    %s46 = sadd.s32 %s45, 1
    %p49 = scmp.eq.s32.totalorder %s11, 1
    %p50 = scmp.ne.s32.totalorder %s45, %s47
    %p51 = scmp.eq.s32.totalorder %s11, 0
    %p52 = por %p50, %p51
    %p53 = scmp.ne.s32.totalorder %s45, %s47
    %p54 = scmp.eq.s32.totalorder %s16, 1
    %p55 = por %p53, %p54
    %p56 = scmp.ne.s32.totalorder %s47, %s48
    %p57 = scmp.eq.s32.totalorder %s16, 0
    %p58 = por %p56, %p57
    %p59 = scmp.ne.s32.totalorder %s47, %s48
    %p60 = scmp.eq.s32.totalorder %s17, 1
    %p61 = por %p59, %p60
    %p63 = scmp.ne.s32.totalorder %s48, %s62
    %p64 = scmp.eq.s32.totalorder %s17, 0
    %p65 = por %p63, %p64
    %s67 = sadd.s32 %s66, 1
    %p70 = scmp.eq.s32.totalorder %s11, 1
    %p71 = scmp.ne.s32.totalorder %s66, %s68
    %p72 = scmp.eq.s32.totalorder %s11, 0
    %p73 = por %p71, %p72
    %p74 = scmp.ne.s32.totalorder %s66, %s68
    %p75 = scmp.eq.s32.totalorder %s16, 1
    %p76 = por %p74, %p75
    %p77 = scmp.ne.s32.totalorder %s68, %s69
    %p78 = scmp.eq.s32.totalorder %s16, 0
    %p79 = por %p77, %p78
    %p80 = scmp.ne.s32.totalorder %s68, %s69
    %p81 = scmp.eq.s32.totalorder %s17, 1
    %p82 = por %p80, %p81
    %p84 = scmp.ne.s32.totalorder %s69, %s83
    %p85 = scmp.eq.s32.totalorder %s17, 0
    %p86 = por %p84, %p85
    %s88 = sadd.s32 %s87, 1
    %p91 = scmp.eq.s32.totalorder %s11, 1
    %p92 = scmp.ne.s32.totalorder %s87, %s89
    %p93 = scmp.eq.s32.totalorder %s11, 0
    %p94 = por %p92, %p93
    %p95 = scmp.ne.s32.totalorder %s87, %s89
    %p96 = scmp.eq.s32.totalorder %s16, 1
    %p97 = por %p95, %p96
    %p98 = scmp.ne.s32.totalorder %s89, %s90
    %p99 = scmp.eq.s32.totalorder %s16, 0
    %p100 = por %p98, %p99
    %p101 = scmp.ne.s32.totalorder %s89, %s90
    %p102 = scmp.eq.s32.totalorder %s17, 1
    %p103 = por %p101, %p102
    %p105 = scmp.ne.s32.totalorder %s90, %s104
    %p106 = scmp.eq.s32.totalorder %s17, 0
    %p107 = por %p105, %p106
    %s109 = sadd.s32 %s108, 1
    %p112 = scmp.eq.s32.totalorder %s11, 1
    %p113 = scmp.ne.s32.totalorder %s108, %s110
    %p114 = scmp.eq.s32.totalorder %s11, 0
    %p115 = por %p113, %p114
    %p116 = scmp.ne.s32.totalorder %s108, %s110
    %p117 = scmp.eq.s32.totalorder %s16, 1
    %p118 = por %p116, %p117
    %p119 = scmp.ne.s32.totalorder %s110, %s111
    %p120 = scmp.eq.s32.totalorder %s16, 0
    %p121 = por %p119, %p120
    %p122 = scmp.ne.s32.totalorder %s110, %s111
    %p123 = scmp.eq.s32.totalorder %s17, 1
    %p124 = por %p122, %p123
    %p126 = scmp.ne.s32.totalorder %s111, %s125
    %p127 = scmp.eq.s32.totalorder %s17, 0
    %p128 = por %p126, %p127
    %s129 = ssub.s32 %s11, %s18
    %p130 = scmp.eq.s32.totalorder %s129, 0
    %s132 = sadd.s32 %s131, 1
    %s133 = scalar_select %p130, %s131, %s132
    %p136 = pneg %p130
    %p137 = scmp.eq.s32.totalorder %s11, 1
    %p138 = por %p136, %p137
    %p139 = scmp.ne.s32.totalorder %s131, %s134
    %p140 = scmp.eq.s32.totalorder %s11, 0
    %p141 = por %p139, %p140
    %p142 = scmp.ne.s32.totalorder %s131, %s134
    %p143 = scmp.eq.s32.totalorder %s16, 1
    %p144 = por %p142, %p143
    %p145 = scmp.ne.s32.totalorder %s134, %s135
    %p146 = scmp.eq.s32.totalorder %s16, 0
    %p147 = por %p145, %p146
    %p148 = scmp.ne.s32.totalorder %s134, %s135
    %p149 = scmp.eq.s32.totalorder %s17, 1
    %p150 = por %p148, %p149
    %p152 = scmp.ne.s32.totalorder %s135, %s151
    %p153 = scmp.eq.s32.totalorder %s17, 0
    %p154 = por %p152, %p153
    %p155 = scmp.le.s32.totalorder 1, %s11
    %p156 = scmp.lt.s32.totalorder %s11, 3
    %p157 = pnand %p155, %p156
    %p158 = pneg %p157
    // Predicated region
    $region9: #{mask_rcnn_forward.13} parent=5 // pred_check
      _
    $region10: #{mask_rcnn_forward.13} parent=5 // pred_check_branch
      %160 = sbr.rel (%p157) target = $region12
    $region11: #{mask_rcnn_forward.13} parent=5 // pred_region
      %s161 = ssub.s32 %s11, 1
      // Predicated region
      $region13: #{mask_rcnn_forward.13} parent=11 // pred_check
        %p162 = pneg %p58
      $region14: #{mask_rcnn_forward.13} parent=11 // pred_check_branch
        %164 = sbr.rel (%p162) target = $region16
      $region15: #{mask_rcnn_forward.13} parent=11 // pred_region
        _
      $region16: #{mask_rcnn_forward.13} parent=11 // pred_fallthru
        _
      // Predicated region
      $region17: #{mask_rcnn_forward.13} parent=11 // pred_check
        %p165 = pneg %p79
      $region18: #{mask_rcnn_forward.13} parent=11 // pred_check_branch
        %167 = sbr.rel (%p165) target = $region20
      $region19: #{mask_rcnn_forward.13} parent=11 // pred_region
        _
      $region20: #{mask_rcnn_forward.13} parent=11 // pred_fallthru
        _
      // Predicated region
      $region21: #{mask_rcnn_forward.13} parent=11 // pred_check
        %p168 = pneg %p100
      $region22: #{mask_rcnn_forward.13} parent=11 // pred_check_branch
        %170 = sbr.rel (%p168) target = $region24
      $region23: #{mask_rcnn_forward.13} parent=11 // pred_region
        _
      $region24: #{mask_rcnn_forward.13} parent=11 // pred_fallthru
        _
      // Predicated region
      $region25: #{mask_rcnn_forward.13} parent=11 // pred_check
        %p171 = pneg %p121
      $region26: #{mask_rcnn_forward.13} parent=11 // pred_check_branch
        %173 = sbr.rel (%p171) target = $region28
      $region27: #{mask_rcnn_forward.13} parent=11 // pred_region
        _
      $region28: #{mask_rcnn_forward.13} parent=11 // pred_fallthru
        _
    $region12: #{mask_rcnn_forward.13} parent=5 // pred_fallthru
      _
    %p174 = scmp.lt.s32.totalorder %s11, 2
    // Predicated region
    $region29: #{mask_rcnn_forward.13} parent=5 // pred_check
      %p175 = pneg %p174
    $region30: #{mask_rcnn_forward.13} parent=5 // pred_check_branch
      %177 = sbr.rel (%p175) target = $region32
    $region31: #{mask_rcnn_forward.13} parent=5 // pred_region
      // Predicated region
      $region33: #{mask_rcnn_forward.13} parent=31 // pred_check
        %p178 = pneg %p31
      $region34: #{mask_rcnn_forward.13} parent=31 // pred_check_branch
        %180 = sbr.rel (%p178) target = $region36
      $region35: #{mask_rcnn_forward.13} parent=31 // pred_region
        %s181 = smul.u32 8, %s11
        %p182 = scmp.lt.s32.totalorder %s181, 15
        %s183 = scalar_select %p182, %s181, 15
        %s184 = smul.addr %s183, 4
        %s185 = scalar_lea.vmem %s0, %s184
        %s186 = smul.u32 8, %s11
      $region36: #{mask_rcnn_forward.13} parent=31 // pred_fallthru
        _
    $region32: #{mask_rcnn_forward.13} parent=5 // pred_fallthru
      _
    %p187 = scmp.le.s32.totalorder 1, %s11
    %p188 = scmp.lt.s32.totalorder %s11, 3
    %p189 = pnand %p187, %p188
    %p190 = pneg %p189
    // Predicated region
    $region37: #{mask_rcnn_forward.13} parent=5 // pred_check
      _
    $region38: #{mask_rcnn_forward.13} parent=5 // pred_check_branch
      %192 = sbr.rel (%p189) target = $region40
    $region39: #{mask_rcnn_forward.13} parent=5 // pred_region
      %s193 = ssub.s32 %s11, 1
      %s194 = smul.u32 8, %s16
      %p195 = scmp.lt.s32.totalorder %s194, 15
      %s196 = scalar_select %p195, %s194, 15
      %s197 = smul.addr %s196, 4
      %s198 = scalar_lea.vmem %s0, %s197
      %p199 = pneg %p37
      %p200 = pneg %p34
      %p201 = pneg %p58
      %p202 = pneg %p55
      %p203 = pneg %p79
      %p204 = pneg %p76
      %p205 = pneg %p100
      %p206 = pneg %p97
      %p207 = pneg %p121
      %p208 = pneg %p118
      %p209 = pneg %p147
      %p210 = pneg %p144
      %s211 = smul.u32 8, %s16
      %p212 = scmp.lt.s32.totalorder %s211, 15
      %s213 = scalar_select %p212, %s211, 15
      %s214 = smul.addr %s213, 8
      %s215 = scalar_lea.vmem %s5, %s214
      %s216 = smul.u32 8, %s16
      %p217 = scmp.lt.s32.totalorder %s216, 15
      %s218 = scalar_select %p217, %s216, 15
      %s219 = smul.addr %s218, 4
      %s220 = scalar_lea.vmem %s0, %s219
      %s221 = smul.u32 8, %s16
      %s222 = smul.u32 8, %s16
      %p223 = scmp.lt.s32.totalorder %s222, 15
      %s224 = scalar_select %p223, %s222, 15
      %s225 = smul.addr %s224, 8
      %s226 = scalar_lea.vmem %s5, %s225
      %s227 = smul.u32 8, %s16
      %v229 = vld [vmem:[%s220] sm:$0xf]
      %v230 = vld [vmem:[%s220 + $0x4] sm:$0xf]
      %v231 = vld [vmem:[%s220 + $0x8] sm:$0xf]
      %v232 = vld [vmem:[%s220 + $0xc] sm:$0xf]
      %v233 = vld [vmem:[%s220 + $0x10] sm:$0xf]
      %v234 = vld [vmem:[%s220 + $0x14] sm:$0xf]
      %v235 = vld [vmem:[%s220 + $0x18] sm:$0xf]
      %v236 = vld [vmem:[%s220 + $0x1c] sm:$0xf]
      %v237 = vld [vmem:[%s1] sm:$0xf]
      %v238 = vld [vmem:[%s1 + $0x4] sm:$0xf]
      %v239 = vld [vmem:[%s1 + $0x8] sm:$0xf]
      %v240 = vld [vmem:[%s1 + $0xc] sm:$0xf]
      %v241 = vld [vmem:[%s1 + $0x10] sm:$0xf]
      %v242 = vld [vmem:[%s1 + $0x14] sm:$0xf]
      %v243 = vld [vmem:[%s1 + $0x18] sm:$0xf]
      %v244 = vld [vmem:[%s1 + $0x1c] sm:$0xf]
      %v245 = vld [vmem:[%s1 + $0x20] sm:$0xf]
      %v246 = vld [vmem:[%s1 + $0x24] sm:$0xf]
      %v247 = vld [vmem:[%s1 + $0x28] sm:$0xf]
      %v248 = vld [vmem:[%s1 + $0x2c] sm:$0xf]
      %v249 = vld [vmem:[%s1 + $0x30] sm:$0xf]
      %v250 = vld [vmem:[%s1 + $0x34] sm:$0xf]
      %v251 = vld [vmem:[%s1 + $0x38] sm:$0xf]
      %v252 = vld [vmem:[%s1 + $0x3c] sm:$0xf]
      %v253 = vld [vmem:[%s2] sm:$0x1]
      %v255 = vlaneseq
      %v256 = vshrl.u32 %v255, 7
      %v257 = vsub.s32 0, %v256
      %v258 = vrot.slane %v253, %v257
      %v268 = vunpack.c.l.b16 %v229
      %v269 = vunpack.c.l.b16 %v230
      %v270 = vunpack.c.l.b16 %v231
      %v271 = vunpack.c.l.b16 %v232
      %v272 = vunpack.c.l.b16 %v233
      %v273 = vunpack.c.l.b16 %v234
      %v274 = vunpack.c.l.b16 %v235
      %v275 = vunpack.c.l.b16 %v236
      %v276 = vpack.c.b16 %v269, %v268
      %v277 = vpack.c.b16 %v271, %v270
      %v278 = vpack.c.b16 %v273, %v272
      %v279 = vpack.c.b16 %v275, %v274
      %v300 = vunpack.c.l.b16 %v237
      %v301 = vunpack.c.l.b16 %v238
      %v302 = vunpack.c.l.b16 %v239
      %v303 = vunpack.c.l.b16 %v240
      %v304 = vunpack.c.l.b16 %v241
      %v305 = vunpack.c.l.b16 %v242
      %v306 = vunpack.c.l.b16 %v243
      %v307 = vunpack.c.l.b16 %v244
      %v308 = vunpack.c.l.b16 %v245
      %v309 = vunpack.c.l.b16 %v246
      %v310 = vunpack.c.l.b16 %v247
      %v311 = vunpack.c.l.b16 %v248
      %v312 = vunpack.c.l.b16 %v249
      %v313 = vunpack.c.l.b16 %v250
      %v314 = vunpack.c.l.b16 %v251
      %v315 = vunpack.c.l.b16 %v252
      %v316 = vpack.c.b16 %v301, %v300
      %v317 = vpack.c.b16 %v303, %v302
      %v318 = vpack.c.b16 %v305, %v304
      %v319 = vpack.c.b16 %v307, %v306
      %v320 = vpack.c.b16 %v309, %v308
      %v321 = vpack.c.b16 %v311, %v310
      %v322 = vpack.c.b16 %v313, %v312
      %v323 = vpack.c.b16 %v315, %v314
      %332 = vmatprep.subr.bf16.mxu0 0
      %333 = vmatpush1.bf16.msra.mxu0 %v323
      %334 = vmatprep.subr.bf16.mxu0 0
      %335 = vmatpush1.bf16.msra.mxu0 %v322
      %336 = vmatprep.subr.bf16.mxu0 0
      %337 = vmatpush1.bf16.msra.mxu0 %v321
      %338 = vmatprep.subr.bf16.mxu0 0
      %339 = vmatpush1.bf16.msra.mxu0 %v320
      %340 = vmatprep.subr.bf16.mxu0 0
      %341 = vmatpush1.bf16.msra.mxu0 %v319
      %342 = vmatprep.subr.bf16.mxu0 0
      %343 = vmatpush1.bf16.msra.mxu0 %v318
      %344 = vmatprep.subr.bf16.mxu0 0
      %345 = vmatpush1.bf16.msra.mxu0 %v317
      %346 = vmatprep.subr.bf16.mxu0 0
      %347 = vmatpush1.bf16.msra.mxu0 %v316
      %348 = vmatprep.subr.bf16.mxu0 0
      %349 = vmatpush2.bf16.msra.mxu0 0
      %350 = vmatprep.subr.bf16.mxu0 0
      %351 = vmatpush2.bf16.msra.mxu0 0
      %352 = vmatprep.subr.bf16.mxu0 0
      %353 = vmatpush2.bf16.msra.mxu0 0
      %354 = vmatprep.subr.bf16.mxu0 0
      %355 = vmatpush2.bf16.msra.mxu0 0
      %356 = vmatprep.subr.bf16.mxu0 0
      %357 = vmatpush2.bf16.msra.mxu0 0
      %358 = vmatprep.subr.bf16.mxu0 0
      %359 = vmatpush2.bf16.msra.mxu0 0
      %360 = vmatprep.subr.bf16.mxu0 0
      %361 = vmatpush2.bf16.msra.mxu0 0
      %362 = vmatprep.subr.bf16.mxu0 0
      %363 = vmatpush2.bf16.msra.mxu0 0
      %364 = vmatprep.mubr.bf16.mxu0 0
      %365 = vmatmul.mubr.bf16.gmra.mxu0 %v276
      %v366 = vpop.f32.mrf.mxu0
      %v367 = vadd.f32 %v258, %v366
      %v368 = vpop.f32.mrf.mxu0
      %v369 = vpop.f32.mrf.mxu0
      %v370 = vadd.f32 %v258, %v369
      %v371 = vpop.f32.mrf.mxu0
      %372 = vmatprep.mubr.bf16.mxu0 0
      %373 = vmatmul.mubr.bf16.gmra.mxu0 %v277
      %v374 = vpop.f32.mrf.mxu0
      %v375 = vadd.f32 %v258, %v374
      %v376 = vpop.f32.mrf.mxu0
      %v377 = vpop.f32.mrf.mxu0
      %v378 = vadd.f32 %v258, %v377
      %v379 = vpop.f32.mrf.mxu0
      %380 = vmatprep.mubr.bf16.mxu0 0
      %381 = vmatmul.mubr.bf16.gmra.mxu0 %v278
      %v382 = vpop.f32.mrf.mxu0
      %v383 = vadd.f32 %v258, %v382
      %v384 = vpop.f32.mrf.mxu0
      %v385 = vpop.f32.mrf.mxu0
      %v386 = vadd.f32 %v258, %v385
      %v387 = vpop.f32.mrf.mxu0
      %388 = vmatprep.mubr.bf16.mxu0 0
      %389 = vmatmul.mubr.bf16.gmra.mxu0 %v279
      %v390 = vpop.f32.mrf.mxu0
      %v391 = vadd.f32 %v258, %v390
      %v392 = vpop.f32.mrf.mxu0
      %v393 = vpop.f32.mrf.mxu0
      %v394 = vadd.f32 %v258, %v393
      %v395 = vpop.f32.mrf.mxu0
      %396 = vdwg.mxu0
      %v397 = vmax.f32 %v367, 0.0
      %v398 = vmax.f32 %v370, 0.0
      %v399 = vmax.f32 %v375, 0.0
      %v400 = vmax.f32 %v378, 0.0
      %v401 = vmax.f32 %v383, 0.0
      %v402 = vmax.f32 %v386, 0.0
      %v403 = vmax.f32 %v391, 0.0
      %v404 = vmax.f32 %v394, 0.0
      %v405 = vpack.c.bf16 %v398, %v397
      %v406 = vpack.c.bf16 %v400, %v399
      %v407 = vpack.c.bf16 %v402, %v401
      %v408 = vpack.c.bf16 %v404, %v403
      %v409 = vld [vmem:[%s3] sm:$0xf]
      %v410 = vld [vmem:[%s3 + $0x4] sm:$0xf]
      %v411 = vld [vmem:[%s3 + $0x8] sm:$0xf]
      %v412 = vld [vmem:[%s3 + $0xc] sm:$0xf]
      %v413 = vld [vmem:[%s3 + $0x10] sm:$0xf]
      %v414 = vld [vmem:[%s3 + $0x14] sm:$0xf]
      %v415 = vld [vmem:[%s3 + $0x18] sm:$0xf]
      %v416 = vld [vmem:[%s3 + $0x1c] sm:$0xf]
      %v417 = vld [vmem:[%s3 + $0x20] sm:$0xf]
      %v418 = vld [vmem:[%s3 + $0x24] sm:$0xf]
      %v419 = vld [vmem:[%s3 + $0x28] sm:$0xf]
      %v420 = vld [vmem:[%s3 + $0x2c] sm:$0xf]
      %v421 = vld [vmem:[%s3 + $0x30] sm:$0xf]
      %v422 = vld [vmem:[%s3 + $0x34] sm:$0xf]
      %v423 = vld [vmem:[%s3 + $0x38] sm:$0xf]
      %v424 = vld [vmem:[%s3 + $0x3c] sm:$0xf]
      %v425 = vld [vmem:[%s4] sm:$0x1]
      %v427 = vlaneseq
      %v428 = vshrl.u32 %v427, 7
      %v429 = vsub.s32 0, %v428
      %v430 = vrot.slane %v425, %v429
      %v448 = vunpack.c.l.b16 %v409
      %v449 = vunpack.c.l.b16 %v410
      %v450 = vunpack.c.l.b16 %v411
      %v451 = vunpack.c.l.b16 %v412
      %v452 = vunpack.c.l.b16 %v413
      %v453 = vunpack.c.l.b16 %v414
      %v454 = vunpack.c.l.b16 %v415
      %v455 = vunpack.c.l.b16 %v416
      %v456 = vunpack.c.l.b16 %v417
      %v457 = vunpack.c.l.b16 %v418
      %v458 = vunpack.c.l.b16 %v419
      %v459 = vunpack.c.l.b16 %v420
      %v460 = vunpack.c.l.b16 %v421
      %v461 = vunpack.c.l.b16 %v422
      %v462 = vunpack.c.l.b16 %v423
      %v463 = vunpack.c.l.b16 %v424
      %v464 = vpack.c.b16 %v449, %v448
      %v465 = vpack.c.b16 %v451, %v450
      %v466 = vpack.c.b16 %v453, %v452
      %v467 = vpack.c.b16 %v455, %v454
      %v468 = vpack.c.b16 %v457, %v456
      %v469 = vpack.c.b16 %v459, %v458
      %v470 = vpack.c.b16 %v461, %v460
      %v471 = vpack.c.b16 %v463, %v462
      %480 = vmatprep.subr.bf16.mxu0 0
      %481 = vmatpush1.bf16.msra.mxu0 %v471
      %482 = vmatprep.subr.bf16.mxu0 0
      %483 = vmatpush1.bf16.msra.mxu0 %v470
      %484 = vmatprep.subr.bf16.mxu0 0
      %485 = vmatpush1.bf16.msra.mxu0 %v469
      %486 = vmatprep.subr.bf16.mxu0 0
      %487 = vmatpush1.bf16.msra.mxu0 %v468
      %488 = vmatprep.subr.bf16.mxu0 0
      %489 = vmatpush1.bf16.msra.mxu0 %v467
      %490 = vmatprep.subr.bf16.mxu0 0
      %491 = vmatpush1.bf16.msra.mxu0 %v466
      %492 = vmatprep.subr.bf16.mxu0 0
      %493 = vmatpush1.bf16.msra.mxu0 %v465
      %494 = vmatprep.subr.bf16.mxu0 0
      %495 = vmatpush1.bf16.msra.mxu0 %v464
      %496 = vmatprep.subr.bf16.mxu0 0
      %497 = vmatpush2.bf16.msra.mxu0 0
      %498 = vmatprep.subr.bf16.mxu0 0
      %499 = vmatpush2.bf16.msra.mxu0 0
      %500 = vmatprep.subr.bf16.mxu0 0
      %501 = vmatpush2.bf16.msra.mxu0 0
      %502 = vmatprep.subr.bf16.mxu0 0
      %503 = vmatpush2.bf16.msra.mxu0 0
      %504 = vmatprep.subr.bf16.mxu0 0
      %505 = vmatpush2.bf16.msra.mxu0 0
      %506 = vmatprep.subr.bf16.mxu0 0
      %507 = vmatpush2.bf16.msra.mxu0 0
      %508 = vmatprep.subr.bf16.mxu0 0
      %509 = vmatpush2.bf16.msra.mxu0 0
      %510 = vmatprep.subr.bf16.mxu0 0
      %511 = vmatpush2.bf16.msra.mxu0 0
      %512 = vmatprep.mubr.bf16.mxu0 0
      %513 = vmatmul.mubr.bf16.gmra.mxu0 %v405
      %v514 = vpop.f32.mrf.mxu0
      %v515 = vadd.f32 %v430, %v514
      %v516 = vpop.f32.mrf.mxu0
      %v517 = vpop.f32.mrf.mxu0
      %v518 = vadd.f32 %v430, %v517
      %v519 = vpop.f32.mrf.mxu0
      %520 = vmatprep.mubr.bf16.mxu0 0
      %521 = vmatmul.mubr.bf16.gmra.mxu0 %v406
      %v522 = vpop.f32.mrf.mxu0
      %v523 = vadd.f32 %v430, %v522
      %v524 = vpop.f32.mrf.mxu0
      %v525 = vpop.f32.mrf.mxu0
      %v526 = vadd.f32 %v430, %v525
      %v527 = vpop.f32.mrf.mxu0
      %528 = vmatprep.mubr.bf16.mxu0 0
      %529 = vmatmul.mubr.bf16.gmra.mxu0 %v407
      %v530 = vpop.f32.mrf.mxu0
      %v531 = vadd.f32 %v430, %v530
      %v532 = vpop.f32.mrf.mxu0
      %v533 = vpop.f32.mrf.mxu0
      %v534 = vadd.f32 %v430, %v533
      %v535 = vpop.f32.mrf.mxu0
      %536 = vmatprep.mubr.bf16.mxu0 0
      %537 = vmatmul.mubr.bf16.gmra.mxu0 %v408
      %v538 = vpop.f32.mrf.mxu0
      %v539 = vadd.f32 %v430, %v538
      %v540 = vpop.f32.mrf.mxu0
      %v541 = vpop.f32.mrf.mxu0
      %v542 = vadd.f32 %v430, %v541
      %v543 = vpop.f32.mrf.mxu0
      %544 = vdwg.mxu0
      %545 = vst [vmem:[%s226] sm:$0xff] %v515
      %546 = vst [vmem:[%s226 + $0x8] sm:$0xff] %v518
      %547 = vst [vmem:[%s226 + $0x10] sm:$0xff] %v523
      %548 = vst [vmem:[%s226 + $0x18] sm:$0xff] %v526
      %549 = vst [vmem:[%s226 + $0x20] sm:$0xff] %v531
      %550 = vst [vmem:[%s226 + $0x28] sm:$0xff] %v534
      %551 = vst [vmem:[%s226 + $0x30] sm:$0xff] %v539
      %552 = vst [vmem:[%s226 + $0x38] sm:$0xff] %v542
      %s553 = smul.u32 8, %s16
      %p554 = scmp.lt.s32.totalorder %s553, 15
      %s555 = scalar_select %p554, %s553, 15
      %s556 = smul.addr %s555, 8
      %s557 = scalar_lea.vmem %s5, %s556
      // Predicated region
      $region41: #{mask_rcnn_forward.13} parent=39 // pred_check
        %p558 = pneg %p144
      $region42: #{mask_rcnn_forward.13} parent=39 // pred_check_branch
        %560 = sbr.rel (%p558) target = $region44
      $region43: #{mask_rcnn_forward.13} parent=39 // pred_region
        %s561 = smul.u32 8, %s16
      $region44: #{mask_rcnn_forward.13} parent=39 // pred_fallthru
        _
    $region40: #{mask_rcnn_forward.13} parent=5 // pred_fallthru
      _
    %p562 = scmp.le.s32.totalorder 2, %s11
    // Predicated region
    $region45: #{mask_rcnn_forward.13} parent=5 // pred_check
      %p563 = pneg %p562
    $region46: #{mask_rcnn_forward.13} parent=5 // pred_check_branch
      %565 = sbr.rel (%p563) target = $region48
    $region47: #{mask_rcnn_forward.13} parent=5 // pred_region
      %s566 = ssub.s32 %s11, 2
      // Predicated region
      $region49: #{mask_rcnn_forward.13} parent=47 // pred_check
        %p567 = pneg %p150
      $region50: #{mask_rcnn_forward.13} parent=47 // pred_check_branch
        %569 = sbr.rel (%p567) target = $region52
      $region51: #{mask_rcnn_forward.13} parent=47 // pred_region
        %s570 = smul.u32 8, %s17
        %p571 = scmp.lt.s32.totalorder %s570, 15
        %s572 = scalar_select %p571, %s570, 15
        %s573 = smul.addr %s572, 8
        %s574 = scalar_lea.vmem %s5, %s573
      $region52: #{mask_rcnn_forward.13} parent=47 // pred_fallthru
        _
    $region48: #{mask_rcnn_forward.13} parent=5 // pred_fallthru
      _
  $region6: #{mask_rcnn_forward.13} parent=0 // loop_footer
    %s15 = sadd.s32 1, %s11
  $region7: #{mask_rcnn_forward.13} parent=0 // loop_footer_branch
    %10 = sbr.rel target = $region3
  $region8: #{mask_rcnn_forward.13} parent=0 // loop_exit
    _

</llo_original>
